<compile_context>
chip_gen: v6e
topology: v6e:2x2x1
jax: 0.10.0
libtpu: 0.0.40
codegen_flags: <defaults>
</compile_context>

<pallas_src>
import jax
import jax.numpy as jnp
from jax.experimental import pallas as pl
from jax.experimental.pallas import tpu as pltpu

# ---------------- small synthetic CLIP-ViT config -----------------
IMG = 16          # image height / width
PATCH = 8         # patch size -> 2x2 = 4 patches
CHANNELS = 3      # RGB pixel_values like CLIP
HIDDEN = 32       # vision hidden size
NUM_HEADS = 4
HEAD_DIM = HIDDEN // NUM_HEADS
INTERMEDIATE = 64
NUM_LAYERS = 2
PROJ_DIM = 16     # visual_projection output dim
LN_EPS = 1e-5
DTYPE = jnp.float32
MXU_DTYPE = jnp.bfloat16          # matmul-operand dtype (f32 accumulation)

NUM_PATCHES = (IMG // PATCH) ** 2
SEQ = NUM_PATCHES + 1                    # +1 CLS token
PATCH_DIM = CHANNELS * PATCH * PATCH     # 192

# Argument order of the fused-weight inputs (matches the kernel signature tail).
WEIGHT_KEYS = (
    "patch_w_t", "pre_ln_g", "pre_ln_b",
    "ln1_g", "ln1_b", "wqkv", "bqkv", "wo", "bo",
    "ln2_g", "ln2_b", "wfc1", "bfc1", "wfc2", "bfc2",
    "post_ln_g", "post_ln_b", "proj_w_t",
)


# ---------------- fused encoder kernel -----------------
def _layer_norm(x, g, b):
    mean = jnp.mean(x, axis=-1, keepdims=True)
    c = x - mean
    var = jnp.mean(c * c, axis=-1, keepdims=True)
    return c * jax.lax.rsqrt(var + LN_EPS) * g + b


def _encoder_kernel(patches_ref, embed_ref, attn_bias_ref, cls_sel_ref, hmask_ref,
                    patch_w_ref, pre_g_ref, pre_b_ref,
                    ln1_g_ref, ln1_b_ref, wqkv_ref, bqkv_ref, wo_ref, bo_ref,
                    ln2_g_ref, ln2_b_ref, wfc1_ref, bfc1_ref, wfc2_ref, bfc2_ref,
                    post_g_ref, post_b_ref, proj_ref, out_ref):
    f32 = jnp.float32
    bf16 = MXU_DTYPE
    rows = patches_ref.shape[0]                      # Bt * SEQ

    # ---- patch embedding + class/positional embeddings (whole Bt-image slab) ----
    # Each image contributes SEQ rows; row 0 of each image is an all-zero CLS
    # slot (patch conv has no bias), embed_ref already holds
    # class_embedding + pos_embedding tiled Bt times.
    x = jnp.dot(patches_ref[...].astype(bf16), patch_w_ref[...],
                preferred_element_type=f32)          # (rows, D)
    x = x + embed_ref[...]
    x = _layer_norm(x, pre_g_ref[...], pre_b_ref[...])       # pre_layrnorm

    attn_bias = attn_bias_ref[...]                   # (rows, rows): 0 in-image, -1e9 cross

    # ---- transformer layers (fully unrolled, weights VMEM-resident) ----
    for l in range(NUM_LAYERS):
        # --- self-attention block ---
        residual = x
        h = _layer_norm(x, ln1_g_ref[l], ln1_b_ref[l])
        # Fused QKV projection; the Q band already carries the 1/sqrt(head_dim)
        # scale (folded at parameter-prep time).
        qkv = jnp.dot(h.astype(bf16), wqkv_ref[l],
                      preferred_element_type=f32) + bqkv_ref[l]   # (rows, 3D)
        q = qkv[:, 0:HIDDEN]
        k = qkv[:, HIDDEN:2 * HIDDEN].astype(bf16)
        v = qkv[:, 2 * HIDDEN:3 * HIDDEN]

        attn = jnp.zeros((rows, HIDDEN), f32)
        for hd in range(NUM_HEADS):
            mask = hmask_ref[hd]                                  # (1, D) 0/1
            # (q*mask) . k^T only contracts this head's feature columns.
            s = jax.lax.dot_general((q * mask).astype(bf16), k,
                                    (((1,), (1,)), ((), ())),
                                    preferred_element_type=f32)   # (rows, rows)
            s = s + attn_bias                                     # block-diag per image
            s = s - jnp.max(s, axis=-1, keepdims=True)
            p = jnp.exp(s)                                        # cross-image -> exact 0
            p = p * pl.reciprocal(jnp.sum(p, axis=-1, keepdims=True), approx=True)
            # Masked V keeps head hd's output in its own columns, so summing
            # over heads reassembles the merged (rows, D) attention output.
            attn = attn + jnp.dot(p.astype(bf16), (v * mask).astype(bf16),
                                  preferred_element_type=f32)

        x = jnp.dot(attn.astype(bf16), wo_ref[l],
                    preferred_element_type=f32) + bo_ref[l] + residual

        # --- MLP block (quick_gelu) ---
        residual = x
        h = _layer_norm(x, ln2_g_ref[l], ln2_b_ref[l])
        h = jnp.dot(h.astype(bf16), wfc1_ref[l],
                    preferred_element_type=f32) + bfc1_ref[l]
        h = h * jax.nn.sigmoid(1.702 * h)                         # quick_gelu
        x = jnp.dot(h.astype(bf16), wfc2_ref[l],
                    preferred_element_type=f32) + bfc2_ref[l] + residual

    # ---- CLS pooling (selection matmul), post-layernorm, visual projection ----
    cls = jnp.dot(cls_sel_ref[...], x, preferred_element_type=f32)    # (Bt, D)
    cls = _layer_norm(cls, post_g_ref[...], post_b_ref[...])
    out_ref[...] = jnp.dot(cls.astype(bf16), proj_ref[...],
                           preferred_element_type=f32).astype(out_ref.dtype)


# ---------------- host-side wrapper -----------------
def _const_index_map(ndim):
    zeros = (0,) * ndim
    return lambda b: zeros


def extract_patches(pixel_values):
    """NCHW -> (B, SEQ, C*P*P) flattened patch rows; row 0 is a zero CLS slot."""
    B, C, H, W = pixel_values.shape
    Hp, Wp = H // PATCH, W // PATCH
    p = pixel_values.reshape(B, C, Hp, PATCH, Wp, PATCH)
    p = p.transpose(0, 2, 4, 1, 3, 5).reshape(B, Hp * Wp, C * PATCH * PATCH)
    return jnp.pad(p, ((0, 0), (1, 0), (0, 0)))


def _pick_block_batch(B):
    # Bt*SEQ rows per step (sublane-friendly) while keeping the output block
    # layout-legal: either Bt is a multiple of 8 or Bt == B (full dim).
    return 8 if (B >= 8 and B % 8 == 0) else B


def clip_image_features(pixel_values, fused):
    B = pixel_values.shape[0]
    Bt = _pick_block_batch(B)
    num_blocks = B // Bt
    rows = Bt * SEQ

    patches = extract_patches(pixel_values).reshape(B * SEQ, PATCH_DIM)

    # Per-step constants that depend on Bt (tiny, built host-side).
    embed_tiled = jnp.tile(fused["embed_add"], (Bt, 1))                  # (rows, D)
    img_id = jnp.arange(rows, dtype=jnp.int32) // SEQ
    attn_bias = jnp.where(img_id[:, None] == img_id[None, :],
                          0.0, -1e9).astype(DTYPE)                       # (rows, rows)
    cls_sel = (jnp.arange(rows, dtype=jnp.int32)[None, :] ==
               (jnp.arange(Bt, dtype=jnp.int32) * SEQ)[:, None]).astype(DTYPE)  # (Bt, rows)

    weight_args = [fused[k] for k in WEIGHT_KEYS]

    in_specs = [
        pl.BlockSpec((rows, PATCH_DIM), lambda b: (b, 0)),
        pl.BlockSpec(embed_tiled.shape, _const_index_map(2)),
        pl.BlockSpec(attn_bias.shape, _const_index_map(2)),
        pl.BlockSpec(cls_sel.shape, _const_index_map(2)),
        pl.BlockSpec(fused["head_masks"].shape, _const_index_map(3)),
    ]
    in_specs += [pl.BlockSpec(w.shape, _const_index_map(w.ndim)) for w in weight_args]

    out = pl.pallas_call(
        _encoder_kernel,
        out_shape=jax.ShapeDtypeStruct((B, PROJ_DIM), DTYPE),
        grid=(num_blocks,),
        in_specs=in_specs,
        out_specs=pl.BlockSpec((Bt, PROJ_DIM), lambda b: (b, 0)),
        compiler_params=pltpu.CompilerParams(
            dimension_semantics=("parallel",)),
    )(patches, embed_tiled, attn_bias, cls_sel, fused["head_masks"], *weight_args)
    return out


# ---------------- parameters (deterministic synthetic init) -----------------
def init_params(key):
    def nrm(k, shape, scale=0.02):
        return (jax.random.normal(k, shape, jnp.float32) * scale).astype(DTYPE)

    keys = iter(jax.random.split(key, 8 + NUM_LAYERS * 12))
    params = {
        "patch_w": nrm(next(keys), (HIDDEN, CHANNELS * PATCH * PATCH)),
        "class_embedding": nrm(next(keys), (HIDDEN,)),
        "pos_embedding": nrm(next(keys), (SEQ, HIDDEN)),
        "pre_ln_g": jnp.ones((HIDDEN,), DTYPE),
        "pre_ln_b": jnp.zeros((HIDDEN,), DTYPE),
        "post_ln_g": jnp.ones((HIDDEN,), DTYPE),
        "post_ln_b": jnp.zeros((HIDDEN,), DTYPE),
        "proj_w": nrm(next(keys), (PROJ_DIM, HIDDEN)),
        "layers": [],
    }
    for _ in range(NUM_LAYERS):
        params["layers"].append({
            "ln1_g": jnp.ones((HIDDEN,), DTYPE), "ln1_b": jnp.zeros((HIDDEN,), DTYPE),
            "q_w": nrm(next(keys), (HIDDEN, HIDDEN)), "q_b": jnp.zeros((HIDDEN,), DTYPE),
            "k_w": nrm(next(keys), (HIDDEN, HIDDEN)), "k_b": jnp.zeros((HIDDEN,), DTYPE),
            "v_w": nrm(next(keys), (HIDDEN, HIDDEN)), "v_b": jnp.zeros((HIDDEN,), DTYPE),
            "o_w": nrm(next(keys), (HIDDEN, HIDDEN)), "o_b": jnp.zeros((HIDDEN,), DTYPE),
            "ln2_g": jnp.ones((HIDDEN,), DTYPE), "ln2_b": jnp.zeros((HIDDEN,), DTYPE),
            "fc1_w": nrm(next(keys), (INTERMEDIATE, HIDDEN)),
            "fc1_b": jnp.zeros((INTERMEDIATE,), DTYPE),
            "fc2_w": nrm(next(keys), (HIDDEN, INTERMEDIATE)),
            "fc2_b": jnp.zeros((HIDDEN,), DTYPE),
        })
    return params


def prepare_fused_params(params):
    """Pre-transpose to (in, out), fuse QKV, fold the Q scale, cast matmul
    weights to bf16, stack per layer, and precompute the per-head masks."""
    scale = HEAD_DIM ** -0.5
    layers = params["layers"]
    t = jnp.transpose
    bf16 = MXU_DTYPE

    def row(v):
        return v.reshape(1, -1)

    embed_add = params["pos_embedding"].at[0].add(params["class_embedding"])

    col = jnp.arange(HIDDEN, dtype=jnp.int32)
    head_masks = (col[None, :] // HEAD_DIM ==
                  jnp.arange(NUM_HEADS, dtype=jnp.int32)[:, None]).astype(DTYPE)
    head_masks = head_masks.reshape(NUM_HEADS, 1, HIDDEN)

    wqkv = jnp.stack([
        jnp.concatenate([t(l["q_w"]) * scale, t(l["k_w"]), t(l["v_w"])], axis=1)
        for l in layers]).astype(bf16)                                    # (L, D, 3D)
    bqkv = jnp.stack([
        row(jnp.concatenate([l["q_b"] * scale, l["k_b"], l["v_b"]]))
        for l in layers])                                                 # (L, 1, 3D)

    return {
        "patch_w_t": t(params["patch_w"]).astype(bf16),                   # (PD, D)
        "embed_add": embed_add,                                           # (SEQ, D) f32
        "head_masks": head_masks,                                         # (H, 1, D) f32
        "pre_ln_g": row(params["pre_ln_g"]), "pre_ln_b": row(params["pre_ln_b"]),
        "post_ln_g": row(params["post_ln_g"]), "post_ln_b": row(params["post_ln_b"]),
        "proj_w_t": t(params["proj_w"]).astype(bf16),                     # (D, PROJ)
        "ln1_g": jnp.stack([row(l["ln1_g"]) for l in layers]),            # (L,1,D)
        "ln1_b": jnp.stack([row(l["ln1_b"]) for l in layers]),
        "ln2_g": jnp.stack([row(l["ln2_g"]) for l in layers]),
        "ln2_b": jnp.stack([row(l["ln2_b"]) for l in layers]),
        "wqkv": wqkv, "bqkv": bqkv,
        "wo": jnp.stack([t(l["o_w"]) for l in layers]).astype(bf16),      # (L,D,D)
        "bo": jnp.stack([row(l["o_b"]) for l in layers]),                 # (L,1,D)
        "wfc1": jnp.stack([t(l["fc1_w"]) for l in layers]).astype(bf16),  # (L,D,I)
        "bfc1": jnp.stack([row(l["fc1_b"]) for l in layers]),             # (L,1,I)
        "wfc2": jnp.stack([t(l["fc2_w"]) for l in layers]).astype(bf16),  # (L,I,D)
        "bfc2": jnp.stack([row(l["fc2_b"]) for l in layers]),             # (L,1,D)
    }


# ---------------- pure-JAX reference (same bf16-operand / f32-accum math) -----------------
def _reference_features(pixel_values, fused):
    bf16, f32 = MXU_DTYPE, jnp.float32

    def ln(y, g, b):
        m = y.mean(-1, keepdims=True)
        v = ((y - m) ** 2).mean(-1, keepdims=True)
        return (y - m) * jax.lax.rsqrt(v + LN_EPS) * g + b

    def ein(eq, a, w):
        return jnp.einsum(eq, a.astype(bf16), w.astype(bf16),
                          preferred_element_type=f32)

    x = ein("bsp,pd->bsd", extract_patches(pixel_values),
            fused["patch_w_t"]) + fused["embed_add"][None]
    x = ln(x, fused["pre_ln_g"], fused["pre_ln_b"])
    B, S, D = x.shape
    for l in range(NUM_LAYERS):
        res = x
        h = ln(x, fused["ln1_g"][l], fused["ln1_b"][l])
        qkv = ein("bsd,de->bse", h, fused["wqkv"][l]) + fused["bqkv"][l]
        q, k, v = qkv[..., :D], qkv[..., D:2 * D], qkv[..., 2 * D:]
        qh = q.reshape(B, S, NUM_HEADS, HEAD_DIM)
        kh = k.reshape(B, S, NUM_HEADS, HEAD_DIM)
        vh = v.reshape(B, S, NUM_HEADS, HEAD_DIM)
        s = ein("bqhd,bkhd->bhqk", qh, kh)
        p = jax.nn.softmax(s, axis=-1)
        o = ein("bhqk,bkhd->bqhd", p, vh).reshape(B, S, D)
        x = ein("bsd,de->bse", o, fused["wo"][l]) + fused["bo"][l] + res
        res = x
        h = ln(x, fused["ln2_g"][l], fused["ln2_b"][l])
        h = ein("bsd,di->bsi", h, fused["wfc1"][l]) + fused["bfc1"][l]
        h = h * jax.nn.sigmoid(1.702 * h)
        x = ein("bsi,id->bsd", h, fused["wfc2"][l]) + fused["bfc2"][l] + res
    cls = ln(x[:, 0, :], fused["post_ln_g"], fused["post_ln_b"])
    return ein("bd,dp->bp", cls, fused["proj_w_t"])


if __name__ == "__main__":
    key = jax.random.PRNGKey(0)
    k_params, k_pix = jax.random.split(key)
    params = init_params(k_params)
    fused = prepare_fused_params(params)

    B = 16   # 2 grid steps of 8 images each (keeps both v7x TCs busy)
    pixel_values = jax.random.normal(k_pix, (B, CHANNELS, IMG, IMG), DTYPE)

    forward = jax.jit(clip_image_features)
    feats = jax.block_until_ready(forward(pixel_values, fused))

    assert feats.shape == (B, PROJ_DIM), feats.shape
    assert bool(jnp.all(jnp.isfinite(feats)))

    ref = _reference_features(pixel_values, fused)
    max_err = float(jnp.max(jnp.abs(feats - ref)))
    assert bool(jnp.allclose(feats, ref, rtol=2e-2, atol=2e-3)), max_err

    print("KERNEL_OK")
</pallas_src>

<mosaic_0001>
module attributes {stable_mosaic.version = 11 : i64} {
  func.func @_encoder_kernel(%arg0: i32, %arg1: memref<40x192xf32, #tpu.memory_space<vmem>>, %arg2: memref<40x32xf32, #tpu.memory_space<vmem>>, %arg3: memref<40x40xf32, #tpu.memory_space<vmem>>, %arg4: memref<8x40xf32, #tpu.memory_space<vmem>>, %arg5: memref<4x1x32xf32, #tpu.memory_space<vmem>>, %arg6: memref<192x32xbf16, #tpu.memory_space<vmem>>, %arg7: memref<1x32xf32, #tpu.memory_space<vmem>>, %arg8: memref<1x32xf32, #tpu.memory_space<vmem>>, %arg9: memref<2x1x32xf32, #tpu.memory_space<vmem>>, %arg10: memref<2x1x32xf32, #tpu.memory_space<vmem>>, %arg11: memref<2x32x96xbf16, #tpu.memory_space<vmem>>, %arg12: memref<2x1x96xf32, #tpu.memory_space<vmem>>, %arg13: memref<2x32x32xbf16, #tpu.memory_space<vmem>>, %arg14: memref<2x1x32xf32, #tpu.memory_space<vmem>>, %arg15: memref<2x1x32xf32, #tpu.memory_space<vmem>>, %arg16: memref<2x1x32xf32, #tpu.memory_space<vmem>>, %arg17: memref<2x32x64xbf16, #tpu.memory_space<vmem>>, %arg18: memref<2x1x64xf32, #tpu.memory_space<vmem>>, %arg19: memref<2x64x32xbf16, #tpu.memory_space<vmem>>, %arg20: memref<2x1x32xf32, #tpu.memory_space<vmem>>, %arg21: memref<1x32xf32, #tpu.memory_space<vmem>>, %arg22: memref<1x32xf32, #tpu.memory_space<vmem>>, %arg23: memref<32x16xbf16, #tpu.memory_space<vmem>>, %arg24: memref<8x16xf32, #tpu.memory_space<vmem>>) attributes {dimension_semantics = [#tpu.dimension_semantics<parallel>], iteration_bounds = array<i64: 2>, scalar_prefetch = 0 : i64, scratch_operands = 0 : i64, tpu.core_type = #tpu.core_type<tc>, window_params = [{transform_indices = @transform_0, window_bounds = array<i64: 40, 192>}, {pipeline_mode = #tpu.pipeline_mode<synchronous>, transform_indices = @transform_1, window_bounds = array<i64: 40, 32>}, {pipeline_mode = #tpu.pipeline_mode<synchronous>, transform_indices = @transform_2, window_bounds = array<i64: 40, 40>}, {pipeline_mode = #tpu.pipeline_mode<synchronous>, transform_indices = @transform_3, window_bounds = array<i64: 8, 40>}, {pipeline_mode = #tpu.pipeline_mode<synchronous>, transform_indices = @transform_4, window_bounds = array<i64: 4, 1, 32>}, {pipeline_mode = #tpu.pipeline_mode<synchronous>, transform_indices = @transform_5, window_bounds = array<i64: 192, 32>}, {pipeline_mode = #tpu.pipeline_mode<synchronous>, transform_indices = @transform_6, window_bounds = array<i64: 1, 32>}, {pipeline_mode = #tpu.pipeline_mode<synchronous>, transform_indices = @transform_7, window_bounds = array<i64: 1, 32>}, {pipeline_mode = #tpu.pipeline_mode<synchronous>, transform_indices = @transform_8, window_bounds = array<i64: 2, 1, 32>}, {pipeline_mode = #tpu.pipeline_mode<synchronous>, transform_indices = @transform_9, window_bounds = array<i64: 2, 1, 32>}, {pipeline_mode = #tpu.pipeline_mode<synchronous>, transform_indices = @transform_10, window_bounds = array<i64: 2, 32, 96>}, {pipeline_mode = #tpu.pipeline_mode<synchronous>, transform_indices = @transform_11, window_bounds = array<i64: 2, 1, 96>}, {pipeline_mode = #tpu.pipeline_mode<synchronous>, transform_indices = @transform_12, window_bounds = array<i64: 2, 32, 32>}, {pipeline_mode = #tpu.pipeline_mode<synchronous>, transform_indices = @transform_13, window_bounds = array<i64: 2, 1, 32>}, {pipeline_mode = #tpu.pipeline_mode<synchronous>, transform_indices = @transform_14, window_bounds = array<i64: 2, 1, 32>}, {pipeline_mode = #tpu.pipeline_mode<synchronous>, transform_indices = @transform_15, window_bounds = array<i64: 2, 1, 32>}, {pipeline_mode = #tpu.pipeline_mode<synchronous>, transform_indices = @transform_16, window_bounds = array<i64: 2, 32, 64>}, {pipeline_mode = #tpu.pipeline_mode<synchronous>, transform_indices = @transform_17, window_bounds = array<i64: 2, 1, 64>}, {pipeline_mode = #tpu.pipeline_mode<synchronous>, transform_indices = @transform_18, window_bounds = array<i64: 2, 64, 32>}, {pipeline_mode = #tpu.pipeline_mode<synchronous>, transform_indices = @transform_19, window_bounds = array<i64: 2, 1, 32>}, {pipeline_mode = #tpu.pipeline_mode<synchronous>, transform_indices = @transform_20, window_bounds = array<i64: 1, 32>}, {pipeline_mode = #tpu.pipeline_mode<synchronous>, transform_indices = @transform_21, window_bounds = array<i64: 1, 32>}, {pipeline_mode = #tpu.pipeline_mode<synchronous>, transform_indices = @transform_22, window_bounds = array<i64: 32, 16>}, {transform_indices = @transform_23, window_bounds = array<i64: 8, 16>}]} {
    %c0 = arith.constant 0 : index
    %c0_0 = arith.constant 0 : index
    %0 = vector.load %arg1[%c0, %c0_0] : memref<40x192xf32, #tpu.memory_space<vmem>>, vector<40x192xf32>
    %1 = arith.truncf %0 : vector<40x192xf32> to vector<40x192xbf16>
    %c0_1 = arith.constant 0 : index
    %c0_2 = arith.constant 0 : index
    %2 = vector.load %arg6[%c0_1, %c0_2] : memref<192x32xbf16, #tpu.memory_space<vmem>>, vector<192x32xbf16>
    %cst = arith.constant dense<0.000000e+00> : vector<40x32xf32>
    %3 = tpu.matmul %1, %2, %cst {dimension_numbers = #tpu.dot_dimension_numbers<[1], [0], [0], [1], [0, 0, 1, 1], [], []>} : vector<40x192xbf16>, vector<192x32xbf16>, vector<40x32xf32> -> vector<40x32xf32>
    %c0_3 = arith.constant 0 : index
    %c0_4 = arith.constant 0 : index
    %4 = vector.load %arg2[%c0_3, %c0_4] : memref<40x32xf32, #tpu.memory_space<vmem>>, vector<40x32xf32>
    %5 = arith.addf %3, %4 : vector<40x32xf32>
    %c0_5 = arith.constant 0 : index
    %c0_6 = arith.constant 0 : index
    %6 = vector.load %arg7[%c0_5, %c0_6] : memref<1x32xf32, #tpu.memory_space<vmem>>, vector<1x32xf32>
    %c0_7 = arith.constant 0 : index
    %c0_8 = arith.constant 0 : index
    %7 = vector.load %arg8[%c0_7, %c0_8] : memref<1x32xf32, #tpu.memory_space<vmem>>, vector<1x32xf32>
    %cst_9 = arith.constant dense<0.000000e+00> : vector<40xf32>
    %8 = vector.multi_reduction <add>, %5, %cst_9 [1] : vector<40x32xf32> to vector<40xf32>
    %9 = vector.shape_cast %8 : vector<40xf32> to vector<40x1xf32>
    %cst_10 = arith.constant 3.200000e+01 : f32
    %10 = vector.broadcast %cst_10 : f32 to vector<40x1xf32>
    %11 = arith.divf %9, %10 : vector<40x1xf32>
    %12 = vector.broadcast %11 : vector<40x1xf32> to vector<40x32xf32>
    %13 = arith.subf %5, %12 : vector<40x32xf32>
    %14 = arith.mulf %13, %13 : vector<40x32xf32>
    %cst_11 = arith.constant dense<0.000000e+00> : vector<40xf32>
    %15 = vector.multi_reduction <add>, %14, %cst_11 [1] : vector<40x32xf32> to vector<40xf32>
    %16 = vector.shape_cast %15 : vector<40xf32> to vector<40x1xf32>
    %cst_12 = arith.constant 3.200000e+01 : f32
    %17 = vector.broadcast %cst_12 : f32 to vector<40x1xf32>
    %18 = arith.divf %16, %17 : vector<40x1xf32>
    %cst_13 = arith.constant 9.99999974E-6 : f32
    %19 = vector.broadcast %cst_13 : f32 to vector<40x1xf32>
    %20 = arith.addf %18, %19 : vector<40x1xf32>
    %21 = math.rsqrt %20 : vector<40x1xf32>
    %22 = vector.broadcast %21 : vector<40x1xf32> to vector<40x32xf32>
    %23 = arith.mulf %13, %22 : vector<40x32xf32>
    %24 = vector.broadcast %6 : vector<1x32xf32> to vector<40x32xf32>
    %25 = arith.mulf %23, %24 : vector<40x32xf32>
    %26 = vector.broadcast %7 : vector<1x32xf32> to vector<40x32xf32>
    %27 = arith.addf %25, %26 : vector<40x32xf32>
    %c0_14 = arith.constant 0 : index
    %c0_15 = arith.constant 0 : index
    %28 = vector.load %arg3[%c0_14, %c0_15] : memref<40x40xf32, #tpu.memory_space<vmem>>, vector<40x40xf32>
    %c0_16 = arith.constant 0 : index
    %c0_17 = arith.constant 0 : index
    %c0_18 = arith.constant 0 : index
    %29 = vector.load %arg9[%c0_16, %c0_17, %c0_18] : memref<2x1x32xf32, #tpu.memory_space<vmem>>, vector<1x1x32xf32>
    %30 = vector.shape_cast %29 : vector<1x1x32xf32> to vector<1x32xf32>
    %c0_19 = arith.constant 0 : index
    %c0_20 = arith.constant 0 : index
    %c0_21 = arith.constant 0 : index
    %31 = vector.load %arg10[%c0_19, %c0_20, %c0_21] : memref<2x1x32xf32, #tpu.memory_space<vmem>>, vector<1x1x32xf32>
    %32 = vector.shape_cast %31 : vector<1x1x32xf32> to vector<1x32xf32>
    %cst_22 = arith.constant dense<0.000000e+00> : vector<40xf32>
    %33 = vector.multi_reduction <add>, %27, %cst_22 [1] : vector<40x32xf32> to vector<40xf32>
    %34 = vector.shape_cast %33 : vector<40xf32> to vector<40x1xf32>
    %cst_23 = arith.constant 3.200000e+01 : f32
    %35 = vector.broadcast %cst_23 : f32 to vector<40x1xf32>
    %36 = arith.divf %34, %35 : vector<40x1xf32>
    %37 = vector.broadcast %36 : vector<40x1xf32> to vector<40x32xf32>
    %38 = arith.subf %27, %37 : vector<40x32xf32>
    %39 = arith.mulf %38, %38 : vector<40x32xf32>
    %cst_24 = arith.constant dense<0.000000e+00> : vector<40xf32>
    %40 = vector.multi_reduction <add>, %39, %cst_24 [1] : vector<40x32xf32> to vector<40xf32>
    %41 = vector.shape_cast %40 : vector<40xf32> to vector<40x1xf32>
    %cst_25 = arith.constant 3.200000e+01 : f32
    %42 = vector.broadcast %cst_25 : f32 to vector<40x1xf32>
    %43 = arith.divf %41, %42 : vector<40x1xf32>
    %cst_26 = arith.constant 9.99999974E-6 : f32
    %44 = vector.broadcast %cst_26 : f32 to vector<40x1xf32>
    %45 = arith.addf %43, %44 : vector<40x1xf32>
    %46 = math.rsqrt %45 : vector<40x1xf32>
    %47 = vector.broadcast %46 : vector<40x1xf32> to vector<40x32xf32>
    %48 = arith.mulf %38, %47 : vector<40x32xf32>
    %49 = vector.broadcast %30 : vector<1x32xf32> to vector<40x32xf32>
    %50 = arith.mulf %48, %49 : vector<40x32xf32>
    %51 = vector.broadcast %32 : vector<1x32xf32> to vector<40x32xf32>
    %52 = arith.addf %50, %51 : vector<40x32xf32>
    %53 = arith.truncf %52 : vector<40x32xf32> to vector<40x32xbf16>
    %c0_27 = arith.constant 0 : index
    %c0_28 = arith.constant 0 : index
    %c0_29 = arith.constant 0 : index
    %54 = vector.load %arg11[%c0_27, %c0_28, %c0_29] : memref<2x32x96xbf16, #tpu.memory_space<vmem>>, vector<1x32x96xbf16>
    %55 = vector.shape_cast %54 : vector<1x32x96xbf16> to vector<32x96xbf16>
    %cst_30 = arith.constant dense<0.000000e+00> : vector<40x96xf32>
    %56 = tpu.matmul %53, %55, %cst_30 {dimension_numbers = #tpu.dot_dimension_numbers<[1], [0], [0], [1], [0, 0, 1, 1], [], []>} : vector<40x32xbf16>, vector<32x96xbf16>, vector<40x96xf32> -> vector<40x96xf32>
    %c0_31 = arith.constant 0 : index
    %c0_32 = arith.constant 0 : index
    %c0_33 = arith.constant 0 : index
    %57 = vector.load %arg12[%c0_31, %c0_32, %c0_33] : memref<2x1x96xf32, #tpu.memory_space<vmem>>, vector<1x1x96xf32>
    %58 = vector.shape_cast %57 : vector<1x1x96xf32> to vector<1x96xf32>
    %59 = vector.broadcast %58 : vector<1x96xf32> to vector<40x96xf32>
    %60 = arith.addf %56, %59 : vector<40x96xf32>
    %61 = vector.extract_strided_slice %60 {offsets = [0, 0], sizes = [40, 32], strides = [1, 1]} : vector<40x96xf32> to vector<40x32xf32>
    %62 = vector.extract_strided_slice %60 {offsets = [0, 32], sizes = [40, 32], strides = [1, 1]} : vector<40x96xf32> to vector<40x32xf32>
    %63 = arith.truncf %62 : vector<40x32xf32> to vector<40x32xbf16>
    %64 = vector.extract_strided_slice %60 {offsets = [0, 64], sizes = [40, 32], strides = [1, 1]} : vector<40x96xf32> to vector<40x32xf32>
    %cst_34 = arith.constant 0.000000e+00 : f32
    %65 = vector.broadcast %cst_34 : f32 to vector<40x32xf32>
    %c0_35 = arith.constant 0 : index
    %c0_36 = arith.constant 0 : index
    %c0_37 = arith.constant 0 : index
    %66 = vector.load %arg5[%c0_35, %c0_36, %c0_37] : memref<4x1x32xf32, #tpu.memory_space<vmem>>, vector<1x1x32xf32>
    %67 = vector.shape_cast %66 : vector<1x1x32xf32> to vector<1x32xf32>
    %68 = vector.broadcast %67 : vector<1x32xf32> to vector<40x32xf32>
    %69 = arith.mulf %61, %68 : vector<40x32xf32>
    %70 = arith.truncf %69 : vector<40x32xf32> to vector<40x32xbf16>
    %cst_38 = arith.constant dense<0.000000e+00> : vector<40x40xf32>
    %71 = tpu.matmul %70, %63, %cst_38 {dimension_numbers = #tpu.dot_dimension_numbers<[1], [1], [0], [0], [0, 0, 1, 0], [], []>} : vector<40x32xbf16>, vector<40x32xbf16>, vector<40x40xf32> -> vector<40x40xf32>
    %72 = arith.addf %71, %28 : vector<40x40xf32>
    %cst_39 = arith.constant dense<0xFF800000> : vector<40xf32>
    %73 = vector.multi_reduction <maximumf>, %72, %cst_39 [1] : vector<40x40xf32> to vector<40xf32>
    %74 = vector.shape_cast %73 : vector<40xf32> to vector<40x1xf32>
    %75 = vector.broadcast %74 : vector<40x1xf32> to vector<40x40xf32>
    %76 = arith.subf %72, %75 : vector<40x40xf32>
    %77 = math.exp %76 : vector<40x40xf32>
    %cst_40 = arith.constant dense<0.000000e+00> : vector<40xf32>
    %78 = vector.multi_reduction <add>, %77, %cst_40 [1] : vector<40x40xf32> to vector<40xf32>
    %79 = vector.shape_cast %78 : vector<40xf32> to vector<40x1xf32>
    %80 = tpu.reciprocal %79 {approx = true} : vector<40x1xf32> -> vector<40x1xf32>
    %81 = vector.broadcast %80 : vector<40x1xf32> to vector<40x40xf32>
    %82 = arith.mulf %77, %81 : vector<40x40xf32>
    %83 = arith.truncf %82 : vector<40x40xf32> to vector<40x40xbf16>
    %84 = vector.broadcast %67 : vector<1x32xf32> to vector<40x32xf32>
    %85 = arith.mulf %64, %84 : vector<40x32xf32>
    %86 = arith.truncf %85 : vector<40x32xf32> to vector<40x32xbf16>
    %cst_41 = arith.constant dense<0.000000e+00> : vector<40x32xf32>
    %87 = tpu.matmul %83, %86, %cst_41 {dimension_numbers = #tpu.dot_dimension_numbers<[1], [0], [0], [1], [0, 0, 1, 1], [], []>} : vector<40x40xbf16>, vector<40x32xbf16>, vector<40x32xf32> -> vector<40x32xf32>
    %88 = arith.addf %65, %87 : vector<40x32xf32>
    %c1 = arith.constant 1 : index
    %c0_42 = arith.constant 0 : index
    %c0_43 = arith.constant 0 : index
    %89 = vector.load %arg5[%c1, %c0_42, %c0_43] : memref<4x1x32xf32, #tpu.memory_space<vmem>>, vector<1x1x32xf32>
    %90 = vector.shape_cast %89 : vector<1x1x32xf32> to vector<1x32xf32>
    %91 = vector.broadcast %90 : vector<1x32xf32> to vector<40x32xf32>
    %92 = arith.mulf %61, %91 : vector<40x32xf32>
    %93 = arith.truncf %92 : vector<40x32xf32> to vector<40x32xbf16>
    %cst_44 = arith.constant dense<0.000000e+00> : vector<40x40xf32>
    %94 = tpu.matmul %93, %63, %cst_44 {dimension_numbers = #tpu.dot_dimension_numbers<[1], [1], [0], [0], [0, 0, 1, 0], [], []>} : vector<40x32xbf16>, vector<40x32xbf16>, vector<40x40xf32> -> vector<40x40xf32>
    %95 = arith.addf %94, %28 : vector<40x40xf32>
    %cst_45 = arith.constant dense<0xFF800000> : vector<40xf32>
    %96 = vector.multi_reduction <maximumf>, %95, %cst_45 [1] : vector<40x40xf32> to vector<40xf32>
    %97 = vector.shape_cast %96 : vector<40xf32> to vector<40x1xf32>
    %98 = vector.broadcast %97 : vector<40x1xf32> to vector<40x40xf32>
    %99 = arith.subf %95, %98 : vector<40x40xf32>
    %100 = math.exp %99 : vector<40x40xf32>
    %cst_46 = arith.constant dense<0.000000e+00> : vector<40xf32>
    %101 = vector.multi_reduction <add>, %100, %cst_46 [1] : vector<40x40xf32> to vector<40xf32>
    %102 = vector.shape_cast %101 : vector<40xf32> to vector<40x1xf32>
    %103 = tpu.reciprocal %102 {approx = true} : vector<40x1xf32> -> vector<40x1xf32>
    %104 = vector.broadcast %103 : vector<40x1xf32> to vector<40x40xf32>
    %105 = arith.mulf %100, %104 : vector<40x40xf32>
    %106 = arith.truncf %105 : vector<40x40xf32> to vector<40x40xbf16>
    %107 = vector.broadcast %90 : vector<1x32xf32> to vector<40x32xf32>
    %108 = arith.mulf %64, %107 : vector<40x32xf32>
    %109 = arith.truncf %108 : vector<40x32xf32> to vector<40x32xbf16>
    %cst_47 = arith.constant dense<0.000000e+00> : vector<40x32xf32>
    %110 = tpu.matmul %106, %109, %cst_47 {dimension_numbers = #tpu.dot_dimension_numbers<[1], [0], [0], [1], [0, 0, 1, 1], [], []>} : vector<40x40xbf16>, vector<40x32xbf16>, vector<40x32xf32> -> vector<40x32xf32>
    %111 = arith.addf %88, %110 : vector<40x32xf32>
    %c2 = arith.constant 2 : index
    %c0_48 = arith.constant 0 : index
    %c0_49 = arith.constant 0 : index
    %112 = vector.load %arg5[%c2, %c0_48, %c0_49] : memref<4x1x32xf32, #tpu.memory_space<vmem>>, vector<1x1x32xf32>
    %113 = vector.shape_cast %112 : vector<1x1x32xf32> to vector<1x32xf32>
    %114 = vector.broadcast %113 : vector<1x32xf32> to vector<40x32xf32>
    %115 = arith.mulf %61, %114 : vector<40x32xf32>
    %116 = arith.truncf %115 : vector<40x32xf32> to vector<40x32xbf16>
    %cst_50 = arith.constant dense<0.000000e+00> : vector<40x40xf32>
    %117 = tpu.matmul %116, %63, %cst_50 {dimension_numbers = #tpu.dot_dimension_numbers<[1], [1], [0], [0], [0, 0, 1, 0], [], []>} : vector<40x32xbf16>, vector<40x32xbf16>, vector<40x40xf32> -> vector<40x40xf32>
    %118 = arith.addf %117, %28 : vector<40x40xf32>
    %cst_51 = arith.constant dense<0xFF800000> : vector<40xf32>
    %119 = vector.multi_reduction <maximumf>, %118, %cst_51 [1] : vector<40x40xf32> to vector<40xf32>
    %120 = vector.shape_cast %119 : vector<40xf32> to vector<40x1xf32>
    %121 = vector.broadcast %120 : vector<40x1xf32> to vector<40x40xf32>
    %122 = arith.subf %118, %121 : vector<40x40xf32>
    %123 = math.exp %122 : vector<40x40xf32>
    %cst_52 = arith.constant dense<0.000000e+00> : vector<40xf32>
    %124 = vector.multi_reduction <add>, %123, %cst_52 [1] : vector<40x40xf32> to vector<40xf32>
    %125 = vector.shape_cast %124 : vector<40xf32> to vector<40x1xf32>
    %126 = tpu.reciprocal %125 {approx = true} : vector<40x1xf32> -> vector<40x1xf32>
    %127 = vector.broadcast %126 : vector<40x1xf32> to vector<40x40xf32>
    %128 = arith.mulf %123, %127 : vector<40x40xf32>
    %129 = arith.truncf %128 : vector<40x40xf32> to vector<40x40xbf16>
    %130 = vector.broadcast %113 : vector<1x32xf32> to vector<40x32xf32>
    %131 = arith.mulf %64, %130 : vector<40x32xf32>
    %132 = arith.truncf %131 : vector<40x32xf32> to vector<40x32xbf16>
    %cst_53 = arith.constant dense<0.000000e+00> : vector<40x32xf32>
    %133 = tpu.matmul %129, %132, %cst_53 {dimension_numbers = #tpu.dot_dimension_numbers<[1], [0], [0], [1], [0, 0, 1, 1], [], []>} : vector<40x40xbf16>, vector<40x32xbf16>, vector<40x32xf32> -> vector<40x32xf32>
    %134 = arith.addf %111, %133 : vector<40x32xf32>
    %c3 = arith.constant 3 : index
    %c0_54 = arith.constant 0 : index
    %c0_55 = arith.constant 0 : index
    %135 = vector.load %arg5[%c3, %c0_54, %c0_55] : memref<4x1x32xf32, #tpu.memory_space<vmem>>, vector<1x1x32xf32>
    %136 = vector.shape_cast %135 : vector<1x1x32xf32> to vector<1x32xf32>
    %137 = vector.broadcast %136 : vector<1x32xf32> to vector<40x32xf32>
    %138 = arith.mulf %61, %137 : vector<40x32xf32>
    %139 = arith.truncf %138 : vector<40x32xf32> to vector<40x32xbf16>
    %cst_56 = arith.constant dense<0.000000e+00> : vector<40x40xf32>
    %140 = tpu.matmul %139, %63, %cst_56 {dimension_numbers = #tpu.dot_dimension_numbers<[1], [1], [0], [0], [0, 0, 1, 0], [], []>} : vector<40x32xbf16>, vector<40x32xbf16>, vector<40x40xf32> -> vector<40x40xf32>
    %141 = arith.addf %140, %28 : vector<40x40xf32>
    %cst_57 = arith.constant dense<0xFF800000> : vector<40xf32>
    %142 = vector.multi_reduction <maximumf>, %141, %cst_57 [1] : vector<40x40xf32> to vector<40xf32>
    %143 = vector.shape_cast %142 : vector<40xf32> to vector<40x1xf32>
    %144 = vector.broadcast %143 : vector<40x1xf32> to vector<40x40xf32>
    %145 = arith.subf %141, %144 : vector<40x40xf32>
    %146 = math.exp %145 : vector<40x40xf32>
    %cst_58 = arith.constant dense<0.000000e+00> : vector<40xf32>
    %147 = vector.multi_reduction <add>, %146, %cst_58 [1] : vector<40x40xf32> to vector<40xf32>
    %148 = vector.shape_cast %147 : vector<40xf32> to vector<40x1xf32>
    %149 = tpu.reciprocal %148 {approx = true} : vector<40x1xf32> -> vector<40x1xf32>
    %150 = vector.broadcast %149 : vector<40x1xf32> to vector<40x40xf32>
    %151 = arith.mulf %146, %150 : vector<40x40xf32>
    %152 = arith.truncf %151 : vector<40x40xf32> to vector<40x40xbf16>
    %153 = vector.broadcast %136 : vector<1x32xf32> to vector<40x32xf32>
    %154 = arith.mulf %64, %153 : vector<40x32xf32>
    %155 = arith.truncf %154 : vector<40x32xf32> to vector<40x32xbf16>
    %cst_59 = arith.constant dense<0.000000e+00> : vector<40x32xf32>
    %156 = tpu.matmul %152, %155, %cst_59 {dimension_numbers = #tpu.dot_dimension_numbers<[1], [0], [0], [1], [0, 0, 1, 1], [], []>} : vector<40x40xbf16>, vector<40x32xbf16>, vector<40x32xf32> -> vector<40x32xf32>
    %157 = arith.addf %134, %156 : vector<40x32xf32>
    %158 = arith.truncf %157 : vector<40x32xf32> to vector<40x32xbf16>
    %c0_60 = arith.constant 0 : index
    %c0_61 = arith.constant 0 : index
    %c0_62 = arith.constant 0 : index
    %159 = vector.load %arg13[%c0_60, %c0_61, %c0_62] : memref<2x32x32xbf16, #tpu.memory_space<vmem>>, vector<1x32x32xbf16>
    %160 = vector.shape_cast %159 : vector<1x32x32xbf16> to vector<32x32xbf16>
    %cst_63 = arith.constant dense<0.000000e+00> : vector<40x32xf32>
    %161 = tpu.matmul %158, %160, %cst_63 {dimension_numbers = #tpu.dot_dimension_numbers<[1], [0], [0], [1], [0, 0, 1, 1], [], []>} : vector<40x32xbf16>, vector<32x32xbf16>, vector<40x32xf32> -> vector<40x32xf32>
    %c0_64 = arith.constant 0 : index
    %c0_65 = arith.constant 0 : index
    %c0_66 = arith.constant 0 : index
    %162 = vector.load %arg14[%c0_64, %c0_65, %c0_66] : memref<2x1x32xf32, #tpu.memory_space<vmem>>, vector<1x1x32xf32>
    %163 = vector.shape_cast %162 : vector<1x1x32xf32> to vector<1x32xf32>
    %164 = vector.broadcast %163 : vector<1x32xf32> to vector<40x32xf32>
    %165 = arith.addf %161, %164 : vector<40x32xf32>
    %166 = arith.addf %165, %27 : vector<40x32xf32>
    %c0_67 = arith.constant 0 : index
    %c0_68 = arith.constant 0 : index
    %c0_69 = arith.constant 0 : index
    %167 = vector.load %arg15[%c0_67, %c0_68, %c0_69] : memref<2x1x32xf32, #tpu.memory_space<vmem>>, vector<1x1x32xf32>
    %168 = vector.shape_cast %167 : vector<1x1x32xf32> to vector<1x32xf32>
    %c0_70 = arith.constant 0 : index
    %c0_71 = arith.constant 0 : index
    %c0_72 = arith.constant 0 : index
    %169 = vector.load %arg16[%c0_70, %c0_71, %c0_72] : memref<2x1x32xf32, #tpu.memory_space<vmem>>, vector<1x1x32xf32>
    %170 = vector.shape_cast %169 : vector<1x1x32xf32> to vector<1x32xf32>
    %cst_73 = arith.constant dense<0.000000e+00> : vector<40xf32>
    %171 = vector.multi_reduction <add>, %166, %cst_73 [1] : vector<40x32xf32> to vector<40xf32>
    %172 = vector.shape_cast %171 : vector<40xf32> to vector<40x1xf32>
    %cst_74 = arith.constant 3.200000e+01 : f32
    %173 = vector.broadcast %cst_74 : f32 to vector<40x1xf32>
    %174 = arith.divf %172, %173 : vector<40x1xf32>
    %175 = vector.broadcast %174 : vector<40x1xf32> to vector<40x32xf32>
    %176 = arith.subf %166, %175 : vector<40x32xf32>
    %177 = arith.mulf %176, %176 : vector<40x32xf32>
    %cst_75 = arith.constant dense<0.000000e+00> : vector<40xf32>
    %178 = vector.multi_reduction <add>, %177, %cst_75 [1] : vector<40x32xf32> to vector<40xf32>
    %179 = vector.shape_cast %178 : vector<40xf32> to vector<40x1xf32>
    %cst_76 = arith.constant 3.200000e+01 : f32
    %180 = vector.broadcast %cst_76 : f32 to vector<40x1xf32>
    %181 = arith.divf %179, %180 : vector<40x1xf32>
    %cst_77 = arith.constant 9.99999974E-6 : f32
    %182 = vector.broadcast %cst_77 : f32 to vector<40x1xf32>
    %183 = arith.addf %181, %182 : vector<40x1xf32>
    %184 = math.rsqrt %183 : vector<40x1xf32>
    %185 = vector.broadcast %184 : vector<40x1xf32> to vector<40x32xf32>
    %186 = arith.mulf %176, %185 : vector<40x32xf32>
    %187 = vector.broadcast %168 : vector<1x32xf32> to vector<40x32xf32>
    %188 = arith.mulf %186, %187 : vector<40x32xf32>
    %189 = vector.broadcast %170 : vector<1x32xf32> to vector<40x32xf32>
    %190 = arith.addf %188, %189 : vector<40x32xf32>
    %191 = arith.truncf %190 : vector<40x32xf32> to vector<40x32xbf16>
    %c0_78 = arith.constant 0 : index
    %c0_79 = arith.constant 0 : index
    %c0_80 = arith.constant 0 : index
    %192 = vector.load %arg17[%c0_78, %c0_79, %c0_80] : memref<2x32x64xbf16, #tpu.memory_space<vmem>>, vector<1x32x64xbf16>
    %193 = vector.shape_cast %192 : vector<1x32x64xbf16> to vector<32x64xbf16>
    %cst_81 = arith.constant dense<0.000000e+00> : vector<40x64xf32>
    %194 = tpu.matmul %191, %193, %cst_81 {dimension_numbers = #tpu.dot_dimension_numbers<[1], [0], [0], [1], [0, 0, 1, 1], [], []>} : vector<40x32xbf16>, vector<32x64xbf16>, vector<40x64xf32> -> vector<40x64xf32>
    %c0_82 = arith.constant 0 : index
    %c0_83 = arith.constant 0 : index
    %c0_84 = arith.constant 0 : index
    %195 = vector.load %arg18[%c0_82, %c0_83, %c0_84] : memref<2x1x64xf32, #tpu.memory_space<vmem>>, vector<1x1x64xf32>
    %196 = vector.shape_cast %195 : vector<1x1x64xf32> to vector<1x64xf32>
    %197 = vector.broadcast %196 : vector<1x64xf32> to vector<40x64xf32>
    %198 = arith.addf %194, %197 : vector<40x64xf32>
    %cst_85 = arith.constant 1.702000e+00 : f32
    %199 = vector.broadcast %cst_85 : f32 to vector<40x64xf32>
    %200 = arith.mulf %199, %198 : vector<40x64xf32>
    %201 = arith.negf %200 : vector<40x64xf32>
    %202 = math.exp %201 : vector<40x64xf32>
    %cst_86 = arith.constant 1.000000e+00 : f32
    %203 = vector.broadcast %cst_86 : f32 to vector<40x64xf32>
    %204 = arith.addf %203, %202 : vector<40x64xf32>
    %205 = arith.divf %203, %204 : vector<40x64xf32>
    %206 = arith.mulf %198, %205 : vector<40x64xf32>
    %207 = arith.truncf %206 : vector<40x64xf32> to vector<40x64xbf16>
    %c0_87 = arith.constant 0 : index
    %c0_88 = arith.constant 0 : index
    %c0_89 = arith.constant 0 : index
    %208 = vector.load %arg19[%c0_87, %c0_88, %c0_89] : memref<2x64x32xbf16, #tpu.memory_space<vmem>>, vector<1x64x32xbf16>
    %209 = vector.shape_cast %208 : vector<1x64x32xbf16> to vector<64x32xbf16>
    %cst_90 = arith.constant dense<0.000000e+00> : vector<40x32xf32>
    %210 = tpu.matmul %207, %209, %cst_90 {dimension_numbers = #tpu.dot_dimension_numbers<[1], [0], [0], [1], [0, 0, 1, 1], [], []>} : vector<40x64xbf16>, vector<64x32xbf16>, vector<40x32xf32> -> vector<40x32xf32>
    %c0_91 = arith.constant 0 : index
    %c0_92 = arith.constant 0 : index
    %c0_93 = arith.constant 0 : index
    %211 = vector.load %arg20[%c0_91, %c0_92, %c0_93] : memref<2x1x32xf32, #tpu.memory_space<vmem>>, vector<1x1x32xf32>
    %212 = vector.shape_cast %211 : vector<1x1x32xf32> to vector<1x32xf32>
    %213 = vector.broadcast %212 : vector<1x32xf32> to vector<40x32xf32>
    %214 = arith.addf %210, %213 : vector<40x32xf32>
    %215 = arith.addf %214, %166 : vector<40x32xf32>
    %c1_94 = arith.constant 1 : index
    %c0_95 = arith.constant 0 : index
    %c0_96 = arith.constant 0 : index
    %216 = vector.load %arg9[%c1_94, %c0_95, %c0_96] : memref<2x1x32xf32, #tpu.memory_space<vmem>>, vector<1x1x32xf32>
    %217 = vector.shape_cast %216 : vector<1x1x32xf32> to vector<1x32xf32>
    %c1_97 = arith.constant 1 : index
    %c0_98 = arith.constant 0 : index
    %c0_99 = arith.constant 0 : index
    %218 = vector.load %arg10[%c1_97, %c0_98, %c0_99] : memref<2x1x32xf32, #tpu.memory_space<vmem>>, vector<1x1x32xf32>
    %219 = vector.shape_cast %218 : vector<1x1x32xf32> to vector<1x32xf32>
    %cst_100 = arith.constant dense<0.000000e+00> : vector<40xf32>
    %220 = vector.multi_reduction <add>, %215, %cst_100 [1] : vector<40x32xf32> to vector<40xf32>
    %221 = vector.shape_cast %220 : vector<40xf32> to vector<40x1xf32>
    %cst_101 = arith.constant 3.200000e+01 : f32
    %222 = vector.broadcast %cst_101 : f32 to vector<40x1xf32>
    %223 = arith.divf %221, %222 : vector<40x1xf32>
    %224 = vector.broadcast %223 : vector<40x1xf32> to vector<40x32xf32>
    %225 = arith.subf %215, %224 : vector<40x32xf32>
    %226 = arith.mulf %225, %225 : vector<40x32xf32>
    %cst_102 = arith.constant dense<0.000000e+00> : vector<40xf32>
    %227 = vector.multi_reduction <add>, %226, %cst_102 [1] : vector<40x32xf32> to vector<40xf32>
    %228 = vector.shape_cast %227 : vector<40xf32> to vector<40x1xf32>
    %cst_103 = arith.constant 3.200000e+01 : f32
    %229 = vector.broadcast %cst_103 : f32 to vector<40x1xf32>
    %230 = arith.divf %228, %229 : vector<40x1xf32>
    %cst_104 = arith.constant 9.99999974E-6 : f32
    %231 = vector.broadcast %cst_104 : f32 to vector<40x1xf32>
    %232 = arith.addf %230, %231 : vector<40x1xf32>
    %233 = math.rsqrt %232 : vector<40x1xf32>
    %234 = vector.broadcast %233 : vector<40x1xf32> to vector<40x32xf32>
    %235 = arith.mulf %225, %234 : vector<40x32xf32>
    %236 = vector.broadcast %217 : vector<1x32xf32> to vector<40x32xf32>
    %237 = arith.mulf %235, %236 : vector<40x32xf32>
    %238 = vector.broadcast %219 : vector<1x32xf32> to vector<40x32xf32>
    %239 = arith.addf %237, %238 : vector<40x32xf32>
    %240 = arith.truncf %239 : vector<40x32xf32> to vector<40x32xbf16>
    %c1_105 = arith.constant 1 : index
    %c0_106 = arith.constant 0 : index
    %c0_107 = arith.constant 0 : index
    %241 = vector.load %arg11[%c1_105, %c0_106, %c0_107] : memref<2x32x96xbf16, #tpu.memory_space<vmem>>, vector<1x32x96xbf16>
    %242 = vector.shape_cast %241 : vector<1x32x96xbf16> to vector<32x96xbf16>
    %cst_108 = arith.constant dense<0.000000e+00> : vector<40x96xf32>
    %243 = tpu.matmul %240, %242, %cst_108 {dimension_numbers = #tpu.dot_dimension_numbers<[1], [0], [0], [1], [0, 0, 1, 1], [], []>} : vector<40x32xbf16>, vector<32x96xbf16>, vector<40x96xf32> -> vector<40x96xf32>
    %c1_109 = arith.constant 1 : index
    %c0_110 = arith.constant 0 : index
    %c0_111 = arith.constant 0 : index
    %244 = vector.load %arg12[%c1_109, %c0_110, %c0_111] : memref<2x1x96xf32, #tpu.memory_space<vmem>>, vector<1x1x96xf32>
    %245 = vector.shape_cast %244 : vector<1x1x96xf32> to vector<1x96xf32>
    %246 = vector.broadcast %245 : vector<1x96xf32> to vector<40x96xf32>
    %247 = arith.addf %243, %246 : vector<40x96xf32>
    %248 = vector.extract_strided_slice %247 {offsets = [0, 0], sizes = [40, 32], strides = [1, 1]} : vector<40x96xf32> to vector<40x32xf32>
    %249 = vector.extract_strided_slice %247 {offsets = [0, 32], sizes = [40, 32], strides = [1, 1]} : vector<40x96xf32> to vector<40x32xf32>
    %250 = arith.truncf %249 : vector<40x32xf32> to vector<40x32xbf16>
    %251 = vector.extract_strided_slice %247 {offsets = [0, 64], sizes = [40, 32], strides = [1, 1]} : vector<40x96xf32> to vector<40x32xf32>
    %cst_112 = arith.constant 0.000000e+00 : f32
    %252 = vector.broadcast %cst_112 : f32 to vector<40x32xf32>
    %c0_113 = arith.constant 0 : index
    %c0_114 = arith.constant 0 : index
    %c0_115 = arith.constant 0 : index
    %253 = vector.load %arg5[%c0_113, %c0_114, %c0_115] : memref<4x1x32xf32, #tpu.memory_space<vmem>>, vector<1x1x32xf32>
    %254 = vector.shape_cast %253 : vector<1x1x32xf32> to vector<1x32xf32>
    %255 = vector.broadcast %254 : vector<1x32xf32> to vector<40x32xf32>
    %256 = arith.mulf %248, %255 : vector<40x32xf32>
    %257 = arith.truncf %256 : vector<40x32xf32> to vector<40x32xbf16>
    %cst_116 = arith.constant dense<0.000000e+00> : vector<40x40xf32>
    %258 = tpu.matmul %257, %250, %cst_116 {dimension_numbers = #tpu.dot_dimension_numbers<[1], [1], [0], [0], [0, 0, 1, 0], [], []>} : vector<40x32xbf16>, vector<40x32xbf16>, vector<40x40xf32> -> vector<40x40xf32>
    %259 = arith.addf %258, %28 : vector<40x40xf32>
    %cst_117 = arith.constant dense<0xFF800000> : vector<40xf32>
    %260 = vector.multi_reduction <maximumf>, %259, %cst_117 [1] : vector<40x40xf32> to vector<40xf32>
    %261 = vector.shape_cast %260 : vector<40xf32> to vector<40x1xf32>
    %262 = vector.broadcast %261 : vector<40x1xf32> to vector<40x40xf32>
    %263 = arith.subf %259, %262 : vector<40x40xf32>
    %264 = math.exp %263 : vector<40x40xf32>
    %cst_118 = arith.constant dense<0.000000e+00> : vector<40xf32>
    %265 = vector.multi_reduction <add>, %264, %cst_118 [1] : vector<40x40xf32> to vector<40xf32>
    %266 = vector.shape_cast %265 : vector<40xf32> to vector<40x1xf32>
    %267 = tpu.reciprocal %266 {approx = true} : vector<40x1xf32> -> vector<40x1xf32>
    %268 = vector.broadcast %267 : vector<40x1xf32> to vector<40x40xf32>
    %269 = arith.mulf %264, %268 : vector<40x40xf32>
    %270 = arith.truncf %269 : vector<40x40xf32> to vector<40x40xbf16>
    %271 = vector.broadcast %254 : vector<1x32xf32> to vector<40x32xf32>
    %272 = arith.mulf %251, %271 : vector<40x32xf32>
    %273 = arith.truncf %272 : vector<40x32xf32> to vector<40x32xbf16>
    %cst_119 = arith.constant dense<0.000000e+00> : vector<40x32xf32>
    %274 = tpu.matmul %270, %273, %cst_119 {dimension_numbers = #tpu.dot_dimension_numbers<[1], [0], [0], [1], [0, 0, 1, 1], [], []>} : vector<40x40xbf16>, vector<40x32xbf16>, vector<40x32xf32> -> vector<40x32xf32>
    %275 = arith.addf %252, %274 : vector<40x32xf32>
    %c1_120 = arith.constant 1 : index
    %c0_121 = arith.constant 0 : index
    %c0_122 = arith.constant 0 : index
    %276 = vector.load %arg5[%c1_120, %c0_121, %c0_122] : memref<4x1x32xf32, #tpu.memory_space<vmem>>, vector<1x1x32xf32>
    %277 = vector.shape_cast %276 : vector<1x1x32xf32> to vector<1x32xf32>
    %278 = vector.broadcast %277 : vector<1x32xf32> to vector<40x32xf32>
    %279 = arith.mulf %248, %278 : vector<40x32xf32>
    %280 = arith.truncf %279 : vector<40x32xf32> to vector<40x32xbf16>
    %cst_123 = arith.constant dense<0.000000e+00> : vector<40x40xf32>
    %281 = tpu.matmul %280, %250, %cst_123 {dimension_numbers = #tpu.dot_dimension_numbers<[1], [1], [0], [0], [0, 0, 1, 0], [], []>} : vector<40x32xbf16>, vector<40x32xbf16>, vector<40x40xf32> -> vector<40x40xf32>
    %282 = arith.addf %281, %28 : vector<40x40xf32>
    %cst_124 = arith.constant dense<0xFF800000> : vector<40xf32>
    %283 = vector.multi_reduction <maximumf>, %282, %cst_124 [1] : vector<40x40xf32> to vector<40xf32>
    %284 = vector.shape_cast %283 : vector<40xf32> to vector<40x1xf32>
    %285 = vector.broadcast %284 : vector<40x1xf32> to vector<40x40xf32>
    %286 = arith.subf %282, %285 : vector<40x40xf32>
    %287 = math.exp %286 : vector<40x40xf32>
    %cst_125 = arith.constant dense<0.000000e+00> : vector<40xf32>
    %288 = vector.multi_reduction <add>, %287, %cst_125 [1] : vector<40x40xf32> to vector<40xf32>
    %289 = vector.shape_cast %288 : vector<40xf32> to vector<40x1xf32>
    %290 = tpu.reciprocal %289 {approx = true} : vector<40x1xf32> -> vector<40x1xf32>
    %291 = vector.broadcast %290 : vector<40x1xf32> to vector<40x40xf32>
    %292 = arith.mulf %287, %291 : vector<40x40xf32>
    %293 = arith.truncf %292 : vector<40x40xf32> to vector<40x40xbf16>
    %294 = vector.broadcast %277 : vector<1x32xf32> to vector<40x32xf32>
    %295 = arith.mulf %251, %294 : vector<40x32xf32>
    %296 = arith.truncf %295 : vector<40x32xf32> to vector<40x32xbf16>
    %cst_126 = arith.constant dense<0.000000e+00> : vector<40x32xf32>
    %297 = tpu.matmul %293, %296, %cst_126 {dimension_numbers = #tpu.dot_dimension_numbers<[1], [0], [0], [1], [0, 0, 1, 1], [], []>} : vector<40x40xbf16>, vector<40x32xbf16>, vector<40x32xf32> -> vector<40x32xf32>
    %298 = arith.addf %275, %297 : vector<40x32xf32>
    %c2_127 = arith.constant 2 : index
    %c0_128 = arith.constant 0 : index
    %c0_129 = arith.constant 0 : index
    %299 = vector.load %arg5[%c2_127, %c0_128, %c0_129] : memref<4x1x32xf32, #tpu.memory_space<vmem>>, vector<1x1x32xf32>
    %300 = vector.shape_cast %299 : vector<1x1x32xf32> to vector<1x32xf32>
    %301 = vector.broadcast %300 : vector<1x32xf32> to vector<40x32xf32>
    %302 = arith.mulf %248, %301 : vector<40x32xf32>
    %303 = arith.truncf %302 : vector<40x32xf32> to vector<40x32xbf16>
    %cst_130 = arith.constant dense<0.000000e+00> : vector<40x40xf32>
    %304 = tpu.matmul %303, %250, %cst_130 {dimension_numbers = #tpu.dot_dimension_numbers<[1], [1], [0], [0], [0, 0, 1, 0], [], []>} : vector<40x32xbf16>, vector<40x32xbf16>, vector<40x40xf32> -> vector<40x40xf32>
    %305 = arith.addf %304, %28 : vector<40x40xf32>
    %cst_131 = arith.constant dense<0xFF800000> : vector<40xf32>
    %306 = vector.multi_reduction <maximumf>, %305, %cst_131 [1] : vector<40x40xf32> to vector<40xf32>
    %307 = vector.shape_cast %306 : vector<40xf32> to vector<40x1xf32>
    %308 = vector.broadcast %307 : vector<40x1xf32> to vector<40x40xf32>
    %309 = arith.subf %305, %308 : vector<40x40xf32>
    %310 = math.exp %309 : vector<40x40xf32>
    %cst_132 = arith.constant dense<0.000000e+00> : vector<40xf32>
    %311 = vector.multi_reduction <add>, %310, %cst_132 [1] : vector<40x40xf32> to vector<40xf32>
    %312 = vector.shape_cast %311 : vector<40xf32> to vector<40x1xf32>
    %313 = tpu.reciprocal %312 {approx = true} : vector<40x1xf32> -> vector<40x1xf32>
    %314 = vector.broadcast %313 : vector<40x1xf32> to vector<40x40xf32>
    %315 = arith.mulf %310, %314 : vector<40x40xf32>
    %316 = arith.truncf %315 : vector<40x40xf32> to vector<40x40xbf16>
    %317 = vector.broadcast %300 : vector<1x32xf32> to vector<40x32xf32>
    %318 = arith.mulf %251, %317 : vector<40x32xf32>
    %319 = arith.truncf %318 : vector<40x32xf32> to vector<40x32xbf16>
    %cst_133 = arith.constant dense<0.000000e+00> : vector<40x32xf32>
    %320 = tpu.matmul %316, %319, %cst_133 {dimension_numbers = #tpu.dot_dimension_numbers<[1], [0], [0], [1], [0, 0, 1, 1], [], []>} : vector<40x40xbf16>, vector<40x32xbf16>, vector<40x32xf32> -> vector<40x32xf32>
    %321 = arith.addf %298, %320 : vector<40x32xf32>
    %c3_134 = arith.constant 3 : index
    %c0_135 = arith.constant 0 : index
    %c0_136 = arith.constant 0 : index
    %322 = vector.load %arg5[%c3_134, %c0_135, %c0_136] : memref<4x1x32xf32, #tpu.memory_space<vmem>>, vector<1x1x32xf32>
    %323 = vector.shape_cast %322 : vector<1x1x32xf32> to vector<1x32xf32>
    %324 = vector.broadcast %323 : vector<1x32xf32> to vector<40x32xf32>
    %325 = arith.mulf %248, %324 : vector<40x32xf32>
    %326 = arith.truncf %325 : vector<40x32xf32> to vector<40x32xbf16>
    %cst_137 = arith.constant dense<0.000000e+00> : vector<40x40xf32>
    %327 = tpu.matmul %326, %250, %cst_137 {dimension_numbers = #tpu.dot_dimension_numbers<[1], [1], [0], [0], [0, 0, 1, 0], [], []>} : vector<40x32xbf16>, vector<40x32xbf16>, vector<40x40xf32> -> vector<40x40xf32>
    %328 = arith.addf %327, %28 : vector<40x40xf32>
    %cst_138 = arith.constant dense<0xFF800000> : vector<40xf32>
    %329 = vector.multi_reduction <maximumf>, %328, %cst_138 [1] : vector<40x40xf32> to vector<40xf32>
    %330 = vector.shape_cast %329 : vector<40xf32> to vector<40x1xf32>
    %331 = vector.broadcast %330 : vector<40x1xf32> to vector<40x40xf32>
    %332 = arith.subf %328, %331 : vector<40x40xf32>
    %333 = math.exp %332 : vector<40x40xf32>
    %cst_139 = arith.constant dense<0.000000e+00> : vector<40xf32>
    %334 = vector.multi_reduction <add>, %333, %cst_139 [1] : vector<40x40xf32> to vector<40xf32>
    %335 = vector.shape_cast %334 : vector<40xf32> to vector<40x1xf32>
    %336 = tpu.reciprocal %335 {approx = true} : vector<40x1xf32> -> vector<40x1xf32>
    %337 = vector.broadcast %336 : vector<40x1xf32> to vector<40x40xf32>
    %338 = arith.mulf %333, %337 : vector<40x40xf32>
    %339 = arith.truncf %338 : vector<40x40xf32> to vector<40x40xbf16>
    %340 = vector.broadcast %323 : vector<1x32xf32> to vector<40x32xf32>
    %341 = arith.mulf %251, %340 : vector<40x32xf32>
    %342 = arith.truncf %341 : vector<40x32xf32> to vector<40x32xbf16>
    %cst_140 = arith.constant dense<0.000000e+00> : vector<40x32xf32>
    %343 = tpu.matmul %339, %342, %cst_140 {dimension_numbers = #tpu.dot_dimension_numbers<[1], [0], [0], [1], [0, 0, 1, 1], [], []>} : vector<40x40xbf16>, vector<40x32xbf16>, vector<40x32xf32> -> vector<40x32xf32>
    %344 = arith.addf %321, %343 : vector<40x32xf32>
    %345 = arith.truncf %344 : vector<40x32xf32> to vector<40x32xbf16>
    %c1_141 = arith.constant 1 : index
    %c0_142 = arith.constant 0 : index
    %c0_143 = arith.constant 0 : index
    %346 = vector.load %arg13[%c1_141, %c0_142, %c0_143] : memref<2x32x32xbf16, #tpu.memory_space<vmem>>, vector<1x32x32xbf16>
    %347 = vector.shape_cast %346 : vector<1x32x32xbf16> to vector<32x32xbf16>
    %cst_144 = arith.constant dense<0.000000e+00> : vector<40x32xf32>
    %348 = tpu.matmul %345, %347, %cst_144 {dimension_numbers = #tpu.dot_dimension_numbers<[1], [0], [0], [1], [0, 0, 1, 1], [], []>} : vector<40x32xbf16>, vector<32x32xbf16>, vector<40x32xf32> -> vector<40x32xf32>
    %c1_145 = arith.constant 1 : index
    %c0_146 = arith.constant 0 : index
    %c0_147 = arith.constant 0 : index
    %349 = vector.load %arg14[%c1_145, %c0_146, %c0_147] : memref<2x1x32xf32, #tpu.memory_space<vmem>>, vector<1x1x32xf32>
    %350 = vector.shape_cast %349 : vector<1x1x32xf32> to vector<1x32xf32>
    %351 = vector.broadcast %350 : vector<1x32xf32> to vector<40x32xf32>
    %352 = arith.addf %348, %351 : vector<40x32xf32>
    %353 = arith.addf %352, %215 : vector<40x32xf32>
    %c1_148 = arith.constant 1 : index
    %c0_149 = arith.constant 0 : index
    %c0_150 = arith.constant 0 : index
    %354 = vector.load %arg15[%c1_148, %c0_149, %c0_150] : memref<2x1x32xf32, #tpu.memory_space<vmem>>, vector<1x1x32xf32>
    %355 = vector.shape_cast %354 : vector<1x1x32xf32> to vector<1x32xf32>
    %c1_151 = arith.constant 1 : index
    %c0_152 = arith.constant 0 : index
    %c0_153 = arith.constant 0 : index
    %356 = vector.load %arg16[%c1_151, %c0_152, %c0_153] : memref<2x1x32xf32, #tpu.memory_space<vmem>>, vector<1x1x32xf32>
    %357 = vector.shape_cast %356 : vector<1x1x32xf32> to vector<1x32xf32>
    %cst_154 = arith.constant dense<0.000000e+00> : vector<40xf32>
    %358 = vector.multi_reduction <add>, %353, %cst_154 [1] : vector<40x32xf32> to vector<40xf32>
    %359 = vector.shape_cast %358 : vector<40xf32> to vector<40x1xf32>
    %cst_155 = arith.constant 3.200000e+01 : f32
    %360 = vector.broadcast %cst_155 : f32 to vector<40x1xf32>
    %361 = arith.divf %359, %360 : vector<40x1xf32>
    %362 = vector.broadcast %361 : vector<40x1xf32> to vector<40x32xf32>
    %363 = arith.subf %353, %362 : vector<40x32xf32>
    %364 = arith.mulf %363, %363 : vector<40x32xf32>
    %cst_156 = arith.constant dense<0.000000e+00> : vector<40xf32>
    %365 = vector.multi_reduction <add>, %364, %cst_156 [1] : vector<40x32xf32> to vector<40xf32>
    %366 = vector.shape_cast %365 : vector<40xf32> to vector<40x1xf32>
    %cst_157 = arith.constant 3.200000e+01 : f32
    %367 = vector.broadcast %cst_157 : f32 to vector<40x1xf32>
    %368 = arith.divf %366, %367 : vector<40x1xf32>
    %cst_158 = arith.constant 9.99999974E-6 : f32
    %369 = vector.broadcast %cst_158 : f32 to vector<40x1xf32>
    %370 = arith.addf %368, %369 : vector<40x1xf32>
    %371 = math.rsqrt %370 : vector<40x1xf32>
    %372 = vector.broadcast %371 : vector<40x1xf32> to vector<40x32xf32>
    %373 = arith.mulf %363, %372 : vector<40x32xf32>
    %374 = vector.broadcast %355 : vector<1x32xf32> to vector<40x32xf32>
    %375 = arith.mulf %373, %374 : vector<40x32xf32>
    %376 = vector.broadcast %357 : vector<1x32xf32> to vector<40x32xf32>
    %377 = arith.addf %375, %376 : vector<40x32xf32>
    %378 = arith.truncf %377 : vector<40x32xf32> to vector<40x32xbf16>
    %c1_159 = arith.constant 1 : index
    %c0_160 = arith.constant 0 : index
    %c0_161 = arith.constant 0 : index
    %379 = vector.load %arg17[%c1_159, %c0_160, %c0_161] : memref<2x32x64xbf16, #tpu.memory_space<vmem>>, vector<1x32x64xbf16>
    %380 = vector.shape_cast %379 : vector<1x32x64xbf16> to vector<32x64xbf16>
    %cst_162 = arith.constant dense<0.000000e+00> : vector<40x64xf32>
    %381 = tpu.matmul %378, %380, %cst_162 {dimension_numbers = #tpu.dot_dimension_numbers<[1], [0], [0], [1], [0, 0, 1, 1], [], []>} : vector<40x32xbf16>, vector<32x64xbf16>, vector<40x64xf32> -> vector<40x64xf32>
    %c1_163 = arith.constant 1 : index
    %c0_164 = arith.constant 0 : index
    %c0_165 = arith.constant 0 : index
    %382 = vector.load %arg18[%c1_163, %c0_164, %c0_165] : memref<2x1x64xf32, #tpu.memory_space<vmem>>, vector<1x1x64xf32>
    %383 = vector.shape_cast %382 : vector<1x1x64xf32> to vector<1x64xf32>
    %384 = vector.broadcast %383 : vector<1x64xf32> to vector<40x64xf32>
    %385 = arith.addf %381, %384 : vector<40x64xf32>
    %cst_166 = arith.constant 1.702000e+00 : f32
    %386 = vector.broadcast %cst_166 : f32 to vector<40x64xf32>
    %387 = arith.mulf %386, %385 : vector<40x64xf32>
    %388 = arith.negf %387 : vector<40x64xf32>
    %389 = math.exp %388 : vector<40x64xf32>
    %cst_167 = arith.constant 1.000000e+00 : f32
    %390 = vector.broadcast %cst_167 : f32 to vector<40x64xf32>
    %391 = arith.addf %390, %389 : vector<40x64xf32>
    %392 = arith.divf %390, %391 : vector<40x64xf32>
    %393 = arith.mulf %385, %392 : vector<40x64xf32>
    %394 = arith.truncf %393 : vector<40x64xf32> to vector<40x64xbf16>
    %c1_168 = arith.constant 1 : index
    %c0_169 = arith.constant 0 : index
    %c0_170 = arith.constant 0 : index
    %395 = vector.load %arg19[%c1_168, %c0_169, %c0_170] : memref<2x64x32xbf16, #tpu.memory_space<vmem>>, vector<1x64x32xbf16>
    %396 = vector.shape_cast %395 : vector<1x64x32xbf16> to vector<64x32xbf16>
    %cst_171 = arith.constant dense<0.000000e+00> : vector<40x32xf32>
    %397 = tpu.matmul %394, %396, %cst_171 {dimension_numbers = #tpu.dot_dimension_numbers<[1], [0], [0], [1], [0, 0, 1, 1], [], []>} : vector<40x64xbf16>, vector<64x32xbf16>, vector<40x32xf32> -> vector<40x32xf32>
    %c1_172 = arith.constant 1 : index
    %c0_173 = arith.constant 0 : index
    %c0_174 = arith.constant 0 : index
    %398 = vector.load %arg20[%c1_172, %c0_173, %c0_174] : memref<2x1x32xf32, #tpu.memory_space<vmem>>, vector<1x1x32xf32>
    %399 = vector.shape_cast %398 : vector<1x1x32xf32> to vector<1x32xf32>
    %400 = vector.broadcast %399 : vector<1x32xf32> to vector<40x32xf32>
    %401 = arith.addf %397, %400 : vector<40x32xf32>
    %402 = arith.addf %401, %353 : vector<40x32xf32>
    %c0_175 = arith.constant 0 : index
    %c0_176 = arith.constant 0 : index
    %403 = vector.load %arg4[%c0_175, %c0_176] : memref<8x40xf32, #tpu.memory_space<vmem>>, vector<8x40xf32>
    %cst_177 = arith.constant dense<0.000000e+00> : vector<8x32xf32>
    %404 = tpu.matmul %403, %402, %cst_177 {dimension_numbers = #tpu.dot_dimension_numbers<[1], [0], [0], [1], [0, 0, 1, 1], [], []>} : vector<8x40xf32>, vector<40x32xf32>, vector<8x32xf32> -> vector<8x32xf32>
    %c0_178 = arith.constant 0 : index
    %c0_179 = arith.constant 0 : index
    %405 = vector.load %arg21[%c0_178, %c0_179] : memref<1x32xf32, #tpu.memory_space<vmem>>, vector<1x32xf32>
    %c0_180 = arith.constant 0 : index
    %c0_181 = arith.constant 0 : index
    %406 = vector.load %arg22[%c0_180, %c0_181] : memref<1x32xf32, #tpu.memory_space<vmem>>, vector<1x32xf32>
    %cst_182 = arith.constant dense<0.000000e+00> : vector<8xf32>
    %407 = vector.multi_reduction <add>, %404, %cst_182 [1] : vector<8x32xf32> to vector<8xf32>
    %408 = vector.shape_cast %407 : vector<8xf32> to vector<8x1xf32>
    %cst_183 = arith.constant 3.200000e+01 : f32
    %409 = vector.broadcast %cst_183 : f32 to vector<8x1xf32>
    %410 = arith.divf %408, %409 : vector<8x1xf32>
    %411 = vector.broadcast %410 : vector<8x1xf32> to vector<8x32xf32>
    %412 = arith.subf %404, %411 : vector<8x32xf32>
    %413 = arith.mulf %412, %412 : vector<8x32xf32>
    %cst_184 = arith.constant dense<0.000000e+00> : vector<8xf32>
    %414 = vector.multi_reduction <add>, %413, %cst_184 [1] : vector<8x32xf32> to vector<8xf32>
    %415 = vector.shape_cast %414 : vector<8xf32> to vector<8x1xf32>
    %cst_185 = arith.constant 3.200000e+01 : f32
    %416 = vector.broadcast %cst_185 : f32 to vector<8x1xf32>
    %417 = arith.divf %415, %416 : vector<8x1xf32>
    %cst_186 = arith.constant 9.99999974E-6 : f32
    %418 = vector.broadcast %cst_186 : f32 to vector<8x1xf32>
    %419 = arith.addf %417, %418 : vector<8x1xf32>
    %420 = math.rsqrt %419 : vector<8x1xf32>
    %421 = vector.broadcast %420 : vector<8x1xf32> to vector<8x32xf32>
    %422 = arith.mulf %412, %421 : vector<8x32xf32>
    %423 = vector.broadcast %405 : vector<1x32xf32> to vector<8x32xf32>
    %424 = arith.mulf %422, %423 : vector<8x32xf32>
    %425 = vector.broadcast %406 : vector<1x32xf32> to vector<8x32xf32>
    %426 = arith.addf %424, %425 : vector<8x32xf32>
    %427 = arith.truncf %426 : vector<8x32xf32> to vector<8x32xbf16>
    %c0_187 = arith.constant 0 : index
    %c0_188 = arith.constant 0 : index
    %428 = vector.load %arg23[%c0_187, %c0_188] : memref<32x16xbf16, #tpu.memory_space<vmem>>, vector<32x16xbf16>
    %cst_189 = arith.constant dense<0.000000e+00> : vector<8x16xf32>
    %429 = tpu.matmul %427, %428, %cst_189 {dimension_numbers = #tpu.dot_dimension_numbers<[1], [0], [0], [1], [0, 0, 1, 1], [], []>} : vector<8x32xbf16>, vector<32x16xbf16>, vector<8x16xf32> -> vector<8x16xf32>
    %c0_190 = arith.constant 0 : index
    %c0_191 = arith.constant 0 : index
    %430 = vector.load %arg24[%c0_190, %c0_191] : memref<8x16xf32, #tpu.memory_space<vmem>>, vector<8x16xf32>
    tpu.vector_store %arg24[%c0_190, %c0_191], %429 {strides = array<i32>} : memref<8x16xf32, #tpu.memory_space<vmem>>, vector<8x16xf32>,
    return
  }
  func.func @transform_0(%arg0: i32) -> (i32, i32) {
    %c0_i32 = arith.constant 0 : i32
    %c0_i32_0 = arith.constant 0 : i32
    return %arg0, %c0_i32 : i32, i32
  }
  func.func @transform_1(%arg0: i32) -> (i32, i32) {
    %c0_i32 = arith.constant 0 : i32
    %c0_i32_0 = arith.constant 0 : i32
    %c0_i32_1 = arith.constant 0 : i32
    return %c0_i32, %c0_i32_0 : i32, i32
  }
  func.func @transform_2(%arg0: i32) -> (i32, i32) {
    %c0_i32 = arith.constant 0 : i32
    %c0_i32_0 = arith.constant 0 : i32
    %c0_i32_1 = arith.constant 0 : i32
    return %c0_i32, %c0_i32_0 : i32, i32
  }
  func.func @transform_3(%arg0: i32) -> (i32, i32) {
    %c0_i32 = arith.constant 0 : i32
    %c0_i32_0 = arith.constant 0 : i32
    %c0_i32_1 = arith.constant 0 : i32
    return %c0_i32, %c0_i32_0 : i32, i32
  }
  func.func @transform_4(%arg0: i32) -> (i32, i32, i32) {
    %c0_i32 = arith.constant 0 : i32
    %c0_i32_0 = arith.constant 0 : i32
    %c0_i32_1 = arith.constant 0 : i32
    %c0_i32_2 = arith.constant 0 : i32
    return %c0_i32, %c0_i32_0, %c0_i32_1 : i32, i32, i32
  }
  func.func @transform_5(%arg0: i32) -> (i32, i32) {
    %c0_i32 = arith.constant 0 : i32
    %c0_i32_0 = arith.constant 0 : i32
    %c0_i32_1 = arith.constant 0 : i32
    return %c0_i32, %c0_i32_0 : i32, i32
  }
  func.func @transform_6(%arg0: i32) -> (i32, i32) {
    %c0_i32 = arith.constant 0 : i32
    %c0_i32_0 = arith.constant 0 : i32
    %c0_i32_1 = arith.constant 0 : i32
    return %c0_i32, %c0_i32_0 : i32, i32
  }
  func.func @transform_7(%arg0: i32) -> (i32, i32) {
    %c0_i32 = arith.constant 0 : i32
    %c0_i32_0 = arith.constant 0 : i32
    %c0_i32_1 = arith.constant 0 : i32
    return %c0_i32, %c0_i32_0 : i32, i32
  }
  func.func @transform_8(%arg0: i32) -> (i32, i32, i32) {
    %c0_i32 = arith.constant 0 : i32
    %c0_i32_0 = arith.constant 0 : i32
    %c0_i32_1 = arith.constant 0 : i32
    %c0_i32_2 = arith.constant 0 : i32
    return %c0_i32, %c0_i32_0, %c0_i32_1 : i32, i32, i32
  }
  func.func @transform_9(%arg0: i32) -> (i32, i32, i32) {
    %c0_i32 = arith.constant 0 : i32
    %c0_i32_0 = arith.constant 0 : i32
    %c0_i32_1 = arith.constant 0 : i32
    %c0_i32_2 = arith.constant 0 : i32
    return %c0_i32, %c0_i32_0, %c0_i32_1 : i32, i32, i32
  }
  func.func @transform_10(%arg0: i32) -> (i32, i32, i32) {
    %c0_i32 = arith.constant 0 : i32
    %c0_i32_0 = arith.constant 0 : i32
    %c0_i32_1 = arith.constant 0 : i32
    %c0_i32_2 = arith.constant 0 : i32
    return %c0_i32, %c0_i32_0, %c0_i32_1 : i32, i32, i32
  }
  func.func @transform_11(%arg0: i32) -> (i32, i32, i32) {
    %c0_i32 = arith.constant 0 : i32
    %c0_i32_0 = arith.constant 0 : i32
    %c0_i32_1 = arith.constant 0 : i32
    %c0_i32_2 = arith.constant 0 : i32
    return %c0_i32, %c0_i32_0, %c0_i32_1 : i32, i32, i32
  }
  func.func @transform_12(%arg0: i32) -> (i32, i32, i32) {
    %c0_i32 = arith.constant 0 : i32
    %c0_i32_0 = arith.constant 0 : i32
    %c0_i32_1 = arith.constant 0 : i32
    %c0_i32_2 = arith.constant 0 : i32
    return %c0_i32, %c0_i32_0, %c0_i32_1 : i32, i32, i32
  }
  func.func @transform_13(%arg0: i32) -> (i32, i32, i32) {
    %c0_i32 = arith.constant 0 : i32
    %c0_i32_0 = arith.constant 0 : i32
    %c0_i32_1 = arith.constant 0 : i32
    %c0_i32_2 = arith.constant 0 : i32
    return %c0_i32, %c0_i32_0, %c0_i32_1 : i32, i32, i32
  }
  func.func @transform_14(%arg0: i32) -> (i32, i32, i32) {
    %c0_i32 = arith.constant 0 : i32
    %c0_i32_0 = arith.constant 0 : i32
    %c0_i32_1 = arith.constant 0 : i32
    %c0_i32_2 = arith.constant 0 : i32
    return %c0_i32, %c0_i32_0, %c0_i32_1 : i32, i32, i32
  }
  func.func @transform_15(%arg0: i32) -> (i32, i32, i32) {
    %c0_i32 = arith.constant 0 : i32
    %c0_i32_0 = arith.constant 0 : i32
    %c0_i32_1 = arith.constant 0 : i32
    %c0_i32_2 = arith.constant 0 : i32
    return %c0_i32, %c0_i32_0, %c0_i32_1 : i32, i32, i32
  }
  func.func @transform_16(%arg0: i32) -> (i32, i32, i32) {
    %c0_i32 = arith.constant 0 : i32
    %c0_i32_0 = arith.constant 0 : i32
    %c0_i32_1 = arith.constant 0 : i32
    %c0_i32_2 = arith.constant 0 : i32
    return %c0_i32, %c0_i32_0, %c0_i32_1 : i32, i32, i32
  }
  func.func @transform_17(%arg0: i32) -> (i32, i32, i32) {
    %c0_i32 = arith.constant 0 : i32
    %c0_i32_0 = arith.constant 0 : i32
    %c0_i32_1 = arith.constant 0 : i32
    %c0_i32_2 = arith.constant 0 : i32
    return %c0_i32, %c0_i32_0, %c0_i32_1 : i32, i32, i32
  }
  func.func @transform_18(%arg0: i32) -> (i32, i32, i32) {
    %c0_i32 = arith.constant 0 : i32
    %c0_i32_0 = arith.constant 0 : i32
    %c0_i32_1 = arith.constant 0 : i32
    %c0_i32_2 = arith.constant 0 : i32
    return %c0_i32, %c0_i32_0, %c0_i32_1 : i32, i32, i32
  }
  func.func @transform_19(%arg0: i32) -> (i32, i32, i32) {
    %c0_i32 = arith.constant 0 : i32
    %c0_i32_0 = arith.constant 0 : i32
    %c0_i32_1 = arith.constant 0 : i32
    %c0_i32_2 = arith.constant 0 : i32
    return %c0_i32, %c0_i32_0, %c0_i32_1 : i32, i32, i32
  }
  func.func @transform_20(%arg0: i32) -> (i32, i32) {
    %c0_i32 = arith.constant 0 : i32
    %c0_i32_0 = arith.constant 0 : i32
    %c0_i32_1 = arith.constant 0 : i32
    return %c0_i32, %c0_i32_0 : i32, i32
  }
  func.func @transform_21(%arg0: i32) -> (i32, i32) {
    %c0_i32 = arith.constant 0 : i32
    %c0_i32_0 = arith.constant 0 : i32
    %c0_i32_1 = arith.constant 0 : i32
    return %c0_i32, %c0_i32_0 : i32, i32
  }
  func.func @transform_22(%arg0: i32) -> (i32, i32) {
    %c0_i32 = arith.constant 0 : i32
    %c0_i32_0 = arith.constant 0 : i32
    %c0_i32_1 = arith.constant 0 : i32
    return %c0_i32, %c0_i32_0 : i32, i32
  }
  func.func @transform_23(%arg0: i32) -> (i32, i32) {
    %c0_i32 = arith.constant 0 : i32
    %c0_i32_0 = arith.constant 0 : i32
    return %arg0, %c0_i32 : i32, i32
  }
}

</mosaic_0001>

<llo_original>
// kernel: tile.9
$region0: #{tile.9}
  %s0 = inlined_call_operand.vmem [shape: f32[8,5,32], index: 0, kind: input, shape index: {}]
  %s1 = inlined_call_operand.vmem [shape: f32[40,32], index: 1, kind: output, shape index: {}]
  %v2 = vld [vmem:[%s0] sm:$0x1f]
  %vm3 = vcmask 261120
  %4 = vst.msk [vmem:[%s1] sm:$0x1f] %vm3, %v2
  %s5 = scalar_lea.vmem %s0, 8
  %v6 = vld [vmem:[%s5] sm:$0x1f]
  %vm7 = vcmask 261120
  %s8 = scalar_lea.vmem %s1, 5
  %9 = vst.msk [vmem:[%s8] sm:$0x1f] %vm7, %v6
  %s10 = scalar_lea.vmem %s0, 16
  %v11 = vld [vmem:[%s10] sm:$0x1f]
  %vm12 = vcmask 261120
  %s13 = scalar_lea.vmem %s1, 10
  %14 = vst.msk [vmem:[%s13] sm:$0x1f] %vm12, %v11
  %s15 = scalar_lea.vmem %s0, 24
  %v16 = vld [vmem:[%s15] sm:$0x1f]
  %vm17 = vcmask 261120
  %s18 = scalar_lea.vmem %s1, 15
  %19 = vst.msk [vmem:[%s18] sm:$0x1f] %vm17, %v16
  %s20 = scalar_lea.vmem %s0, 32
  %v21 = vld [vmem:[%s20] sm:$0x1f]
  %vm22 = vcmask 261120
  %s23 = scalar_lea.vmem %s1, 20
  %24 = vst.msk [vmem:[%s23] sm:$0x1f] %vm22, %v21
  %s25 = scalar_lea.vmem %s0, 40
  %v26 = vld [vmem:[%s25] sm:$0x1f]
  %vm27 = vcmask 261120
  %s28 = scalar_lea.vmem %s1, 25
  %29 = vst.msk [vmem:[%s28] sm:$0x1f] %vm27, %v26
  %s30 = scalar_lea.vmem %s0, 48
  %v31 = vld [vmem:[%s30] sm:$0x1f]
  %vm32 = vcmask 261120
  %s33 = scalar_lea.vmem %s1, 30
  %34 = vst.msk [vmem:[%s33] sm:$0x1f] %vm32, %v31
  %s35 = scalar_lea.vmem %s0, 56
  %v36 = vld [vmem:[%s35] sm:$0x1f]
  %vm37 = vcmask 261120
  %s38 = scalar_lea.vmem %s1, 35
  %39 = vst.msk [vmem:[%s38] sm:$0x1f] %vm37, %v36

// kernel: clip_image_features.1
$region0: #{clip_image_features.1}
  #allocation0 [shape = 'u32[]', space=smem, size = 0x4, offset = 0x4, fixed_abs, tag = 'smem constant byte address 0x4 - core index']
  #allocation1 [shape = 'u32[144,128]{1,0:T(1,128)}', space=vmem, size = 0x12000, scoped, tag = 'internal scratch']
  %s0 = inlined_call_operand.vmem [shape: f32[80,192], index: 0, kind: input, shape index: {}]
  %s1 = inlined_call_operand.vmem [shape: f32[40,32], index: 1, kind: input, shape index: {}]
  %s2 = inlined_call_operand.vmem [shape: f32[40,40], index: 2, kind: input, shape index: {}]
  %s3 = inlined_call_operand.vmem [shape: f32[8,40], index: 3, kind: input, shape index: {}]
  %s4 = inlined_call_operand.vmem [shape: f32[4,1,32], index: 4, kind: input, shape index: {}]
  %s5 = inlined_call_operand.vmem [shape: bf16[192,32], index: 5, kind: input, shape index: {}]
  %s6 = inlined_call_operand.vmem [shape: f32[1,32], index: 6, kind: input, shape index: {}]
  %s7 = inlined_call_operand.vmem [shape: f32[1,32], index: 7, kind: input, shape index: {}]
  %s8 = inlined_call_operand.vmem [shape: f32[2,1,32], index: 8, kind: input, shape index: {}]
  %s9 = inlined_call_operand.vmem [shape: f32[2,1,32], index: 9, kind: input, shape index: {}]
  %s10 = inlined_call_operand.vmem [shape: bf16[2,32,96], index: 10, kind: input, shape index: {}]
  %s11 = inlined_call_operand.vmem [shape: f32[2,1,96], index: 11, kind: input, shape index: {}]
  %s12 = inlined_call_operand.vmem [shape: bf16[2,32,32], index: 12, kind: input, shape index: {}]
  %s13 = inlined_call_operand.vmem [shape: f32[2,1,32], index: 13, kind: input, shape index: {}]
  %s14 = inlined_call_operand.vmem [shape: f32[2,1,32], index: 14, kind: input, shape index: {}]
  %s15 = inlined_call_operand.vmem [shape: f32[2,1,32], index: 15, kind: input, shape index: {}]
  %s16 = inlined_call_operand.vmem [shape: bf16[2,32,64], index: 16, kind: input, shape index: {}]
  %s17 = inlined_call_operand.vmem [shape: f32[2,1,64], index: 17, kind: input, shape index: {}]
  %s18 = inlined_call_operand.vmem [shape: bf16[2,64,32], index: 18, kind: input, shape index: {}]
  %s19 = inlined_call_operand.vmem [shape: f32[2,1,32], index: 19, kind: input, shape index: {}]
  %s20 = inlined_call_operand.vmem [shape: f32[1,32], index: 20, kind: input, shape index: {}]
  %s21 = inlined_call_operand.vmem [shape: f32[1,32], index: 21, kind: input, shape index: {}]
  %s22 = inlined_call_operand.vmem [shape: bf16[32,16], index: 22, kind: input, shape index: {}]
  %s23 = inlined_call_operand.hbm [shape: f32[16,16], index: 23, kind: output, shape index: {}]
  %s24 = sld [smem:[#allocation0]]
  $region125: #{clip_image_features.1} parent=0
    _
  %s26 = ssub.s32 1, %s24
  %s27 = scalar_select 0, %s26, %s24
  $region1: #{clip_image_features.1} parent=0
    #allocation2 [shape = 'u8[8192]{0}', space=vmem, size = 0x2000, scoped, tag = 'output window, operand 0']
    #allocation3 [shape = 's32[2]{0}', space=sflag, size = 0x8, scoped, tag = 'scoped memory for clip_image_features.1']
    %28 = vsyncpa [#allocation3], 0
    %s29 = scalar_lea.sflag [#allocation3], 1
    %30 = vsyncpa %s29, 0
    loop: start=0, step=1, limit=4
    $region2: #{clip_image_features.1} parent=1 // loop_pre_header
      _
    $region3: #{clip_image_features.1} parent=1 // loop_header
      %s32 = sphi 0, %s36
      %p33 = scmp.ge.s32.totalorder %s32, 4
      %s42 = sphi 0, %s44
      %s45 = sphi 0, %s42
      %s46 = sphi 0, %s45
      %s62 = sphi 0, %s46
      %s66 = sphi 0, %s66
      %s68 = sphi 0, %s66
      %s69 = sphi 0, %s68
      %s83 = sphi 0, %s69
      %s87 = sphi 0, %s87
      %s89 = sphi 0, %s87
      %s90 = sphi 0, %s89
      %s104 = sphi 0, %s90
      %s108 = sphi 0, %s108
      %s110 = sphi 0, %s108
      %s111 = sphi 0, %s110
      %s125 = sphi 0, %s111
      %s129 = sphi 0, %s129
      %s131 = sphi 0, %s129
      %s132 = sphi 0, %s131
      %s146 = sphi 0, %s132
      %s150 = sphi 0, %s150
      %s152 = sphi 0, %s150
      %s153 = sphi 0, %s152
      %s167 = sphi 0, %s153
      %s171 = sphi 0, %s171
      %s173 = sphi 0, %s171
      %s174 = sphi 0, %s173
      %s188 = sphi 0, %s174
      %s192 = sphi 0, %s192
      %s194 = sphi 0, %s192
      %s195 = sphi 0, %s194
      %s209 = sphi 0, %s195
      %s213 = sphi 0, %s213
      %s215 = sphi 0, %s213
      %s216 = sphi 0, %s215
      %s230 = sphi 0, %s216
      %s234 = sphi 0, %s234
      %s236 = sphi 0, %s234
      %s237 = sphi 0, %s236
      %s251 = sphi 0, %s237
      %s255 = sphi 0, %s255
      %s257 = sphi 0, %s255
      %s258 = sphi 0, %s257
      %s272 = sphi 0, %s258
      %s276 = sphi 0, %s276
      %s278 = sphi 0, %s276
      %s279 = sphi 0, %s278
      %s293 = sphi 0, %s279
      %s297 = sphi 0, %s297
      %s299 = sphi 0, %s297
      %s300 = sphi 0, %s299
      %s314 = sphi 0, %s300
      %s318 = sphi 0, %s318
      %s320 = sphi 0, %s318
      %s321 = sphi 0, %s320
      %s335 = sphi 0, %s321
      %s339 = sphi 0, %s339
      %s341 = sphi 0, %s339
      %s342 = sphi 0, %s341
      %s356 = sphi 0, %s342
      %s360 = sphi 0, %s360
      %s362 = sphi 0, %s360
      %s363 = sphi 0, %s362
      %s377 = sphi 0, %s363
      %s381 = sphi 0, %s381
      %s383 = sphi 0, %s381
      %s384 = sphi 0, %s383
      %s398 = sphi 0, %s384
      %s402 = sphi 0, %s402
      %s404 = sphi 0, %s402
      %s405 = sphi 0, %s404
      %s419 = sphi 0, %s405
      %s423 = sphi 0, %s423
      %s425 = sphi 0, %s423
      %s426 = sphi 0, %s425
      %s440 = sphi 0, %s426
      %s444 = sphi 0, %s444
      %s446 = sphi 0, %s444
      %s447 = sphi 0, %s446
      %s461 = sphi 0, %s447
      %s465 = sphi 0, %s465
      %s467 = sphi 0, %s465
      %s468 = sphi 0, %s467
      %s482 = sphi 0, %s468
      %s486 = sphi 0, %s486
      %s488 = sphi 0, %s486
      %s489 = sphi 0, %s488
      %s503 = sphi 0, %s489
      %s507 = sphi 0, %s507
      %s509 = sphi 0, %s507
      %s510 = sphi 0, %s509
      %s524 = sphi 0, %s510
      %s530 = sphi 0, %s532
      %s533 = sphi 0, %s530
      %s534 = sphi 0, %s533
      %s550 = sphi 0, %s534
    $region4: #{clip_image_features.1} parent=1 // loop_header_branch
      %35 = sbr.rel (%p33) target = $region8
    $region5: #{clip_image_features.1} parent=1 // loop_body
      %s37 = ssub.s32 %s32, 1
      %s38 = ssub.s32 %s32, 2
      %s39 = sadd.s32 %s32, 1
      %s40 = ssub.s32 %s32, %s39
      %p41 = scmp.eq.s32.totalorder %s40, 0
      %s43 = sadd.s32 %s42, 1
      %s44 = scalar_select %p41, %s42, %s43
      %p47 = pneg %p41
      %p48 = scmp.eq.s32.totalorder %s32, 1
      %p49 = por %p47, %p48
      %p50 = scmp.ne.s32.totalorder %s42, %s45
      %p51 = scmp.eq.s32.totalorder %s32, 0
      %p52 = por %p50, %p51
      %p53 = scmp.ne.s32.totalorder %s42, %s45
      %p54 = scmp.eq.s32.totalorder %s37, 1
      %p55 = por %p53, %p54
      %p56 = scmp.ne.s32.totalorder %s45, %s46
      %p57 = scmp.eq.s32.totalorder %s37, 0
      %p58 = por %p56, %p57
      %p59 = scmp.ne.s32.totalorder %s45, %s46
      %p60 = scmp.eq.s32.totalorder %s38, 1
      %p61 = por %p59, %p60
      %p63 = scmp.ne.s32.totalorder %s46, %s62
      %p64 = scmp.eq.s32.totalorder %s38, 0
      %p65 = por %p63, %p64
      %s67 = sadd.s32 %s66, 1
      %p70 = scmp.eq.s32.totalorder %s32, 1
      %p71 = scmp.ne.s32.totalorder %s66, %s68
      %p72 = scmp.eq.s32.totalorder %s32, 0
      %p73 = por %p71, %p72
      %p74 = scmp.ne.s32.totalorder %s66, %s68
      %p75 = scmp.eq.s32.totalorder %s37, 1
      %p76 = por %p74, %p75
      %p77 = scmp.ne.s32.totalorder %s68, %s69
      %p78 = scmp.eq.s32.totalorder %s37, 0
      %p79 = por %p77, %p78
      %p80 = scmp.ne.s32.totalorder %s68, %s69
      %p81 = scmp.eq.s32.totalorder %s38, 1
      %p82 = por %p80, %p81
      %p84 = scmp.ne.s32.totalorder %s69, %s83
      %p85 = scmp.eq.s32.totalorder %s38, 0
      %p86 = por %p84, %p85
      %s88 = sadd.s32 %s87, 1
      %p91 = scmp.eq.s32.totalorder %s32, 1
      %p92 = scmp.ne.s32.totalorder %s87, %s89
      %p93 = scmp.eq.s32.totalorder %s32, 0
      %p94 = por %p92, %p93
      %p95 = scmp.ne.s32.totalorder %s87, %s89
      %p96 = scmp.eq.s32.totalorder %s37, 1
      %p97 = por %p95, %p96
      %p98 = scmp.ne.s32.totalorder %s89, %s90
      %p99 = scmp.eq.s32.totalorder %s37, 0
      %p100 = por %p98, %p99
      %p101 = scmp.ne.s32.totalorder %s89, %s90
      %p102 = scmp.eq.s32.totalorder %s38, 1
      %p103 = por %p101, %p102
      %p105 = scmp.ne.s32.totalorder %s90, %s104
      %p106 = scmp.eq.s32.totalorder %s38, 0
      %p107 = por %p105, %p106
      %s109 = sadd.s32 %s108, 1
      %p112 = scmp.eq.s32.totalorder %s32, 1
      %p113 = scmp.ne.s32.totalorder %s108, %s110
      %p114 = scmp.eq.s32.totalorder %s32, 0
      %p115 = por %p113, %p114
      %p116 = scmp.ne.s32.totalorder %s108, %s110
      %p117 = scmp.eq.s32.totalorder %s37, 1
      %p118 = por %p116, %p117
      %p119 = scmp.ne.s32.totalorder %s110, %s111
      %p120 = scmp.eq.s32.totalorder %s37, 0
      %p121 = por %p119, %p120
      %p122 = scmp.ne.s32.totalorder %s110, %s111
      %p123 = scmp.eq.s32.totalorder %s38, 1
      %p124 = por %p122, %p123
      %p126 = scmp.ne.s32.totalorder %s111, %s125
      %p127 = scmp.eq.s32.totalorder %s38, 0
      %p128 = por %p126, %p127
      %s130 = sadd.s32 %s129, 1
      %p133 = scmp.eq.s32.totalorder %s32, 1
      %p134 = scmp.ne.s32.totalorder %s129, %s131
      %p135 = scmp.eq.s32.totalorder %s32, 0
      %p136 = por %p134, %p135
      %p137 = scmp.ne.s32.totalorder %s129, %s131
      %p138 = scmp.eq.s32.totalorder %s37, 1
      %p139 = por %p137, %p138
      %p140 = scmp.ne.s32.totalorder %s131, %s132
      %p141 = scmp.eq.s32.totalorder %s37, 0
      %p142 = por %p140, %p141
      %p143 = scmp.ne.s32.totalorder %s131, %s132
      %p144 = scmp.eq.s32.totalorder %s38, 1
      %p145 = por %p143, %p144
      %p147 = scmp.ne.s32.totalorder %s132, %s146
      %p148 = scmp.eq.s32.totalorder %s38, 0
      %p149 = por %p147, %p148
      %s151 = sadd.s32 %s150, 1
      %p154 = scmp.eq.s32.totalorder %s32, 1
      %p155 = scmp.ne.s32.totalorder %s150, %s152
      %p156 = scmp.eq.s32.totalorder %s32, 0
      %p157 = por %p155, %p156
      %p158 = scmp.ne.s32.totalorder %s150, %s152
      %p159 = scmp.eq.s32.totalorder %s37, 1
      %p160 = por %p158, %p159
      %p161 = scmp.ne.s32.totalorder %s152, %s153
      %p162 = scmp.eq.s32.totalorder %s37, 0
      %p163 = por %p161, %p162
      %p164 = scmp.ne.s32.totalorder %s152, %s153
      %p165 = scmp.eq.s32.totalorder %s38, 1
      %p166 = por %p164, %p165
      %p168 = scmp.ne.s32.totalorder %s153, %s167
      %p169 = scmp.eq.s32.totalorder %s38, 0
      %p170 = por %p168, %p169
      %s172 = sadd.s32 %s171, 1
      %p175 = scmp.eq.s32.totalorder %s32, 1
      %p176 = scmp.ne.s32.totalorder %s171, %s173
      %p177 = scmp.eq.s32.totalorder %s32, 0
      %p178 = por %p176, %p177
      %p179 = scmp.ne.s32.totalorder %s171, %s173
      %p180 = scmp.eq.s32.totalorder %s37, 1
      %p181 = por %p179, %p180
      %p182 = scmp.ne.s32.totalorder %s173, %s174
      %p183 = scmp.eq.s32.totalorder %s37, 0
      %p184 = por %p182, %p183
      %p185 = scmp.ne.s32.totalorder %s173, %s174
      %p186 = scmp.eq.s32.totalorder %s38, 1
      %p187 = por %p185, %p186
      %p189 = scmp.ne.s32.totalorder %s174, %s188
      %p190 = scmp.eq.s32.totalorder %s38, 0
      %p191 = por %p189, %p190
      %s193 = sadd.s32 %s192, 1
      %p196 = scmp.eq.s32.totalorder %s32, 1
      %p197 = scmp.ne.s32.totalorder %s192, %s194
      %p198 = scmp.eq.s32.totalorder %s32, 0
      %p199 = por %p197, %p198
      %p200 = scmp.ne.s32.totalorder %s192, %s194
      %p201 = scmp.eq.s32.totalorder %s37, 1
      %p202 = por %p200, %p201
      %p203 = scmp.ne.s32.totalorder %s194, %s195
      %p204 = scmp.eq.s32.totalorder %s37, 0
      %p205 = por %p203, %p204
      %p206 = scmp.ne.s32.totalorder %s194, %s195
      %p207 = scmp.eq.s32.totalorder %s38, 1
      %p208 = por %p206, %p207
      %p210 = scmp.ne.s32.totalorder %s195, %s209
      %p211 = scmp.eq.s32.totalorder %s38, 0
      %p212 = por %p210, %p211
      %s214 = sadd.s32 %s213, 1
      %p217 = scmp.eq.s32.totalorder %s32, 1
      %p218 = scmp.ne.s32.totalorder %s213, %s215
      %p219 = scmp.eq.s32.totalorder %s32, 0
      %p220 = por %p218, %p219
      %p221 = scmp.ne.s32.totalorder %s213, %s215
      %p222 = scmp.eq.s32.totalorder %s37, 1
      %p223 = por %p221, %p222
      %p224 = scmp.ne.s32.totalorder %s215, %s216
      %p225 = scmp.eq.s32.totalorder %s37, 0
      %p226 = por %p224, %p225
      %p227 = scmp.ne.s32.totalorder %s215, %s216
      %p228 = scmp.eq.s32.totalorder %s38, 1
      %p229 = por %p227, %p228
      %p231 = scmp.ne.s32.totalorder %s216, %s230
      %p232 = scmp.eq.s32.totalorder %s38, 0
      %p233 = por %p231, %p232
      %s235 = sadd.s32 %s234, 1
      %p238 = scmp.eq.s32.totalorder %s32, 1
      %p239 = scmp.ne.s32.totalorder %s234, %s236
      %p240 = scmp.eq.s32.totalorder %s32, 0
      %p241 = por %p239, %p240
      %p242 = scmp.ne.s32.totalorder %s234, %s236
      %p243 = scmp.eq.s32.totalorder %s37, 1
      %p244 = por %p242, %p243
      %p245 = scmp.ne.s32.totalorder %s236, %s237
      %p246 = scmp.eq.s32.totalorder %s37, 0
      %p247 = por %p245, %p246
      %p248 = scmp.ne.s32.totalorder %s236, %s237
      %p249 = scmp.eq.s32.totalorder %s38, 1
      %p250 = por %p248, %p249
      %p252 = scmp.ne.s32.totalorder %s237, %s251
      %p253 = scmp.eq.s32.totalorder %s38, 0
      %p254 = por %p252, %p253
      %s256 = sadd.s32 %s255, 1
      %p259 = scmp.eq.s32.totalorder %s32, 1
      %p260 = scmp.ne.s32.totalorder %s255, %s257
      %p261 = scmp.eq.s32.totalorder %s32, 0
      %p262 = por %p260, %p261
      %p263 = scmp.ne.s32.totalorder %s255, %s257
      %p264 = scmp.eq.s32.totalorder %s37, 1
      %p265 = por %p263, %p264
      %p266 = scmp.ne.s32.totalorder %s257, %s258
      %p267 = scmp.eq.s32.totalorder %s37, 0
      %p268 = por %p266, %p267
      %p269 = scmp.ne.s32.totalorder %s257, %s258
      %p270 = scmp.eq.s32.totalorder %s38, 1
      %p271 = por %p269, %p270
      %p273 = scmp.ne.s32.totalorder %s258, %s272
      %p274 = scmp.eq.s32.totalorder %s38, 0
      %p275 = por %p273, %p274
      %s277 = sadd.s32 %s276, 1
      %p280 = scmp.eq.s32.totalorder %s32, 1
      %p281 = scmp.ne.s32.totalorder %s276, %s278
      %p282 = scmp.eq.s32.totalorder %s32, 0
      %p283 = por %p281, %p282
      %p284 = scmp.ne.s32.totalorder %s276, %s278
      %p285 = scmp.eq.s32.totalorder %s37, 1
      %p286 = por %p284, %p285
      %p287 = scmp.ne.s32.totalorder %s278, %s279
      %p288 = scmp.eq.s32.totalorder %s37, 0
      %p289 = por %p287, %p288
      %p290 = scmp.ne.s32.totalorder %s278, %s279
      %p291 = scmp.eq.s32.totalorder %s38, 1
      %p292 = por %p290, %p291
      %p294 = scmp.ne.s32.totalorder %s279, %s293
      %p295 = scmp.eq.s32.totalorder %s38, 0
      %p296 = por %p294, %p295
      %s298 = sadd.s32 %s297, 1
      %p301 = scmp.eq.s32.totalorder %s32, 1
      %p302 = scmp.ne.s32.totalorder %s297, %s299
      %p303 = scmp.eq.s32.totalorder %s32, 0
      %p304 = por %p302, %p303
      %p305 = scmp.ne.s32.totalorder %s297, %s299
      %p306 = scmp.eq.s32.totalorder %s37, 1
      %p307 = por %p305, %p306
      %p308 = scmp.ne.s32.totalorder %s299, %s300
      %p309 = scmp.eq.s32.totalorder %s37, 0
      %p310 = por %p308, %p309
      %p311 = scmp.ne.s32.totalorder %s299, %s300
      %p312 = scmp.eq.s32.totalorder %s38, 1
      %p313 = por %p311, %p312
      %p315 = scmp.ne.s32.totalorder %s300, %s314
      %p316 = scmp.eq.s32.totalorder %s38, 0
      %p317 = por %p315, %p316
      %s319 = sadd.s32 %s318, 1
      %p322 = scmp.eq.s32.totalorder %s32, 1
      %p323 = scmp.ne.s32.totalorder %s318, %s320
      %p324 = scmp.eq.s32.totalorder %s32, 0
      %p325 = por %p323, %p324
      %p326 = scmp.ne.s32.totalorder %s318, %s320
      %p327 = scmp.eq.s32.totalorder %s37, 1
      %p328 = por %p326, %p327
      %p329 = scmp.ne.s32.totalorder %s320, %s321
      %p330 = scmp.eq.s32.totalorder %s37, 0
      %p331 = por %p329, %p330
      %p332 = scmp.ne.s32.totalorder %s320, %s321
      %p333 = scmp.eq.s32.totalorder %s38, 1
      %p334 = por %p332, %p333
      %p336 = scmp.ne.s32.totalorder %s321, %s335
      %p337 = scmp.eq.s32.totalorder %s38, 0
      %p338 = por %p336, %p337
      %s340 = sadd.s32 %s339, 1
      %p343 = scmp.eq.s32.totalorder %s32, 1
      %p344 = scmp.ne.s32.totalorder %s339, %s341
      %p345 = scmp.eq.s32.totalorder %s32, 0
      %p346 = por %p344, %p345
      %p347 = scmp.ne.s32.totalorder %s339, %s341
      %p348 = scmp.eq.s32.totalorder %s37, 1
      %p349 = por %p347, %p348
      %p350 = scmp.ne.s32.totalorder %s341, %s342
      %p351 = scmp.eq.s32.totalorder %s37, 0
      %p352 = por %p350, %p351
      %p353 = scmp.ne.s32.totalorder %s341, %s342
      %p354 = scmp.eq.s32.totalorder %s38, 1
      %p355 = por %p353, %p354
      %p357 = scmp.ne.s32.totalorder %s342, %s356
      %p358 = scmp.eq.s32.totalorder %s38, 0
      %p359 = por %p357, %p358
      %s361 = sadd.s32 %s360, 1
      %p364 = scmp.eq.s32.totalorder %s32, 1
      %p365 = scmp.ne.s32.totalorder %s360, %s362
      %p366 = scmp.eq.s32.totalorder %s32, 0
      %p367 = por %p365, %p366
      %p368 = scmp.ne.s32.totalorder %s360, %s362
      %p369 = scmp.eq.s32.totalorder %s37, 1
      %p370 = por %p368, %p369
      %p371 = scmp.ne.s32.totalorder %s362, %s363
      %p372 = scmp.eq.s32.totalorder %s37, 0
      %p373 = por %p371, %p372
      %p374 = scmp.ne.s32.totalorder %s362, %s363
      %p375 = scmp.eq.s32.totalorder %s38, 1
      %p376 = por %p374, %p375
      %p378 = scmp.ne.s32.totalorder %s363, %s377
      %p379 = scmp.eq.s32.totalorder %s38, 0
      %p380 = por %p378, %p379
      %s382 = sadd.s32 %s381, 1
      %p385 = scmp.eq.s32.totalorder %s32, 1
      %p386 = scmp.ne.s32.totalorder %s381, %s383
      %p387 = scmp.eq.s32.totalorder %s32, 0
      %p388 = por %p386, %p387
      %p389 = scmp.ne.s32.totalorder %s381, %s383
      %p390 = scmp.eq.s32.totalorder %s37, 1
      %p391 = por %p389, %p390
      %p392 = scmp.ne.s32.totalorder %s383, %s384
      %p393 = scmp.eq.s32.totalorder %s37, 0
      %p394 = por %p392, %p393
      %p395 = scmp.ne.s32.totalorder %s383, %s384
      %p396 = scmp.eq.s32.totalorder %s38, 1
      %p397 = por %p395, %p396
      %p399 = scmp.ne.s32.totalorder %s384, %s398
      %p400 = scmp.eq.s32.totalorder %s38, 0
      %p401 = por %p399, %p400
      %s403 = sadd.s32 %s402, 1
      %p406 = scmp.eq.s32.totalorder %s32, 1
      %p407 = scmp.ne.s32.totalorder %s402, %s404
      %p408 = scmp.eq.s32.totalorder %s32, 0
      %p409 = por %p407, %p408
      %p410 = scmp.ne.s32.totalorder %s402, %s404
      %p411 = scmp.eq.s32.totalorder %s37, 1
      %p412 = por %p410, %p411
      %p413 = scmp.ne.s32.totalorder %s404, %s405
      %p414 = scmp.eq.s32.totalorder %s37, 0
      %p415 = por %p413, %p414
      %p416 = scmp.ne.s32.totalorder %s404, %s405
      %p417 = scmp.eq.s32.totalorder %s38, 1
      %p418 = por %p416, %p417
      %p420 = scmp.ne.s32.totalorder %s405, %s419
      %p421 = scmp.eq.s32.totalorder %s38, 0
      %p422 = por %p420, %p421
      %s424 = sadd.s32 %s423, 1
      %p427 = scmp.eq.s32.totalorder %s32, 1
      %p428 = scmp.ne.s32.totalorder %s423, %s425
      %p429 = scmp.eq.s32.totalorder %s32, 0
      %p430 = por %p428, %p429
      %p431 = scmp.ne.s32.totalorder %s423, %s425
      %p432 = scmp.eq.s32.totalorder %s37, 1
      %p433 = por %p431, %p432
      %p434 = scmp.ne.s32.totalorder %s425, %s426
      %p435 = scmp.eq.s32.totalorder %s37, 0
      %p436 = por %p434, %p435
      %p437 = scmp.ne.s32.totalorder %s425, %s426
      %p438 = scmp.eq.s32.totalorder %s38, 1
      %p439 = por %p437, %p438
      %p441 = scmp.ne.s32.totalorder %s426, %s440
      %p442 = scmp.eq.s32.totalorder %s38, 0
      %p443 = por %p441, %p442
      %s445 = sadd.s32 %s444, 1
      %p448 = scmp.eq.s32.totalorder %s32, 1
      %p449 = scmp.ne.s32.totalorder %s444, %s446
      %p450 = scmp.eq.s32.totalorder %s32, 0
      %p451 = por %p449, %p450
      %p452 = scmp.ne.s32.totalorder %s444, %s446
      %p453 = scmp.eq.s32.totalorder %s37, 1
      %p454 = por %p452, %p453
      %p455 = scmp.ne.s32.totalorder %s446, %s447
      %p456 = scmp.eq.s32.totalorder %s37, 0
      %p457 = por %p455, %p456
      %p458 = scmp.ne.s32.totalorder %s446, %s447
      %p459 = scmp.eq.s32.totalorder %s38, 1
      %p460 = por %p458, %p459
      %p462 = scmp.ne.s32.totalorder %s447, %s461
      %p463 = scmp.eq.s32.totalorder %s38, 0
      %p464 = por %p462, %p463
      %s466 = sadd.s32 %s465, 1
      %p469 = scmp.eq.s32.totalorder %s32, 1
      %p470 = scmp.ne.s32.totalorder %s465, %s467
      %p471 = scmp.eq.s32.totalorder %s32, 0
      %p472 = por %p470, %p471
      %p473 = scmp.ne.s32.totalorder %s465, %s467
      %p474 = scmp.eq.s32.totalorder %s37, 1
      %p475 = por %p473, %p474
      %p476 = scmp.ne.s32.totalorder %s467, %s468
      %p477 = scmp.eq.s32.totalorder %s37, 0
      %p478 = por %p476, %p477
      %p479 = scmp.ne.s32.totalorder %s467, %s468
      %p480 = scmp.eq.s32.totalorder %s38, 1
      %p481 = por %p479, %p480
      %p483 = scmp.ne.s32.totalorder %s468, %s482
      %p484 = scmp.eq.s32.totalorder %s38, 0
      %p485 = por %p483, %p484
      %s487 = sadd.s32 %s486, 1
      %p490 = scmp.eq.s32.totalorder %s32, 1
      %p491 = scmp.ne.s32.totalorder %s486, %s488
      %p492 = scmp.eq.s32.totalorder %s32, 0
      %p493 = por %p491, %p492
      %p494 = scmp.ne.s32.totalorder %s486, %s488
      %p495 = scmp.eq.s32.totalorder %s37, 1
      %p496 = por %p494, %p495
      %p497 = scmp.ne.s32.totalorder %s488, %s489
      %p498 = scmp.eq.s32.totalorder %s37, 0
      %p499 = por %p497, %p498
      %p500 = scmp.ne.s32.totalorder %s488, %s489
      %p501 = scmp.eq.s32.totalorder %s38, 1
      %p502 = por %p500, %p501
      %p504 = scmp.ne.s32.totalorder %s489, %s503
      %p505 = scmp.eq.s32.totalorder %s38, 0
      %p506 = por %p504, %p505
      %s508 = sadd.s32 %s507, 1
      %p511 = scmp.eq.s32.totalorder %s32, 1
      %p512 = scmp.ne.s32.totalorder %s507, %s509
      %p513 = scmp.eq.s32.totalorder %s32, 0
      %p514 = por %p512, %p513
      %p515 = scmp.ne.s32.totalorder %s507, %s509
      %p516 = scmp.eq.s32.totalorder %s37, 1
      %p517 = por %p515, %p516
      %p518 = scmp.ne.s32.totalorder %s509, %s510
      %p519 = scmp.eq.s32.totalorder %s37, 0
      %p520 = por %p518, %p519
      %p521 = scmp.ne.s32.totalorder %s509, %s510
      %p522 = scmp.eq.s32.totalorder %s38, 1
      %p523 = por %p521, %p522
      %p525 = scmp.ne.s32.totalorder %s510, %s524
      %p526 = scmp.eq.s32.totalorder %s38, 0
      %p527 = por %p525, %p526
      %s528 = ssub.s32 %s32, %s39
      %p529 = scmp.eq.s32.totalorder %s528, 0
      %s531 = sadd.s32 %s530, 1
      %s532 = scalar_select %p529, %s530, %s531
      %p535 = pneg %p529
      %p536 = scmp.eq.s32.totalorder %s32, 1
      %p537 = por %p535, %p536
      %p538 = scmp.ne.s32.totalorder %s530, %s533
      %p539 = scmp.eq.s32.totalorder %s32, 0
      %p540 = por %p538, %p539
      %p541 = scmp.ne.s32.totalorder %s530, %s533
      %p542 = scmp.eq.s32.totalorder %s37, 1
      %p543 = por %p541, %p542
      %p544 = scmp.ne.s32.totalorder %s533, %s534
      %p545 = scmp.eq.s32.totalorder %s37, 0
      %p546 = por %p544, %p545
      %p547 = scmp.ne.s32.totalorder %s533, %s534
      %p548 = scmp.eq.s32.totalorder %s38, 1
      %p549 = por %p547, %p548
      %p551 = scmp.ne.s32.totalorder %s534, %s550
      %p552 = scmp.eq.s32.totalorder %s38, 0
      %p553 = por %p551, %p552
      %p554 = scmp.le.s32.totalorder 1, %s32
      %p555 = scmp.lt.s32.totalorder %s32, 3
      %p556 = pnand %p554, %p555
      %p557 = pneg %p556
      // Predicated region
      $region9: #{clip_image_features.1} parent=5 // pred_check
        _
      $region10: #{clip_image_features.1} parent=5 // pred_check_branch
        %559 = sbr.rel (%p556) target = $region12
      $region11: #{clip_image_features.1} parent=5 // pred_region
        %s560 = ssub.s32 %s32, 1
        // Predicated region
        $region13: #{clip_image_features.1} parent=11 // pred_check
          %p561 = pneg %p79
        $region14: #{clip_image_features.1} parent=11 // pred_check_branch
          %563 = sbr.rel (%p561) target = $region16
        $region15: #{clip_image_features.1} parent=11 // pred_region
          _
        $region16: #{clip_image_features.1} parent=11 // pred_fallthru
          _
        // Predicated region
        $region17: #{clip_image_features.1} parent=11 // pred_check
          %p564 = pneg %p100
        $region18: #{clip_image_features.1} parent=11 // pred_check_branch
          %566 = sbr.rel (%p564) target = $region20
        $region19: #{clip_image_features.1} parent=11 // pred_region
          _
        $region20: #{clip_image_features.1} parent=11 // pred_fallthru
          _
        // Predicated region
        $region21: #{clip_image_features.1} parent=11 // pred_check
          %p567 = pneg %p121
        $region22: #{clip_image_features.1} parent=11 // pred_check_branch
          %569 = sbr.rel (%p567) target = $region24
        $region23: #{clip_image_features.1} parent=11 // pred_region
          _
        $region24: #{clip_image_features.1} parent=11 // pred_fallthru
          _
        // Predicated region
        $region25: #{clip_image_features.1} parent=11 // pred_check
          %p570 = pneg %p142
        $region26: #{clip_image_features.1} parent=11 // pred_check_branch
          %572 = sbr.rel (%p570) target = $region28
        $region27: #{clip_image_features.1} parent=11 // pred_region
          _
        $region28: #{clip_image_features.1} parent=11 // pred_fallthru
          _
        // Predicated region
        $region29: #{clip_image_features.1} parent=11 // pred_check
          %p573 = pneg %p163
        $region30: #{clip_image_features.1} parent=11 // pred_check_branch
          %575 = sbr.rel (%p573) target = $region32
        $region31: #{clip_image_features.1} parent=11 // pred_region
          _
        $region32: #{clip_image_features.1} parent=11 // pred_fallthru
          _
        // Predicated region
        $region33: #{clip_image_features.1} parent=11 // pred_check
          %p576 = pneg %p184
        $region34: #{clip_image_features.1} parent=11 // pred_check_branch
          %578 = sbr.rel (%p576) target = $region36
        $region35: #{clip_image_features.1} parent=11 // pred_region
          _
        $region36: #{clip_image_features.1} parent=11 // pred_fallthru
          _
        // Predicated region
        $region37: #{clip_image_features.1} parent=11 // pred_check
          %p579 = pneg %p205
        $region38: #{clip_image_features.1} parent=11 // pred_check_branch
          %581 = sbr.rel (%p579) target = $region40
        $region39: #{clip_image_features.1} parent=11 // pred_region
          _
        $region40: #{clip_image_features.1} parent=11 // pred_fallthru
          _
        // Predicated region
        $region41: #{clip_image_features.1} parent=11 // pred_check
          %p582 = pneg %p226
        $region42: #{clip_image_features.1} parent=11 // pred_check_branch
          %584 = sbr.rel (%p582) target = $region44
        $region43: #{clip_image_features.1} parent=11 // pred_region
          _
        $region44: #{clip_image_features.1} parent=11 // pred_fallthru
          _
        // Predicated region
        $region45: #{clip_image_features.1} parent=11 // pred_check
          %p585 = pneg %p247
        $region46: #{clip_image_features.1} parent=11 // pred_check_branch
          %587 = sbr.rel (%p585) target = $region48
        $region47: #{clip_image_features.1} parent=11 // pred_region
          _
        $region48: #{clip_image_features.1} parent=11 // pred_fallthru
          _
        // Predicated region
        $region49: #{clip_image_features.1} parent=11 // pred_check
          %p588 = pneg %p268
        $region50: #{clip_image_features.1} parent=11 // pred_check_branch
          %590 = sbr.rel (%p588) target = $region52
        $region51: #{clip_image_features.1} parent=11 // pred_region
          _
        $region52: #{clip_image_features.1} parent=11 // pred_fallthru
          _
        // Predicated region
        $region53: #{clip_image_features.1} parent=11 // pred_check
          %p591 = pneg %p289
        $region54: #{clip_image_features.1} parent=11 // pred_check_branch
          %593 = sbr.rel (%p591) target = $region56
        $region55: #{clip_image_features.1} parent=11 // pred_region
          _
        $region56: #{clip_image_features.1} parent=11 // pred_fallthru
          _
        // Predicated region
        $region57: #{clip_image_features.1} parent=11 // pred_check
          %p594 = pneg %p310
        $region58: #{clip_image_features.1} parent=11 // pred_check_branch
          %596 = sbr.rel (%p594) target = $region60
        $region59: #{clip_image_features.1} parent=11 // pred_region
          _
        $region60: #{clip_image_features.1} parent=11 // pred_fallthru
          _
        // Predicated region
        $region61: #{clip_image_features.1} parent=11 // pred_check
          %p597 = pneg %p331
        $region62: #{clip_image_features.1} parent=11 // pred_check_branch
          %599 = sbr.rel (%p597) target = $region64
        $region63: #{clip_image_features.1} parent=11 // pred_region
          _
        $region64: #{clip_image_features.1} parent=11 // pred_fallthru
          _
        // Predicated region
        $region65: #{clip_image_features.1} parent=11 // pred_check
          %p600 = pneg %p352
        $region66: #{clip_image_features.1} parent=11 // pred_check_branch
          %602 = sbr.rel (%p600) target = $region68
        $region67: #{clip_image_features.1} parent=11 // pred_region
          _
        $region68: #{clip_image_features.1} parent=11 // pred_fallthru
          _
        // Predicated region
        $region69: #{clip_image_features.1} parent=11 // pred_check
          %p603 = pneg %p373
        $region70: #{clip_image_features.1} parent=11 // pred_check_branch
          %605 = sbr.rel (%p603) target = $region72
        $region71: #{clip_image_features.1} parent=11 // pred_region
          _
        $region72: #{clip_image_features.1} parent=11 // pred_fallthru
          _
        // Predicated region
        $region73: #{clip_image_features.1} parent=11 // pred_check
          %p606 = pneg %p394
        $region74: #{clip_image_features.1} parent=11 // pred_check_branch
          %608 = sbr.rel (%p606) target = $region76
        $region75: #{clip_image_features.1} parent=11 // pred_region
          _
        $region76: #{clip_image_features.1} parent=11 // pred_fallthru
          _
        // Predicated region
        $region77: #{clip_image_features.1} parent=11 // pred_check
          %p609 = pneg %p415
        $region78: #{clip_image_features.1} parent=11 // pred_check_branch
          %611 = sbr.rel (%p609) target = $region80
        $region79: #{clip_image_features.1} parent=11 // pred_region
          _
        $region80: #{clip_image_features.1} parent=11 // pred_fallthru
          _
        // Predicated region
        $region81: #{clip_image_features.1} parent=11 // pred_check
          %p612 = pneg %p436
        $region82: #{clip_image_features.1} parent=11 // pred_check_branch
          %614 = sbr.rel (%p612) target = $region84
        $region83: #{clip_image_features.1} parent=11 // pred_region
          _
        $region84: #{clip_image_features.1} parent=11 // pred_fallthru
          _
        // Predicated region
        $region85: #{clip_image_features.1} parent=11 // pred_check
          %p615 = pneg %p457
        $region86: #{clip_image_features.1} parent=11 // pred_check_branch
          %617 = sbr.rel (%p615) target = $region88
        $region87: #{clip_image_features.1} parent=11 // pred_region
          _
        $region88: #{clip_image_features.1} parent=11 // pred_fallthru
          _
        // Predicated region
        $region89: #{clip_image_features.1} parent=11 // pred_check
          %p618 = pneg %p478
        $region90: #{clip_image_features.1} parent=11 // pred_check_branch
          %620 = sbr.rel (%p618) target = $region92
        $region91: #{clip_image_features.1} parent=11 // pred_region
          _
        $region92: #{clip_image_features.1} parent=11 // pred_fallthru
          _
        // Predicated region
        $region93: #{clip_image_features.1} parent=11 // pred_check
          %p621 = pneg %p499
        $region94: #{clip_image_features.1} parent=11 // pred_check_branch
          %623 = sbr.rel (%p621) target = $region96
        $region95: #{clip_image_features.1} parent=11 // pred_region
          _
        $region96: #{clip_image_features.1} parent=11 // pred_fallthru
          _
        // Predicated region
        $region97: #{clip_image_features.1} parent=11 // pred_check
          %p624 = pneg %p520
        $region98: #{clip_image_features.1} parent=11 // pred_check_branch
          %626 = sbr.rel (%p624) target = $region100
        $region99: #{clip_image_features.1} parent=11 // pred_region
          _
        $region100: #{clip_image_features.1} parent=11 // pred_fallthru
          _
      $region12: #{clip_image_features.1} parent=5 // pred_fallthru
        _
      %p627 = scmp.lt.s32.totalorder %s32, 2
      // Predicated region
      $region101: #{clip_image_features.1} parent=5 // pred_check
        %p628 = pneg %p627
      $region102: #{clip_image_features.1} parent=5 // pred_check_branch
        %630 = sbr.rel (%p628) target = $region104
      $region103: #{clip_image_features.1} parent=5 // pred_region
        // Predicated region
        $region105: #{clip_image_features.1} parent=103 // pred_check
          %p631 = pneg %p52
        $region106: #{clip_image_features.1} parent=103 // pred_check_branch
          %633 = sbr.rel (%p631) target = $region108
        $region107: #{clip_image_features.1} parent=103 // pred_region
          %s634 = smul.u32 5, %s32
          %p635 = scmp.lt.s32.totalorder %s634, 9
          %s636 = scalar_select %p635, %s634, 9
          %s637 = smul.addr %s636, 2
          %s638 = smul.addr %s637, 8
          %s639 = scalar_lea.vmem %s0, %s638
          %s640 = smul.u32 5, %s32
        $region108: #{clip_image_features.1} parent=103 // pred_fallthru
          _
      $region104: #{clip_image_features.1} parent=5 // pred_fallthru
        _
      %p641 = scmp.le.s32.totalorder 1, %s32
      %p642 = scmp.lt.s32.totalorder %s32, 3
      %p643 = pnand %p641, %p642
      %p644 = pneg %p643
      // Predicated region
      $region109: #{clip_image_features.1} parent=5 // pred_check
        _
      $region110: #{clip_image_features.1} parent=5 // pred_check_branch
        %646 = sbr.rel (%p643) target = $region112
      $region111: #{clip_image_features.1} parent=5 // pred_region
        %s647 = ssub.s32 %s32, 1
        %s648 = smul.u32 5, %s37
        %p649 = scmp.lt.s32.totalorder %s648, 9
        %s650 = scalar_select %p649, %s648, 9
        %s651 = smul.addr %s650, 2
        %s652 = smul.addr %s651, 8
        %s653 = scalar_lea.vmem %s0, %s652
        %p654 = pneg %p58
        %p655 = pneg %p55
        %p656 = pneg %p79
        %p657 = pneg %p76
        %p658 = pneg %p100
        %p659 = pneg %p97
        %p660 = pneg %p121
        %p661 = pneg %p118
        %p662 = pneg %p142
        %p663 = pneg %p139
        %p664 = pneg %p163
        %p665 = pneg %p160
        %p666 = pneg %p184
        %p667 = pneg %p181
        %p668 = pneg %p205
        %p669 = pneg %p202
        %p670 = pneg %p226
        %p671 = pneg %p223
        %p672 = pneg %p247
        %p673 = pneg %p244
        %p674 = pneg %p268
        %p675 = pneg %p265
        %p676 = pneg %p289
        %p677 = pneg %p286
        %p678 = pneg %p310
        %p679 = pneg %p307
        %p680 = pneg %p331
        %p681 = pneg %p328
        %p682 = pneg %p352
        %p683 = pneg %p349
        %p684 = pneg %p373
        %p685 = pneg %p370
        %p686 = pneg %p394
        %p687 = pneg %p391
        %p688 = pneg %p415
        %p689 = pneg %p412
        %p690 = pneg %p436
        %p691 = pneg %p433
        %p692 = pneg %p457
        %p693 = pneg %p454
        %p694 = pneg %p478
        %p695 = pneg %p475
        %p696 = pneg %p499
        %p697 = pneg %p496
        %p698 = pneg %p520
        %p699 = pneg %p517
        %p700 = pneg %p546
        %p701 = pneg %p543
        %s702 = sand.u32 %s533, 1
        %s703 = scalar_lea.sflag [#allocation3], %s702
        %s704 = sand.u32 %s533, 1
        %s705 = smul.addr %s704, 8
        %s706 = scalar_lea.vmem [#allocation2], %s705
        %s707 = smul.u32 5, %s37
        %p708 = scmp.lt.s32.totalorder %s707, 9
        %s709 = scalar_select %p708, %s707, 9
        %s710 = smul.addr %s709, 2
        %s711 = smul.addr %s710, 8
        %s712 = scalar_lea.vmem %s0, %s711
        %s713 = smul.u32 5, %s37
        %v715 = vld [vmem:[%s712] sm:$0xff]
        %v716 = vld [vmem:[%s712 + $0x8] sm:$0xff]
        %v717 = vld [vmem:[%s712 + $0x10] sm:$0xff]
        %v718 = vld [vmem:[%s712 + $0x18] sm:$0xff]
        %v719 = vld [vmem:[%s712 + $0x20] sm:$0xff]
        %v720 = vld [vmem:[%s712 + $0x28] sm:$0xff]
        %v721 = vld [vmem:[%s712 + $0x30] sm:$0xff]
        %v722 = vld [vmem:[%s712 + $0x38] sm:$0xff]
        %v723 = vld [vmem:[%s712 + $0x40] sm:$0xff]
        %v724 = vld [vmem:[%s712 + $0x48] sm:$0xff]
        %v725 = vpack.c.bf16 %v717, %v715
        %v726 = vpack.c.bf16 %v718, %v716
        %v727 = vpack.c.bf16 %v721, %v719
        %v728 = vpack.c.bf16 %v722, %v720
        %v729 = vpack.c.bf16 %v723, %v723
        %v730 = vpack.c.bf16 %v724, %v724
        %v731 = vld [vmem:[%s5] sm:$0xf]
        %v732 = vld [vmem:[%s5 + $0x4] sm:$0xf]
        %v733 = vld [vmem:[%s5 + $0x8] sm:$0xf]
        %v734 = vld [vmem:[%s5 + $0xc] sm:$0xf]
        %v735 = vld [vmem:[%s5 + $0x10] sm:$0xf]
        %v736 = vld [vmem:[%s5 + $0x14] sm:$0xf]
        %v737 = vld [vmem:[%s5 + $0x18] sm:$0xf]
        %v738 = vld [vmem:[%s5 + $0x1c] sm:$0xf]
        %v739 = vld [vmem:[%s5 + $0x20] sm:$0xf]
        %v740 = vld [vmem:[%s5 + $0x24] sm:$0xf]
        %v741 = vld [vmem:[%s5 + $0x28] sm:$0xf]
        %v742 = vld [vmem:[%s5 + $0x2c] sm:$0xf]
        %v743 = vld [vmem:[%s5 + $0x30] sm:$0xf]
        %v744 = vld [vmem:[%s5 + $0x34] sm:$0xf]
        %v745 = vld [vmem:[%s5 + $0x38] sm:$0xf]
        %v746 = vld [vmem:[%s5 + $0x3c] sm:$0xf]
        %v747 = vld [vmem:[%s5 + $0x40] sm:$0xf]
        %v748 = vld [vmem:[%s5 + $0x44] sm:$0xf]
        %v749 = vld [vmem:[%s5 + $0x48] sm:$0xf]
        %v750 = vld [vmem:[%s5 + $0x4c] sm:$0xf]
        %v751 = vld [vmem:[%s5 + $0x50] sm:$0xf]
        %v752 = vld [vmem:[%s5 + $0x54] sm:$0xf]
        %v753 = vld [vmem:[%s5 + $0x58] sm:$0xf]
        %v754 = vld [vmem:[%s5 + $0x5c] sm:$0xf]
        %v755 = vld [vmem:[%s1] sm:$0xff]
        %v756 = vld [vmem:[%s1 + $0x8] sm:$0xff]
        %v757 = vld [vmem:[%s1 + $0x10] sm:$0xff]
        %v758 = vld [vmem:[%s1 + $0x18] sm:$0xff]
        %v759 = vld [vmem:[%s1 + $0x20] sm:$0xff]
        %v784 = vunpack.c.l.b16 %v731
        %v785 = vunpack.c.l.b16 %v732
        %v786 = vunpack.c.l.b16 %v733
        %v787 = vunpack.c.l.b16 %v734
        %v788 = vunpack.c.l.b16 %v735
        %v789 = vunpack.c.l.b16 %v736
        %v790 = vunpack.c.l.b16 %v737
        %v791 = vunpack.c.l.b16 %v738
        %v792 = vunpack.c.l.b16 %v739
        %v793 = vunpack.c.l.b16 %v740
        %v794 = vunpack.c.l.b16 %v741
        %v795 = vunpack.c.l.b16 %v742
        %v796 = vunpack.c.l.b16 %v743
        %v797 = vunpack.c.l.b16 %v744
        %v798 = vunpack.c.l.b16 %v745
        %v799 = vunpack.c.l.b16 %v746
        %v800 = vunpack.c.l.b16 %v747
        %v801 = vunpack.c.l.b16 %v748
        %v802 = vunpack.c.l.b16 %v749
        %v803 = vunpack.c.l.b16 %v750
        %v804 = vunpack.c.l.b16 %v751
        %v805 = vunpack.c.l.b16 %v752
        %v806 = vunpack.c.l.b16 %v753
        %v807 = vunpack.c.l.b16 %v754
        %v808 = vpack.c.b16 %v785, %v784
        %v809 = vpack.c.b16 %v787, %v786
        %v810 = vpack.c.b16 %v789, %v788
        %v811 = vpack.c.b16 %v791, %v790
        %v812 = vpack.c.b16 %v793, %v792
        %v813 = vpack.c.b16 %v795, %v794
        %v814 = vpack.c.b16 %v797, %v796
        %v815 = vpack.c.b16 %v799, %v798
        %v816 = vpack.c.b16 %v801, %v800
        %v817 = vpack.c.b16 %v803, %v802
        %v818 = vpack.c.b16 %v805, %v804
        %v819 = vpack.c.b16 %v807, %v806
        %vm832 = vcmask 523264
        %v834 = vsel %vm832, %v726, 0
        %v837 = vsel %vm832, %v728, 0
        %v840 = vsel %vm832, %v730, 0
        %842 = vmatprep.subr.bf16.mxu0 0
        %843 = vmatpush1.bf16.msra.mxu0 %v815
        %844 = vmatprep.subr.bf16.mxu0 0
        %845 = vmatpush1.bf16.msra.mxu0 %v814
        %846 = vmatprep.subr.bf16.mxu0 0
        %847 = vmatpush1.bf16.msra.mxu0 %v813
        %848 = vmatprep.subr.bf16.mxu0 0
        %849 = vmatpush1.bf16.msra.mxu0 %v812
        %850 = vmatprep.subr.bf16.mxu0 0
        %851 = vmatpush1.bf16.msra.mxu0 %v811
        %852 = vmatprep.subr.bf16.mxu0 0
        %853 = vmatpush1.bf16.msra.mxu0 %v810
        %854 = vmatprep.subr.bf16.mxu0 0
        %855 = vmatpush1.bf16.msra.mxu0 %v809
        %856 = vmatprep.subr.bf16.mxu0 0
        %857 = vmatpush1.bf16.msra.mxu0 %v808
        %858 = vmatprep.subr.bf16.mxu0 0
        %859 = vmatpush2.bf16.msra.mxu0 0
        %860 = vmatprep.subr.bf16.mxu0 0
        %861 = vmatpush2.bf16.msra.mxu0 0
        %862 = vmatprep.subr.bf16.mxu0 0
        %863 = vmatpush2.bf16.msra.mxu0 0
        %864 = vmatprep.subr.bf16.mxu0 0
        %865 = vmatpush2.bf16.msra.mxu0 0
        %866 = vmatprep.subr.bf16.mxu0 0
        %867 = vmatpush2.bf16.msra.mxu0 %v819
        %868 = vmatprep.subr.bf16.mxu0 0
        %869 = vmatpush2.bf16.msra.mxu0 %v818
        %870 = vmatprep.subr.bf16.mxu0 0
        %871 = vmatpush2.bf16.msra.mxu0 %v817
        %872 = vmatprep.subr.bf16.mxu0 0
        %873 = vmatpush2.bf16.msra.mxu0 %v816
        %874 = vmatprep.mubr.bf16.mxu0 %v834
        %875 = vmatmul.mubr.bf16.gmra.mxu0 %v725
        %v876 = vpop.f32.mrf.mxu0
        %v877 = vadd.f32 %v755, %v876
        %v878 = vpop.f32.mrf.mxu0
        %v879 = vpop.f32.mrf.mxu0
        %v880 = vadd.f32 %v756, %v879
        %v881 = vpop.f32.mrf.mxu0
        %882 = vmatprep.mubr.bf16.mxu0 %v837
        %883 = vmatmul.mubr.bf16.gmra.mxu0 %v727
        %v884 = vpop.f32.mrf.mxu0
        %v885 = vadd.f32 %v757, %v884
        %v886 = vpop.f32.mrf.mxu0
        %v887 = vpop.f32.mrf.mxu0
        %v888 = vadd.f32 %v758, %v887
        %v889 = vpop.f32.mrf.mxu0
        %890 = vmatprep.mubr.bf16.mxu0 %v840
        %891 = vmatmul.mubr.bf16.gmra.mxu0 %v729
        %v892 = vpop.f32.mrf.mxu0
        %v893 = vadd.f32 %v759, %v892
        %v894 = vpop.f32.mrf.mxu0
        %v895 = vpop.f32.mrf.mxu0
        %v896 = vpop.f32.mrf.mxu0
        %897 = vdwg.mxu0
        %v898 = vld [vmem:[%s6] sm:$0x1]
        %v899 = vld [vmem:[%s7] sm:$0x1]
        %vm900 = vcmask 261120
        %v901 = vsel %vm900, %v877, 0.0
        %902 = vadd.xlane.f32.xlu0 %v901
        %v903 = vpop.xlane.xlu0 %902
        %v904 = vsel %vm900, %v880, 0.0
        %905 = vadd.xlane.f32.xlu0 %v904
        %v906 = vpop.xlane.xlu0 %905
        %v907 = vsel %vm900, %v885, 0.0
        %908 = vadd.xlane.f32.xlu0 %v907
        %v909 = vpop.xlane.xlu0 %908
        %v910 = vsel %vm900, %v888, 0.0
        %911 = vadd.xlane.f32.xlu0 %v910
        %v912 = vpop.xlane.xlu0 %911
        %v913 = vsel %vm900, %v893, 0.0
        %914 = vadd.xlane.f32.xlu0 %v913
        %v915 = vpop.xlane.xlu0 %914
        %v916 = vrcp.pop 32.0
        %v917 = vmul.f32 %v903, %v916
        %v918 = vmul.f32 %v906, %v916
        %v919 = vmul.f32 %v909, %v916
        %v920 = vmul.f32 %v912, %v916
        %v921 = vmul.f32 %v915, %v916
        %v922 = vsub.f32 %v877, %v917
        %v923 = vsub.f32 %v880, %v918
        %v924 = vsub.f32 %v885, %v919
        %v925 = vsub.f32 %v888, %v920
        %v926 = vsub.f32 %v893, %v921
        %v927 = vmul.f32 %v922, %v922
        %v928 = vmul.f32 %v923, %v923
        %v929 = vmul.f32 %v924, %v924
        %v930 = vmul.f32 %v925, %v925
        %v931 = vmul.f32 %v926, %v926
        %v932 = vsel %vm900, %v927, 0.0
        %933 = vadd.xlane.f32.xlu0 %v932
        %v934 = vpop.xlane.xlu0 %933
        %v935 = vsel %vm900, %v928, 0.0
        %936 = vadd.xlane.f32.xlu0 %v935
        %v937 = vpop.xlane.xlu0 %936
        %v938 = vsel %vm900, %v929, 0.0
        %939 = vadd.xlane.f32.xlu0 %v938
        %v940 = vpop.xlane.xlu0 %939
        %v941 = vsel %vm900, %v930, 0.0
        %942 = vadd.xlane.f32.xlu0 %v941
        %v943 = vpop.xlane.xlu0 %942
        %v944 = vsel %vm900, %v931, 0.0
        %945 = vadd.xlane.f32.xlu0 %v944
        %v946 = vpop.xlane.xlu0 %945
        %v947 = vmul.f32 %v934, %v916
        %v948 = vmul.f32 %v937, %v916
        %v949 = vmul.f32 %v940, %v916
        %v950 = vmul.f32 %v943, %v916
        %v951 = vmul.f32 %v946, %v916
        %v952 = vadd.f32 %v947, 1e-05
        %v953 = vadd.f32 %v948, 1e-05
        %v954 = vadd.f32 %v949, 1e-05
        %v955 = vadd.f32 %v950, 1e-05
        %v956 = vadd.f32 %v951, 1e-05
        %v957 = vrsqrt.pop %v952
        %v958 = vrsqrt.pop %v953
        %v959 = vrsqrt.pop %v954
        %v960 = vrsqrt.pop %v955
        %v961 = vrsqrt.pop %v956
        %v962 = vmul.f32 %v922, %v957
        %v963 = vmul.f32 %v923, %v958
        %v964 = vmul.f32 %v924, %v959
        %v965 = vmul.f32 %v925, %v960
        %v966 = vmul.f32 %v926, %v961
        %v968 = vlaneseq
        %v969 = vshrl.u32 %v968, 7
        %v970 = vsub.s32 0, %v969
        %v971 = vrot.slane %v898, %v970
        %v973 = vmul.f32 %v962, %v971
        %v974 = vmul.f32 %v963, %v971
        %v975 = vmul.f32 %v964, %v971
        %v976 = vmul.f32 %v965, %v971
        %v977 = vmul.f32 %v966, %v971
        %v979 = vlaneseq
        %v980 = vshrl.u32 %v979, 7
        %v981 = vsub.s32 0, %v980
        %v982 = vrot.slane %v899, %v981
        %v984 = vadd.f32 %v973, %v982
        %v985 = vadd.f32 %v974, %v982
        %v986 = vadd.f32 %v975, %v982
        %v987 = vadd.f32 %v976, %v982
        %v988 = vadd.f32 %v977, %v982
        %v989 = vld [vmem:[%s2] sm:$0xff]
        %v990 = vld [vmem:[%s2 + $0x8] sm:$0xff]
        %v991 = vld [vmem:[%s2 + $0x10] sm:$0xff]
        %v992 = vld [vmem:[%s2 + $0x18] sm:$0xff]
        %v993 = vld [vmem:[%s2 + $0x20] sm:$0xff]
        %v994 = vld [vmem:[%s8] sm:$0x1]
        %v995 = vld [vmem:[%s9] sm:$0x1]
        %v996 = vsel %vm900, %v984, 0.0
        %997 = vadd.xlane.f32.xlu0 %v996
        %v998 = vpop.xlane.xlu0 %997
        %v999 = vsel %vm900, %v985, 0.0
        %1000 = vadd.xlane.f32.xlu0 %v999
        %v1001 = vpop.xlane.xlu0 %1000
        %v1002 = vsel %vm900, %v986, 0.0
        %1003 = vadd.xlane.f32.xlu0 %v1002
        %v1004 = vpop.xlane.xlu0 %1003
        %v1005 = vsel %vm900, %v987, 0.0
        %1006 = vadd.xlane.f32.xlu0 %v1005
        %v1007 = vpop.xlane.xlu0 %1006
        %v1008 = vsel %vm900, %v988, 0.0
        %1009 = vadd.xlane.f32.xlu0 %v1008
        %v1010 = vpop.xlane.xlu0 %1009
        %v1011 = vmul.f32 %v998, %v916
        %v1012 = vmul.f32 %v1001, %v916
        %v1013 = vmul.f32 %v1004, %v916
        %v1014 = vmul.f32 %v1007, %v916
        %v1015 = vmul.f32 %v1010, %v916
        %v1016 = vsub.f32 %v984, %v1011
        %v1017 = vsub.f32 %v985, %v1012
        %v1018 = vsub.f32 %v986, %v1013
        %v1019 = vsub.f32 %v987, %v1014
        %v1020 = vsub.f32 %v988, %v1015
        %v1021 = vmul.f32 %v1016, %v1016
        %v1022 = vmul.f32 %v1017, %v1017
        %v1023 = vmul.f32 %v1018, %v1018
        %v1024 = vmul.f32 %v1019, %v1019
        %v1025 = vmul.f32 %v1020, %v1020
        %v1026 = vsel %vm900, %v1021, 0.0
        %1027 = vadd.xlane.f32.xlu0 %v1026
        %v1028 = vpop.xlane.xlu0 %1027
        %v1029 = vsel %vm900, %v1022, 0.0
        %1030 = vadd.xlane.f32.xlu0 %v1029
        %v1031 = vpop.xlane.xlu0 %1030
        %v1032 = vsel %vm900, %v1023, 0.0
        %1033 = vadd.xlane.f32.xlu0 %v1032
        %v1034 = vpop.xlane.xlu0 %1033
        %v1035 = vsel %vm900, %v1024, 0.0
        %1036 = vadd.xlane.f32.xlu0 %v1035
        %v1037 = vpop.xlane.xlu0 %1036
        %v1038 = vsel %vm900, %v1025, 0.0
        %1039 = vadd.xlane.f32.xlu0 %v1038
        %v1040 = vpop.xlane.xlu0 %1039
        %v1041 = vmul.f32 %v1028, %v916
        %v1042 = vmul.f32 %v1031, %v916
        %v1043 = vmul.f32 %v1034, %v916
        %v1044 = vmul.f32 %v1037, %v916
        %v1045 = vmul.f32 %v1040, %v916
        %v1046 = vadd.f32 %v1041, 1e-05
        %v1047 = vadd.f32 %v1042, 1e-05
        %v1048 = vadd.f32 %v1043, 1e-05
        %v1049 = vadd.f32 %v1044, 1e-05
        %v1050 = vadd.f32 %v1045, 1e-05
        %v1051 = vrsqrt.pop %v1046
        %v1052 = vrsqrt.pop %v1047
        %v1053 = vrsqrt.pop %v1048
        %v1054 = vrsqrt.pop %v1049
        %v1055 = vrsqrt.pop %v1050
        %v1056 = vmul.f32 %v1016, %v1051
        %v1057 = vmul.f32 %v1017, %v1052
        %v1058 = vmul.f32 %v1018, %v1053
        %v1059 = vmul.f32 %v1019, %v1054
        %v1060 = vmul.f32 %v1020, %v1055
        %v1062 = vlaneseq
        %v1063 = vshrl.u32 %v1062, 7
        %v1064 = vsub.s32 0, %v1063
        %v1065 = vrot.slane %v994, %v1064
        %v1067 = vmul.f32 %v1056, %v1065
        %v1068 = vmul.f32 %v1057, %v1065
        %v1069 = vmul.f32 %v1058, %v1065
        %v1070 = vmul.f32 %v1059, %v1065
        %v1071 = vmul.f32 %v1060, %v1065
        %v1073 = vlaneseq
        %v1074 = vshrl.u32 %v1073, 7
        %v1075 = vsub.s32 0, %v1074
        %v1076 = vrot.slane %v995, %v1075
        %v1078 = vadd.f32 %v1067, %v1076
        %v1079 = vadd.f32 %v1068, %v1076
        %v1080 = vadd.f32 %v1069, %v1076
        %v1081 = vadd.f32 %v1070, %v1076
        %v1082 = vadd.f32 %v1071, %v1076
        %v1083 = vpack.c.bf16 %v1079, %v1078
        %v1084 = vpack.c.bf16 %v1081, %v1080
        %v1085 = vpack.c.bf16 %v1082, %v1082
        %v1086 = vld [vmem:[%s10] sm:$0xf]
        %v1087 = vld [vmem:[%s10 + $0x4] sm:$0xf]
        %v1088 = vld [vmem:[%s10 + $0x8] sm:$0xf]
        %v1089 = vld [vmem:[%s10 + $0xc] sm:$0xf]
        %v1090 = vld [vmem:[%s11] sm:$0x1]
        %v1092 = vlaneseq
        %v1093 = vshrl.u32 %v1092, 7
        %v1094 = vsub.s32 0, %v1093
        %v1095 = vrot.slane %v1090, %v1094
        %v1101 = vunpack.c.l.b16 %v1086
        %v1102 = vunpack.c.l.b16 %v1087
        %v1103 = vunpack.c.l.b16 %v1088
        %v1104 = vunpack.c.l.b16 %v1089
        %v1105 = vpack.c.b16 %v1102, %v1101
        %v1106 = vpack.c.b16 %v1104, %v1103
        %v1110 = vsel %vm900, %v1083, 0
        %v1113 = vsel %vm900, %v1084, 0
        %v1116 = vsel %vm900, %v1085, 0
        %1118 = vmatprep.subr.bf16.mxu0 0
        %1119 = vmatpush1.bf16.msra.mxu0 0
        %1120 = vmatprep.subr.bf16.mxu0 0
        %1121 = vmatpush1.bf16.msra.mxu0 0
        %1122 = vmatprep.subr.bf16.mxu0 0
        %1123 = vmatpush1.bf16.msra.mxu0 0
        %1124 = vmatprep.subr.bf16.mxu0 0
        %1125 = vmatpush1.bf16.msra.mxu0 0
        %1126 = vmatprep.subr.bf16.mxu0 0
        %1127 = vmatpush1.bf16.msra.mxu0 0
        %1128 = vmatprep.subr.bf16.mxu0 0
        %1129 = vmatpush1.bf16.msra.mxu0 0
        %1130 = vmatprep.subr.bf16.mxu0 0
        %1131 = vmatpush1.bf16.msra.mxu0 %v1106
        %1132 = vmatprep.subr.bf16.mxu0 0
        %1133 = vmatpush1.bf16.msra.mxu0 %v1105
        %1134 = vmatprep.subr.bf16.mxu0 0
        %1135 = vmatpush2.bf16.msra.mxu0 0
        %1136 = vmatprep.subr.bf16.mxu0 0
        %1137 = vmatpush2.bf16.msra.mxu0 0
        %1138 = vmatprep.subr.bf16.mxu0 0
        %1139 = vmatpush2.bf16.msra.mxu0 0
        %1140 = vmatprep.subr.bf16.mxu0 0
        %1141 = vmatpush2.bf16.msra.mxu0 0
        %1142 = vmatprep.subr.bf16.mxu0 0
        %1143 = vmatpush2.bf16.msra.mxu0 0
        %1144 = vmatprep.subr.bf16.mxu0 0
        %1145 = vmatpush2.bf16.msra.mxu0 0
        %1146 = vmatprep.subr.bf16.mxu0 0
        %1147 = vmatpush2.bf16.msra.mxu0 0
        %1148 = vmatprep.subr.bf16.mxu0 0
        %1149 = vmatpush2.bf16.msra.mxu0 0
        %1150 = vmatprep.mubr.bf16.mxu0 0
        %1151 = vmatmul.mubr.bf16.gmra.mxu0 %v1110
        %v1152 = vpop.f32.mrf.mxu0
        %v1153 = vadd.f32 %v1095, %v1152
        %v1154 = vpop.f32.mrf.mxu0
        %v1155 = vpop.f32.mrf.mxu0
        %v1156 = vadd.f32 %v1095, %v1155
        %v1157 = vpop.f32.mrf.mxu0
        %1158 = vmatprep.mubr.bf16.mxu0 0
        %1159 = vmatmul.mubr.bf16.gmra.mxu0 %v1113
        %v1160 = vpop.f32.mrf.mxu0
        %v1161 = vadd.f32 %v1095, %v1160
        %v1162 = vpop.f32.mrf.mxu0
        %v1163 = vpop.f32.mrf.mxu0
        %v1164 = vadd.f32 %v1095, %v1163
        %v1165 = vpop.f32.mrf.mxu0
        %1166 = vmatprep.mubr.bf16.mxu0 0
        %1167 = vmatmul.mubr.bf16.gmra.mxu0 %v1116
        %v1168 = vpop.f32.mrf.mxu0
        %v1169 = vadd.f32 %v1095, %v1168
        %v1170 = vpop.f32.mrf.mxu0
        %v1171 = vpop.f32.mrf.mxu0
        %v1172 = vpop.f32.mrf.mxu0
        %1173 = vdwg.mxu0
        %v1174 = vpack.c.bf16 %v1156, %v1153
        %v1175 = vpack.c.bf16 %v1164, %v1161
        %v1176 = vpack.c.bf16 %v1169, %v1169
        %v1177 = vld [vmem:[%s4] sm:$0x1]
        %v1179 = vlaneseq
        %v1180 = vshrl.u32 %v1179, 7
        %v1181 = vsub.s32 0, %v1180
        %v1182 = vrot.slane %v1177, %v1181
        %v1184 = vmul.f32 %v1153, %v1182
        %v1185 = vmul.f32 %v1156, %v1182
        %v1186 = vmul.f32 %v1161, %v1182
        %v1187 = vmul.f32 %v1164, %v1182
        %v1188 = vmul.f32 %v1169, %v1182
        %v1189 = vpack.c.bf16 %v1185, %v1184
        %v1190 = vpack.c.bf16 %v1187, %v1186
        %v1191 = vpack.c.bf16 %v1188, %v1188
        %1195 = vrot.lane.b32.xlu0 %v1174, 96
        %v1196 = vpop.permute.xlu0 %1195
        %1197 = vrot.lane.b32.xlu0 %v1175, 96
        %v1198 = vpop.permute.xlu0 %1197
        %1199 = vrot.lane.b32.xlu0 %v1176, 96
        %v1200 = vpop.permute.xlu0 %1199
        %v1202 = vsel %vm900, %v1189, 0
        %v1205 = vsel %vm900, %v1190, 0
        %v1208 = vsel %vm900, %v1191, 0
        %v1211 = vsel %vm900, %v1196, 0
        %v1214 = vsel %vm900, %v1198, 0
        %v1217 = vsel %vm900, %v1200, 0
        %1219 = vmatprep.subr.bf16.mxu0 0
        %1220 = vmatpush1.bf16.xpose.msra.mxu0 0
        %1221 = vmatprep.subr.bf16.mxu0 0
        %1222 = vmatpush1.bf16.xpose.msra.mxu0 0
        %1223 = vmatprep.subr.bf16.mxu0 0
        %1224 = vmatpush1.bf16.xpose.msra.mxu0 0
        %1225 = vmatprep.subr.bf16.mxu0 0
        %1226 = vmatpush1.bf16.xpose.msra.mxu0 0
        %1227 = vmatprep.subr.bf16.mxu0 0
        %1228 = vmatpush1.bf16.xpose.msra.mxu0 0
        %1229 = vmatprep.subr.bf16.mxu0 0
        %1230 = vmatpush1.bf16.xpose.msra.mxu0 %v1217
        %1231 = vmatprep.subr.bf16.mxu0 0
        %1232 = vmatpush1.bf16.xpose.msra.mxu0 %v1214
        %1233 = vmatprep.subr.bf16.mxu0 0
        %1234 = vmatpush1.bf16.xpose.msra.mxu0 %v1211
        %1235 = vmatprep.subr.bf16.mxu0 0
        %1236 = vmatpush2.bf16.xpose.msra.mxu0 0
        %1237 = vmatprep.subr.bf16.mxu0 0
        %1238 = vmatpush2.bf16.xpose.msra.mxu0 0
        %1239 = vmatprep.subr.bf16.mxu0 0
        %1240 = vmatpush2.bf16.xpose.msra.mxu0 0
        %1241 = vmatprep.subr.bf16.mxu0 0
        %1242 = vmatpush2.bf16.xpose.msra.mxu0 0
        %1243 = vmatprep.subr.bf16.mxu0 0
        %1244 = vmatpush2.bf16.xpose.msra.mxu0 0
        %1245 = vmatprep.subr.bf16.mxu0 0
        %1246 = vmatpush2.bf16.xpose.msra.mxu0 0
        %1247 = vmatprep.subr.bf16.mxu0 0
        %1248 = vmatpush2.bf16.xpose.msra.mxu0 0
        %1249 = vmatprep.subr.bf16.mxu0 0
        %1250 = vmatpush2.bf16.xpose.msra.mxu0 0
        %1251 = vmatprep.mubr.bf16.mxu0 0
        %1252 = vmatmul.mubr.bf16.gmra.mxu0 %v1202
        %v1253 = vpop.f32.mrf.mxu0
        %v1254 = vadd.f32 %v989, %v1253
        %v1255 = vpop.f32.mrf.mxu0
        %v1256 = vpop.f32.mrf.mxu0
        %v1257 = vadd.f32 %v990, %v1256
        %v1258 = vpop.f32.mrf.mxu0
        %1259 = vmatprep.mubr.bf16.mxu0 0
        %1260 = vmatmul.mubr.bf16.gmra.mxu0 %v1205
        %v1261 = vpop.f32.mrf.mxu0
        %v1262 = vadd.f32 %v991, %v1261
        %v1263 = vpop.f32.mrf.mxu0
        %v1264 = vpop.f32.mrf.mxu0
        %v1265 = vadd.f32 %v992, %v1264
        %v1266 = vpop.f32.mrf.mxu0
        %1267 = vmatprep.mubr.bf16.mxu0 0
        %1268 = vmatmul.mubr.bf16.gmra.mxu0 %v1208
        %v1269 = vpop.f32.mrf.mxu0
        %v1270 = vadd.f32 %v993, %v1269
        %v1271 = vpop.f32.mrf.mxu0
        %v1272 = vpop.f32.mrf.mxu0
        %v1273 = vpop.f32.mrf.mxu0
        %1274 = vdwg.mxu0
        %vm1275 = vcmask 326656
        %v1276 = vsel %vm1275, %v1254, -inf
        %1277 = vmax.xlane.f32.xlu0 %v1276
        %v1278 = vpop.xlane.xlu0 %1277
        %v1279 = vsel %vm1275, %v1257, -inf
        %1280 = vmax.xlane.f32.xlu0 %v1279
        %v1281 = vpop.xlane.xlu0 %1280
        %v1282 = vsel %vm1275, %v1262, -inf
        %1283 = vmax.xlane.f32.xlu0 %v1282
        %v1284 = vpop.xlane.xlu0 %1283
        %v1285 = vsel %vm1275, %v1265, -inf
        %1286 = vmax.xlane.f32.xlu0 %v1285
        %v1287 = vpop.xlane.xlu0 %1286
        %v1288 = vsel %vm1275, %v1270, -inf
        %1289 = vmax.xlane.f32.xlu0 %v1288
        %v1290 = vpop.xlane.xlu0 %1289
        %v1291 = vsub.f32 %v1254, %v1278
        %v1292 = vsub.f32 %v1257, %v1281
        %v1293 = vsub.f32 %v1262, %v1284
        %v1294 = vsub.f32 %v1265, %v1287
        %v1295 = vsub.f32 %v1270, %v1290
        %v1296 = vmul.f32 %v1291, 1.442695
        %v1297 = vpow.pop %v1296
        %v1298 = vmul.f32 %v1292, 1.442695
        %v1299 = vpow.pop %v1298
        %v1300 = vmul.f32 %v1293, 1.442695
        %v1301 = vpow.pop %v1300
        %v1302 = vmul.f32 %v1294, 1.442695
        %v1303 = vpow.pop %v1302
        %v1304 = vmul.f32 %v1295, 1.442695
        %v1305 = vpow.pop %v1304
        %v1306 = vsel %vm1275, %v1297, 0.0
        %1307 = vadd.xlane.f32.xlu0 %v1306
        %v1308 = vpop.xlane.xlu0 %1307
        %v1309 = vsel %vm1275, %v1299, 0.0
        %1310 = vadd.xlane.f32.xlu0 %v1309
        %v1311 = vpop.xlane.xlu0 %1310
        %v1312 = vsel %vm1275, %v1301, 0.0
        %1313 = vadd.xlane.f32.xlu0 %v1312
        %v1314 = vpop.xlane.xlu0 %1313
        %v1315 = vsel %vm1275, %v1303, 0.0
        %1316 = vadd.xlane.f32.xlu0 %v1315
        %v1317 = vpop.xlane.xlu0 %1316
        %v1318 = vsel %vm1275, %v1305, 0.0
        %1319 = vadd.xlane.f32.xlu0 %v1318
        %v1320 = vpop.xlane.xlu0 %1319
        %v1321 = vrcp.pop %v1308
        %v1322 = vrcp.pop %v1311
        %v1323 = vrcp.pop %v1314
        %v1324 = vrcp.pop %v1317
        %v1325 = vrcp.pop %v1320
        %v1326 = vmul.f32 %v1297, %v1321
        %v1327 = vmul.f32 %v1299, %v1322
        %v1328 = vmul.f32 %v1301, %v1323
        %v1329 = vmul.f32 %v1303, %v1324
        %v1330 = vmul.f32 %v1305, %v1325
        %v1331 = vpack.c.bf16 %v1327, %v1326
        %v1332 = vpack.c.bf16 %v1329, %v1328
        %v1333 = vpack.c.bf16 %v1330, %v1330
        %1334 = vrot.lane.b32.xlu0 %v1182, 64
        %v1335 = vpop.permute.xlu0 %1334
        %v1337 = vmul.f32 %v1153, %v1335
        %v1338 = vmul.f32 %v1156, %v1335
        %v1339 = vmul.f32 %v1161, %v1335
        %v1340 = vmul.f32 %v1164, %v1335
        %v1341 = vmul.f32 %v1169, %v1335
        %v1342 = vpack.c.bf16 %v1338, %v1337
        %v1343 = vpack.c.bf16 %v1340, %v1339
        %v1344 = vpack.c.bf16 %v1341, %v1341
        %s1345 = scalar_lea.vmem %s4, 1
        %v1346 = vld [vmem:[%s1345] sm:$0x1]
        %v1348 = vlaneseq
        %v1349 = vshrl.u32 %v1348, 7
        %v1350 = vsub.s32 0, %v1349
        %v1351 = vrot.slane %v1346, %v1350
        %v1353 = vmul.f32 %v1153, %v1351
        %v1354 = vmul.f32 %v1156, %v1351
        %v1355 = vmul.f32 %v1161, %v1351
        %v1356 = vmul.f32 %v1164, %v1351
        %v1357 = vmul.f32 %v1169, %v1351
        %v1358 = vpack.c.bf16 %v1354, %v1353
        %v1359 = vpack.c.bf16 %v1356, %v1355
        %v1360 = vpack.c.bf16 %v1357, %v1357
        %v1362 = vsel %vm900, %v1358, 0
        %v1365 = vsel %vm900, %v1359, 0
        %v1368 = vsel %vm900, %v1360, 0
        %1370 = vmatprep.subr.bf16.mxu0 0
        %1371 = vmatpush1.bf16.xpose.msra.mxu0 0
        %1372 = vmatprep.subr.bf16.mxu0 0
        %1373 = vmatpush1.bf16.xpose.msra.mxu0 0
        %1374 = vmatprep.subr.bf16.mxu0 0
        %1375 = vmatpush1.bf16.xpose.msra.mxu0 0
        %1376 = vmatprep.subr.bf16.mxu0 0
        %1377 = vmatpush1.bf16.xpose.msra.mxu0 0
        %1378 = vmatprep.subr.bf16.mxu0 0
        %1379 = vmatpush1.bf16.xpose.msra.mxu0 0
        %1380 = vmatprep.subr.bf16.mxu0 0
        %1381 = vmatpush1.bf16.xpose.msra.mxu0 %v1217
        %1382 = vmatprep.subr.bf16.mxu0 0
        %1383 = vmatpush1.bf16.xpose.msra.mxu0 %v1214
        %1384 = vmatprep.subr.bf16.mxu0 0
        %1385 = vmatpush1.bf16.xpose.msra.mxu0 %v1211
        %1386 = vmatprep.subr.bf16.mxu0 0
        %1387 = vmatpush2.bf16.xpose.msra.mxu0 0
        %1388 = vmatprep.subr.bf16.mxu0 0
        %1389 = vmatpush2.bf16.xpose.msra.mxu0 0
        %1390 = vmatprep.subr.bf16.mxu0 0
        %1391 = vmatpush2.bf16.xpose.msra.mxu0 0
        %1392 = vmatprep.subr.bf16.mxu0 0
        %1393 = vmatpush2.bf16.xpose.msra.mxu0 0
        %1394 = vmatprep.subr.bf16.mxu0 0
        %1395 = vmatpush2.bf16.xpose.msra.mxu0 0
        %1396 = vmatprep.subr.bf16.mxu0 0
        %1397 = vmatpush2.bf16.xpose.msra.mxu0 0
        %1398 = vmatprep.subr.bf16.mxu0 0
        %1399 = vmatpush2.bf16.xpose.msra.mxu0 0
        %1400 = vmatprep.subr.bf16.mxu0 0
        %1401 = vmatpush2.bf16.xpose.msra.mxu0 0
        %1402 = vmatprep.mubr.bf16.mxu0 0
        %1403 = vmatmul.mubr.bf16.gmra.mxu0 %v1362
        %v1404 = vpop.f32.mrf.mxu0
        %v1405 = vadd.f32 %v989, %v1404
        %v1406 = vpop.f32.mrf.mxu0
        %v1407 = vpop.f32.mrf.mxu0
        %v1408 = vadd.f32 %v990, %v1407
        %v1409 = vpop.f32.mrf.mxu0
        %1410 = vmatprep.mubr.bf16.mxu0 0
        %1411 = vmatmul.mubr.bf16.gmra.mxu0 %v1365
        %v1412 = vpop.f32.mrf.mxu0
        %v1413 = vadd.f32 %v991, %v1412
        %v1414 = vpop.f32.mrf.mxu0
        %v1415 = vpop.f32.mrf.mxu0
        %v1416 = vadd.f32 %v992, %v1415
        %v1417 = vpop.f32.mrf.mxu0
        %1418 = vmatprep.mubr.bf16.mxu0 0
        %1419 = vmatmul.mubr.bf16.gmra.mxu0 %v1368
        %v1420 = vpop.f32.mrf.mxu0
        %v1421 = vadd.f32 %v993, %v1420
        %v1422 = vpop.f32.mrf.mxu0
        %v1423 = vpop.f32.mrf.mxu0
        %v1424 = vpop.f32.mrf.mxu0
        %1425 = vdwg.mxu0
        %v1426 = vsel %vm1275, %v1405, -inf
        %1427 = vmax.xlane.f32.xlu0 %v1426
        %v1428 = vpop.xlane.xlu0 %1427
        %v1429 = vsel %vm1275, %v1408, -inf
        %1430 = vmax.xlane.f32.xlu0 %v1429
        %v1431 = vpop.xlane.xlu0 %1430
        %v1432 = vsel %vm1275, %v1413, -inf
        %1433 = vmax.xlane.f32.xlu0 %v1432
        %v1434 = vpop.xlane.xlu0 %1433
        %v1435 = vsel %vm1275, %v1416, -inf
        %1436 = vmax.xlane.f32.xlu0 %v1435
        %v1437 = vpop.xlane.xlu0 %1436
        %v1438 = vsel %vm1275, %v1421, -inf
        %1439 = vmax.xlane.f32.xlu0 %v1438
        %v1440 = vpop.xlane.xlu0 %1439
        %v1441 = vsub.f32 %v1405, %v1428
        %v1442 = vsub.f32 %v1408, %v1431
        %v1443 = vsub.f32 %v1413, %v1434
        %v1444 = vsub.f32 %v1416, %v1437
        %v1445 = vsub.f32 %v1421, %v1440
        %v1446 = vmul.f32 %v1441, 1.442695
        %v1447 = vpow.pop %v1446
        %v1448 = vmul.f32 %v1442, 1.442695
        %v1449 = vpow.pop %v1448
        %v1450 = vmul.f32 %v1443, 1.442695
        %v1451 = vpow.pop %v1450
        %v1452 = vmul.f32 %v1444, 1.442695
        %v1453 = vpow.pop %v1452
        %v1454 = vmul.f32 %v1445, 1.442695
        %v1455 = vpow.pop %v1454
        %v1456 = vsel %vm1275, %v1447, 0.0
        %1457 = vadd.xlane.f32.xlu0 %v1456
        %v1458 = vpop.xlane.xlu0 %1457
        %v1459 = vsel %vm1275, %v1449, 0.0
        %1460 = vadd.xlane.f32.xlu0 %v1459
        %v1461 = vpop.xlane.xlu0 %1460
        %v1462 = vsel %vm1275, %v1451, 0.0
        %1463 = vadd.xlane.f32.xlu0 %v1462
        %v1464 = vpop.xlane.xlu0 %1463
        %v1465 = vsel %vm1275, %v1453, 0.0
        %1466 = vadd.xlane.f32.xlu0 %v1465
        %v1467 = vpop.xlane.xlu0 %1466
        %v1468 = vsel %vm1275, %v1455, 0.0
        %1469 = vadd.xlane.f32.xlu0 %v1468
        %v1470 = vpop.xlane.xlu0 %1469
        %v1471 = vrcp.pop %v1458
        %v1472 = vrcp.pop %v1461
        %v1473 = vrcp.pop %v1464
        %v1474 = vrcp.pop %v1467
        %v1475 = vrcp.pop %v1470
        %v1476 = vmul.f32 %v1447, %v1471
        %v1477 = vmul.f32 %v1449, %v1472
        %v1478 = vmul.f32 %v1451, %v1473
        %v1479 = vmul.f32 %v1453, %v1474
        %v1480 = vmul.f32 %v1455, %v1475
        %v1481 = vpack.c.bf16 %v1477, %v1476
        %v1482 = vpack.c.bf16 %v1479, %v1478
        %v1483 = vpack.c.bf16 %v1480, %v1480
        %1484 = vrot.lane.b32.xlu0 %v1351, 64
        %v1485 = vpop.permute.xlu0 %1484
        %v1487 = vmul.f32 %v1153, %v1485
        %v1488 = vmul.f32 %v1156, %v1485
        %v1489 = vmul.f32 %v1161, %v1485
        %v1490 = vmul.f32 %v1164, %v1485
        %v1491 = vmul.f32 %v1169, %v1485
        %v1492 = vpack.c.bf16 %v1488, %v1487
        %v1493 = vpack.c.bf16 %v1490, %v1489
        %v1494 = vpack.c.bf16 %v1491, %v1491
        %1498 = vrot.lane.b32.xlu0 %v1492, 64
        %v1499 = vpop.permute.xlu0 %1498
        %1500 = vrot.lane.b32.xlu0 %v1493, 64
        %v1501 = vpop.permute.xlu0 %1500
        %1502 = vrot.lane.b32.xlu0 %v1494, 64
        %v1503 = vpop.permute.xlu0 %1502
        %v1507 = vsel %vm1275, %v1481, 0
        %v1510 = vsel %vm1275, %v1482, 0
        %v1513 = vsel %vm1275, %v1483, 0
        %vm1515 = vcmask 1043456
        %v1517 = vsel %vm1515, %v1503, 0
        %1519 = vmatprep.subr.bf16.mxu0 0
        %1520 = vmatpush1.bf16.msra.mxu0 0
        %1521 = vmatprep.subr.bf16.mxu0 0
        %1522 = vmatpush1.bf16.msra.mxu0 0
        %1523 = vmatprep.subr.bf16.mxu0 0
        %1524 = vmatpush1.bf16.msra.mxu0 0
        %1525 = vmatprep.subr.bf16.mxu0 0
        %1526 = vmatpush1.bf16.msra.mxu0 0
        %1527 = vmatprep.subr.bf16.mxu0 0
        %1528 = vmatpush1.bf16.msra.mxu0 0
        %1529 = vmatprep.subr.bf16.mxu0 0
        %1530 = vmatpush1.bf16.msra.mxu0 %v1517
        %1531 = vmatprep.subr.bf16.mxu0 0
        %1532 = vmatpush1.bf16.msra.mxu0 %v1501
        %1533 = vmatprep.subr.bf16.mxu0 0
        %1534 = vmatpush1.bf16.msra.mxu0 %v1499
        %1535 = vmatprep.subr.bf16.mxu0 0
        %1536 = vmatpush2.bf16.msra.mxu0 0
        %1537 = vmatprep.subr.bf16.mxu0 0
        %1538 = vmatpush2.bf16.msra.mxu0 0
        %1539 = vmatprep.subr.bf16.mxu0 0
        %1540 = vmatpush2.bf16.msra.mxu0 0
        %1541 = vmatprep.subr.bf16.mxu0 0
        %1542 = vmatpush2.bf16.msra.mxu0 0
        %1543 = vmatprep.subr.bf16.mxu0 0
        %1544 = vmatpush2.bf16.msra.mxu0 0
        %1545 = vmatprep.subr.bf16.mxu0 0
        %1546 = vmatpush2.bf16.msra.mxu0 0
        %1547 = vmatprep.subr.bf16.mxu0 0
        %1548 = vmatpush2.bf16.msra.mxu0 0
        %1549 = vmatprep.subr.bf16.mxu0 0
        %1550 = vmatpush2.bf16.msra.mxu0 0
        %1551 = vmatprep.mubr.bf16.mxu0 0
        %1552 = vmatmul.mubr.bf16.gmra.mxu0 %v1507
        %v1553 = vpop.f32.mrf.mxu0
        %v1554 = vadd.f32 0.0, %v1553
        %v1555 = vpop.f32.mrf.mxu0
        %v1556 = vpop.f32.mrf.mxu0
        %v1557 = vadd.f32 0.0, %v1556
        %v1558 = vpop.f32.mrf.mxu0
        %1559 = vmatprep.mubr.bf16.mxu0 0
        %1560 = vmatmul.mubr.bf16.gmra.mxu0 %v1510
        %v1561 = vpop.f32.mrf.mxu0
        %v1562 = vadd.f32 0.0, %v1561
        %v1563 = vpop.f32.mrf.mxu0
        %v1564 = vpop.f32.mrf.mxu0
        %v1565 = vadd.f32 0.0, %v1564
        %v1566 = vpop.f32.mrf.mxu0
        %1567 = vmatprep.mubr.bf16.mxu0 0
        %1568 = vmatmul.mubr.bf16.gmra.mxu0 %v1513
        %v1569 = vpop.f32.mrf.mxu0
        %v1570 = vadd.f32 0.0, %v1569
        %v1571 = vpop.f32.mrf.mxu0
        %v1572 = vpop.f32.mrf.mxu0
        %v1573 = vpop.f32.mrf.mxu0
        %1574 = vdwg.mxu0
        %1578 = vrot.lane.b32.xlu0 %v1342, 64
        %v1579 = vpop.permute.xlu0 %1578
        %1580 = vrot.lane.b32.xlu0 %v1343, 64
        %v1581 = vpop.permute.xlu0 %1580
        %1582 = vrot.lane.b32.xlu0 %v1344, 64
        %v1583 = vpop.permute.xlu0 %1582
        %v1587 = vsel %vm1275, %v1331, 0
        %v1590 = vsel %vm1275, %v1332, 0
        %v1593 = vsel %vm1275, %v1333, 0
        %v1596 = vsel %vm1515, %v1583, 0
        %1598 = vmatprep.subr.bf16.mxu0 0
        %1599 = vmatpush1.bf16.msra.mxu0 0
        %1600 = vmatprep.subr.bf16.mxu0 0
        %1601 = vmatpush1.bf16.msra.mxu0 0
        %1602 = vmatprep.subr.bf16.mxu0 0
        %1603 = vmatpush1.bf16.msra.mxu0 0
        %1604 = vmatprep.subr.bf16.mxu0 0
        %1605 = vmatpush1.bf16.msra.mxu0 0
        %1606 = vmatprep.subr.bf16.mxu0 0
        %1607 = vmatpush1.bf16.msra.mxu0 0
        %1608 = vmatprep.subr.bf16.mxu0 0
        %1609 = vmatpush1.bf16.msra.mxu0 %v1596
        %1610 = vmatprep.subr.bf16.mxu0 0
        %1611 = vmatpush1.bf16.msra.mxu0 %v1581
        %1612 = vmatprep.subr.bf16.mxu0 0
        %1613 = vmatpush1.bf16.msra.mxu0 %v1579
        %1614 = vmatprep.subr.bf16.mxu0 0
        %1615 = vmatpush2.bf16.msra.mxu0 0
        %1616 = vmatprep.subr.bf16.mxu0 0
        %1617 = vmatpush2.bf16.msra.mxu0 0
        %1618 = vmatprep.subr.bf16.mxu0 0
        %1619 = vmatpush2.bf16.msra.mxu0 0
        %1620 = vmatprep.subr.bf16.mxu0 0
        %1621 = vmatpush2.bf16.msra.mxu0 0
        %1622 = vmatprep.subr.bf16.mxu0 0
        %1623 = vmatpush2.bf16.msra.mxu0 0
        %1624 = vmatprep.subr.bf16.mxu0 0
        %1625 = vmatpush2.bf16.msra.mxu0 0
        %1626 = vmatprep.subr.bf16.mxu0 0
        %1627 = vmatpush2.bf16.msra.mxu0 0
        %1628 = vmatprep.subr.bf16.mxu0 0
        %1629 = vmatpush2.bf16.msra.mxu0 0
        %1630 = vmatprep.mubr.bf16.mxu0 0
        %1631 = vmatmul.mubr.bf16.gmra.mxu0 %v1587
        %v1632 = vpop.f32.mrf.mxu0
        %v1633 = vadd.f32 %v1554, %v1632
        %v1634 = vpop.f32.mrf.mxu0
        %v1635 = vpop.f32.mrf.mxu0
        %v1636 = vadd.f32 %v1557, %v1635
        %v1637 = vpop.f32.mrf.mxu0
        %1638 = vmatprep.mubr.bf16.mxu0 0
        %1639 = vmatmul.mubr.bf16.gmra.mxu0 %v1590
        %v1640 = vpop.f32.mrf.mxu0
        %v1641 = vadd.f32 %v1562, %v1640
        %v1642 = vpop.f32.mrf.mxu0
        %v1643 = vpop.f32.mrf.mxu0
        %v1644 = vadd.f32 %v1565, %v1643
        %v1645 = vpop.f32.mrf.mxu0
        %1646 = vmatprep.mubr.bf16.mxu0 0
        %1647 = vmatmul.mubr.bf16.gmra.mxu0 %v1593
        %v1648 = vpop.f32.mrf.mxu0
        %v1649 = vadd.f32 %v1570, %v1648
        %v1650 = vpop.f32.mrf.mxu0
        %v1651 = vpop.f32.mrf.mxu0
        %v1652 = vpop.f32.mrf.mxu0
        %1653 = vdwg.mxu0
        %s1654 = scalar_lea.vmem %s4, 2
        %v1655 = vld [vmem:[%s1654] sm:$0x1]
        %v1657 = vlaneseq
        %v1658 = vshrl.u32 %v1657, 7
        %v1659 = vsub.s32 0, %v1658
        %v1660 = vrot.slane %v1655, %v1659
        %v1662 = vmul.f32 %v1153, %v1660
        %v1663 = vmul.f32 %v1156, %v1660
        %v1664 = vmul.f32 %v1161, %v1660
        %v1665 = vmul.f32 %v1164, %v1660
        %v1666 = vmul.f32 %v1169, %v1660
        %v1667 = vpack.c.bf16 %v1663, %v1662
        %v1668 = vpack.c.bf16 %v1665, %v1664
        %v1669 = vpack.c.bf16 %v1666, %v1666
        %v1671 = vsel %vm900, %v1667, 0
        %v1674 = vsel %vm900, %v1668, 0
        %v1677 = vsel %vm900, %v1669, 0
        %1679 = vmatprep.subr.bf16.mxu0 0
        %1680 = vmatpush1.bf16.xpose.msra.mxu0 0
        %1681 = vmatprep.subr.bf16.mxu0 0
        %1682 = vmatpush1.bf16.xpose.msra.mxu0 0
        %1683 = vmatprep.subr.bf16.mxu0 0
        %1684 = vmatpush1.bf16.xpose.msra.mxu0 0
        %1685 = vmatprep.subr.bf16.mxu0 0
        %1686 = vmatpush1.bf16.xpose.msra.mxu0 0
        %1687 = vmatprep.subr.bf16.mxu0 0
        %1688 = vmatpush1.bf16.xpose.msra.mxu0 0
        %1689 = vmatprep.subr.bf16.mxu0 0
        %1690 = vmatpush1.bf16.xpose.msra.mxu0 %v1217
        %1691 = vmatprep.subr.bf16.mxu0 0
        %1692 = vmatpush1.bf16.xpose.msra.mxu0 %v1214
        %1693 = vmatprep.subr.bf16.mxu0 0
        %1694 = vmatpush1.bf16.xpose.msra.mxu0 %v1211
        %1695 = vmatprep.subr.bf16.mxu0 0
        %1696 = vmatpush2.bf16.xpose.msra.mxu0 0
        %1697 = vmatprep.subr.bf16.mxu0 0
        %1698 = vmatpush2.bf16.xpose.msra.mxu0 0
        %1699 = vmatprep.subr.bf16.mxu0 0
        %1700 = vmatpush2.bf16.xpose.msra.mxu0 0
        %1701 = vmatprep.subr.bf16.mxu0 0
        %1702 = vmatpush2.bf16.xpose.msra.mxu0 0
        %1703 = vmatprep.subr.bf16.mxu0 0
        %1704 = vmatpush2.bf16.xpose.msra.mxu0 0
        %1705 = vmatprep.subr.bf16.mxu0 0
        %1706 = vmatpush2.bf16.xpose.msra.mxu0 0
        %1707 = vmatprep.subr.bf16.mxu0 0
        %1708 = vmatpush2.bf16.xpose.msra.mxu0 0
        %1709 = vmatprep.subr.bf16.mxu0 0
        %1710 = vmatpush2.bf16.xpose.msra.mxu0 0
        %1711 = vmatprep.mubr.bf16.mxu0 0
        %1712 = vmatmul.mubr.bf16.gmra.mxu0 %v1671
        %v1713 = vpop.f32.mrf.mxu0
        %v1714 = vadd.f32 %v989, %v1713
        %v1715 = vpop.f32.mrf.mxu0
        %v1716 = vpop.f32.mrf.mxu0
        %v1717 = vadd.f32 %v990, %v1716
        %v1718 = vpop.f32.mrf.mxu0
        %1719 = vmatprep.mubr.bf16.mxu0 0
        %1720 = vmatmul.mubr.bf16.gmra.mxu0 %v1674
        %v1721 = vpop.f32.mrf.mxu0
        %v1722 = vadd.f32 %v991, %v1721
        %v1723 = vpop.f32.mrf.mxu0
        %v1724 = vpop.f32.mrf.mxu0
        %v1725 = vadd.f32 %v992, %v1724
        %v1726 = vpop.f32.mrf.mxu0
        %1727 = vmatprep.mubr.bf16.mxu0 0
        %1728 = vmatmul.mubr.bf16.gmra.mxu0 %v1677
        %v1729 = vpop.f32.mrf.mxu0
        %v1730 = vadd.f32 %v993, %v1729
        %v1731 = vpop.f32.mrf.mxu0
        %v1732 = vpop.f32.mrf.mxu0
        %v1733 = vpop.f32.mrf.mxu0
        %1734 = vdwg.mxu0
        %v1735 = vsel %vm1275, %v1714, -inf
        %1736 = vmax.xlane.f32.xlu0 %v1735
        %v1737 = vpop.xlane.xlu0 %1736
        %v1738 = vsel %vm1275, %v1717, -inf
        %1739 = vmax.xlane.f32.xlu0 %v1738
        %v1740 = vpop.xlane.xlu0 %1739
        %v1741 = vsel %vm1275, %v1722, -inf
        %1742 = vmax.xlane.f32.xlu0 %v1741
        %v1743 = vpop.xlane.xlu0 %1742
        %v1744 = vsel %vm1275, %v1725, -inf
        %1745 = vmax.xlane.f32.xlu0 %v1744
        %v1746 = vpop.xlane.xlu0 %1745
        %v1747 = vsel %vm1275, %v1730, -inf
        %1748 = vmax.xlane.f32.xlu0 %v1747
        %v1749 = vpop.xlane.xlu0 %1748
        %v1750 = vsub.f32 %v1714, %v1737
        %v1751 = vsub.f32 %v1717, %v1740
        %v1752 = vsub.f32 %v1722, %v1743
        %v1753 = vsub.f32 %v1725, %v1746
        %v1754 = vsub.f32 %v1730, %v1749
        %v1755 = vmul.f32 %v1750, 1.442695
        %v1756 = vpow.pop %v1755
        %v1757 = vmul.f32 %v1751, 1.442695
        %v1758 = vpow.pop %v1757
        %v1759 = vmul.f32 %v1752, 1.442695
        %v1760 = vpow.pop %v1759
        %v1761 = vmul.f32 %v1753, 1.442695
        %v1762 = vpow.pop %v1761
        %v1763 = vmul.f32 %v1754, 1.442695
        %v1764 = vpow.pop %v1763
        %v1765 = vsel %vm1275, %v1756, 0.0
        %1766 = vadd.xlane.f32.xlu0 %v1765
        %v1767 = vpop.xlane.xlu0 %1766
        %v1768 = vsel %vm1275, %v1758, 0.0
        %1769 = vadd.xlane.f32.xlu0 %v1768
        %v1770 = vpop.xlane.xlu0 %1769
        %v1771 = vsel %vm1275, %v1760, 0.0
        %1772 = vadd.xlane.f32.xlu0 %v1771
        %v1773 = vpop.xlane.xlu0 %1772
        %v1774 = vsel %vm1275, %v1762, 0.0
        %1775 = vadd.xlane.f32.xlu0 %v1774
        %v1776 = vpop.xlane.xlu0 %1775
        %v1777 = vsel %vm1275, %v1764, 0.0
        %1778 = vadd.xlane.f32.xlu0 %v1777
        %v1779 = vpop.xlane.xlu0 %1778
        %v1780 = vrcp.pop %v1767
        %v1781 = vrcp.pop %v1770
        %v1782 = vrcp.pop %v1773
        %v1783 = vrcp.pop %v1776
        %v1784 = vrcp.pop %v1779
        %v1785 = vmul.f32 %v1756, %v1780
        %v1786 = vmul.f32 %v1758, %v1781
        %v1787 = vmul.f32 %v1760, %v1782
        %v1788 = vmul.f32 %v1762, %v1783
        %v1789 = vmul.f32 %v1764, %v1784
        %v1790 = vpack.c.bf16 %v1786, %v1785
        %v1791 = vpack.c.bf16 %v1788, %v1787
        %v1792 = vpack.c.bf16 %v1789, %v1789
        %1793 = vrot.lane.b32.xlu0 %v1660, 64
        %v1794 = vpop.permute.xlu0 %1793
        %v1796 = vmul.f32 %v1153, %v1794
        %v1797 = vmul.f32 %v1156, %v1794
        %v1798 = vmul.f32 %v1161, %v1794
        %v1799 = vmul.f32 %v1164, %v1794
        %v1800 = vmul.f32 %v1169, %v1794
        %v1801 = vpack.c.bf16 %v1797, %v1796
        %v1802 = vpack.c.bf16 %v1799, %v1798
        %v1803 = vpack.c.bf16 %v1800, %v1800
        %1807 = vrot.lane.b32.xlu0 %v1801, 64
        %v1808 = vpop.permute.xlu0 %1807
        %1809 = vrot.lane.b32.xlu0 %v1802, 64
        %v1810 = vpop.permute.xlu0 %1809
        %1811 = vrot.lane.b32.xlu0 %v1803, 64
        %v1812 = vpop.permute.xlu0 %1811
        %v1816 = vsel %vm1275, %v1790, 0
        %v1819 = vsel %vm1275, %v1791, 0
        %v1822 = vsel %vm1275, %v1792, 0
        %v1825 = vsel %vm1515, %v1812, 0
        %1827 = vmatprep.subr.bf16.mxu0 0
        %1828 = vmatpush1.bf16.msra.mxu0 0
        %1829 = vmatprep.subr.bf16.mxu0 0
        %1830 = vmatpush1.bf16.msra.mxu0 0
        %1831 = vmatprep.subr.bf16.mxu0 0
        %1832 = vmatpush1.bf16.msra.mxu0 0
        %1833 = vmatprep.subr.bf16.mxu0 0
        %1834 = vmatpush1.bf16.msra.mxu0 0
        %1835 = vmatprep.subr.bf16.mxu0 0
        %1836 = vmatpush1.bf16.msra.mxu0 0
        %1837 = vmatprep.subr.bf16.mxu0 0
        %1838 = vmatpush1.bf16.msra.mxu0 %v1825
        %1839 = vmatprep.subr.bf16.mxu0 0
        %1840 = vmatpush1.bf16.msra.mxu0 %v1810
        %1841 = vmatprep.subr.bf16.mxu0 0
        %1842 = vmatpush1.bf16.msra.mxu0 %v1808
        %1843 = vmatprep.subr.bf16.mxu0 0
        %1844 = vmatpush2.bf16.msra.mxu0 0
        %1845 = vmatprep.subr.bf16.mxu0 0
        %1846 = vmatpush2.bf16.msra.mxu0 0
        %1847 = vmatprep.subr.bf16.mxu0 0
        %1848 = vmatpush2.bf16.msra.mxu0 0
        %1849 = vmatprep.subr.bf16.mxu0 0
        %1850 = vmatpush2.bf16.msra.mxu0 0
        %1851 = vmatprep.subr.bf16.mxu0 0
        %1852 = vmatpush2.bf16.msra.mxu0 0
        %1853 = vmatprep.subr.bf16.mxu0 0
        %1854 = vmatpush2.bf16.msra.mxu0 0
        %1855 = vmatprep.subr.bf16.mxu0 0
        %1856 = vmatpush2.bf16.msra.mxu0 0
        %1857 = vmatprep.subr.bf16.mxu0 0
        %1858 = vmatpush2.bf16.msra.mxu0 0
        %1859 = vmatprep.mubr.bf16.mxu0 0
        %1860 = vmatmul.mubr.bf16.gmra.mxu0 %v1816
        %v1861 = vpop.f32.mrf.mxu0
        %v1862 = vadd.f32 0.0, %v1861
        %v1863 = vpop.f32.mrf.mxu0
        %v1864 = vpop.f32.mrf.mxu0
        %v1865 = vadd.f32 0.0, %v1864
        %v1866 = vpop.f32.mrf.mxu0
        %1867 = vmatprep.mubr.bf16.mxu0 0
        %1868 = vmatmul.mubr.bf16.gmra.mxu0 %v1819
        %v1869 = vpop.f32.mrf.mxu0
        %v1870 = vadd.f32 0.0, %v1869
        %v1871 = vpop.f32.mrf.mxu0
        %v1872 = vpop.f32.mrf.mxu0
        %v1873 = vadd.f32 0.0, %v1872
        %v1874 = vpop.f32.mrf.mxu0
        %1875 = vmatprep.mubr.bf16.mxu0 0
        %1876 = vmatmul.mubr.bf16.gmra.mxu0 %v1822
        %v1877 = vpop.f32.mrf.mxu0
        %v1878 = vadd.f32 0.0, %v1877
        %v1879 = vpop.f32.mrf.mxu0
        %v1880 = vpop.f32.mrf.mxu0
        %v1881 = vpop.f32.mrf.mxu0
        %1882 = vdwg.mxu0
        %v1883 = vadd.f32 %v1633, %v1862
        %v1884 = vadd.f32 %v1636, %v1865
        %v1885 = vadd.f32 %v1641, %v1870
        %v1886 = vadd.f32 %v1644, %v1873
        %v1887 = vadd.f32 %v1649, %v1878
        %s1888 = scalar_lea.vmem %s4, 3
        %v1889 = vld [vmem:[%s1888] sm:$0x1]
        %v1891 = vlaneseq
        %v1892 = vshrl.u32 %v1891, 7
        %v1893 = vsub.s32 0, %v1892
        %v1894 = vrot.slane %v1889, %v1893
        %v1896 = vmul.f32 %v1153, %v1894
        %v1897 = vmul.f32 %v1156, %v1894
        %v1898 = vmul.f32 %v1161, %v1894
        %v1899 = vmul.f32 %v1164, %v1894
        %v1900 = vmul.f32 %v1169, %v1894
        %v1901 = vpack.c.bf16 %v1897, %v1896
        %v1902 = vpack.c.bf16 %v1899, %v1898
        %v1903 = vpack.c.bf16 %v1900, %v1900
        %v1905 = vsel %vm900, %v1901, 0
        %v1908 = vsel %vm900, %v1902, 0
        %v1911 = vsel %vm900, %v1903, 0
        %1913 = vmatprep.subr.bf16.mxu0 0
        %1914 = vmatpush1.bf16.xpose.msra.mxu0 0
        %1915 = vmatprep.subr.bf16.mxu0 0
        %1916 = vmatpush1.bf16.xpose.msra.mxu0 0
        %1917 = vmatprep.subr.bf16.mxu0 0
        %1918 = vmatpush1.bf16.xpose.msra.mxu0 0
        %1919 = vmatprep.subr.bf16.mxu0 0
        %1920 = vmatpush1.bf16.xpose.msra.mxu0 0
        %1921 = vmatprep.subr.bf16.mxu0 0
        %1922 = vmatpush1.bf16.xpose.msra.mxu0 0
        %1923 = vmatprep.subr.bf16.mxu0 0
        %1924 = vmatpush1.bf16.xpose.msra.mxu0 %v1217
        %1925 = vmatprep.subr.bf16.mxu0 0
        %1926 = vmatpush1.bf16.xpose.msra.mxu0 %v1214
        %1927 = vmatprep.subr.bf16.mxu0 0
        %1928 = vmatpush1.bf16.xpose.msra.mxu0 %v1211
        %1929 = vmatprep.subr.bf16.mxu0 0
        %1930 = vmatpush2.bf16.xpose.msra.mxu0 0
        %1931 = vmatprep.subr.bf16.mxu0 0
        %1932 = vmatpush2.bf16.xpose.msra.mxu0 0
        %1933 = vmatprep.subr.bf16.mxu0 0
        %1934 = vmatpush2.bf16.xpose.msra.mxu0 0
        %1935 = vmatprep.subr.bf16.mxu0 0
        %1936 = vmatpush2.bf16.xpose.msra.mxu0 0
        %1937 = vmatprep.subr.bf16.mxu0 0
        %1938 = vmatpush2.bf16.xpose.msra.mxu0 0
        %1939 = vmatprep.subr.bf16.mxu0 0
        %1940 = vmatpush2.bf16.xpose.msra.mxu0 0
        %1941 = vmatprep.subr.bf16.mxu0 0
        %1942 = vmatpush2.bf16.xpose.msra.mxu0 0
        %1943 = vmatprep.subr.bf16.mxu0 0
        %1944 = vmatpush2.bf16.xpose.msra.mxu0 0
        %1945 = vmatprep.mubr.bf16.mxu0 0
        %1946 = vmatmul.mubr.bf16.gmra.mxu0 %v1905
        %v1947 = vpop.f32.mrf.mxu0
        %v1948 = vadd.f32 %v989, %v1947
        %v1949 = vpop.f32.mrf.mxu0
        %v1950 = vpop.f32.mrf.mxu0
        %v1951 = vadd.f32 %v990, %v1950
        %v1952 = vpop.f32.mrf.mxu0
        %1953 = vmatprep.mubr.bf16.mxu0 0
        %1954 = vmatmul.mubr.bf16.gmra.mxu0 %v1908
        %v1955 = vpop.f32.mrf.mxu0
        %v1956 = vadd.f32 %v991, %v1955
        %v1957 = vpop.f32.mrf.mxu0
        %v1958 = vpop.f32.mrf.mxu0
        %v1959 = vadd.f32 %v992, %v1958
        %v1960 = vpop.f32.mrf.mxu0
        %1961 = vmatprep.mubr.bf16.mxu0 0
        %1962 = vmatmul.mubr.bf16.gmra.mxu0 %v1911
        %v1963 = vpop.f32.mrf.mxu0
        %v1964 = vadd.f32 %v993, %v1963
        %v1965 = vpop.f32.mrf.mxu0
        %v1966 = vpop.f32.mrf.mxu0
        %v1967 = vpop.f32.mrf.mxu0
        %1968 = vdwg.mxu0
        %v1969 = vsel %vm1275, %v1948, -inf
        %1970 = vmax.xlane.f32.xlu0 %v1969
        %v1971 = vpop.xlane.xlu0 %1970
        %v1972 = vsel %vm1275, %v1951, -inf
        %1973 = vmax.xlane.f32.xlu0 %v1972
        %v1974 = vpop.xlane.xlu0 %1973
        %v1975 = vsel %vm1275, %v1956, -inf
        %1976 = vmax.xlane.f32.xlu0 %v1975
        %v1977 = vpop.xlane.xlu0 %1976
        %v1978 = vsel %vm1275, %v1959, -inf
        %1979 = vmax.xlane.f32.xlu0 %v1978
        %v1980 = vpop.xlane.xlu0 %1979
        %v1981 = vsel %vm1275, %v1964, -inf
        %1982 = vmax.xlane.f32.xlu0 %v1981
        %v1983 = vpop.xlane.xlu0 %1982
        %v1984 = vsub.f32 %v1948, %v1971
        %v1985 = vsub.f32 %v1951, %v1974
        %v1986 = vsub.f32 %v1956, %v1977
        %v1987 = vsub.f32 %v1959, %v1980
        %v1988 = vsub.f32 %v1964, %v1983
        %v1989 = vmul.f32 %v1984, 1.442695
        %v1990 = vpow.pop %v1989
        %v1991 = vmul.f32 %v1985, 1.442695
        %v1992 = vpow.pop %v1991
        %v1993 = vmul.f32 %v1986, 1.442695
        %v1994 = vpow.pop %v1993
        %v1995 = vmul.f32 %v1987, 1.442695
        %v1996 = vpow.pop %v1995
        %v1997 = vmul.f32 %v1988, 1.442695
        %v1998 = vpow.pop %v1997
        %v1999 = vsel %vm1275, %v1990, 0.0
        %2000 = vadd.xlane.f32.xlu0 %v1999
        %v2001 = vpop.xlane.xlu0 %2000
        %v2002 = vsel %vm1275, %v1992, 0.0
        %2003 = vadd.xlane.f32.xlu0 %v2002
        %v2004 = vpop.xlane.xlu0 %2003
        %v2005 = vsel %vm1275, %v1994, 0.0
        %2006 = vadd.xlane.f32.xlu0 %v2005
        %v2007 = vpop.xlane.xlu0 %2006
        %v2008 = vsel %vm1275, %v1996, 0.0
        %2009 = vadd.xlane.f32.xlu0 %v2008
        %v2010 = vpop.xlane.xlu0 %2009
        %v2011 = vsel %vm1275, %v1998, 0.0
        %2012 = vadd.xlane.f32.xlu0 %v2011
        %v2013 = vpop.xlane.xlu0 %2012
        %v2014 = vrcp.pop %v2001
        %v2015 = vrcp.pop %v2004
        %v2016 = vrcp.pop %v2007
        %v2017 = vrcp.pop %v2010
        %v2018 = vrcp.pop %v2013
        %v2019 = vmul.f32 %v1990, %v2014
        %v2020 = vmul.f32 %v1992, %v2015
        %v2021 = vmul.f32 %v1994, %v2016
        %v2022 = vmul.f32 %v1996, %v2017
        %v2023 = vmul.f32 %v1998, %v2018
        %v2024 = vpack.c.bf16 %v2020, %v2019
        %v2025 = vpack.c.bf16 %v2022, %v2021
        %v2026 = vpack.c.bf16 %v2023, %v2023
        %2027 = vrot.lane.b32.xlu0 %v1894, 64
        %v2028 = vpop.permute.xlu0 %2027
        %v2030 = vmul.f32 %v1153, %v2028
        %v2031 = vmul.f32 %v1156, %v2028
        %v2032 = vmul.f32 %v1161, %v2028
        %v2033 = vmul.f32 %v1164, %v2028
        %v2034 = vmul.f32 %v1169, %v2028
        %v2035 = vpack.c.bf16 %v2031, %v2030
        %v2036 = vpack.c.bf16 %v2033, %v2032
        %v2037 = vpack.c.bf16 %v2034, %v2034
        %2041 = vrot.lane.b32.xlu0 %v2035, 64
        %v2042 = vpop.permute.xlu0 %2041
        %2043 = vrot.lane.b32.xlu0 %v2036, 64
        %v2044 = vpop.permute.xlu0 %2043
        %2045 = vrot.lane.b32.xlu0 %v2037, 64
        %v2046 = vpop.permute.xlu0 %2045
        %v2050 = vsel %vm1275, %v2024, 0
        %v2053 = vsel %vm1275, %v2025, 0
        %v2056 = vsel %vm1275, %v2026, 0
        %v2059 = vsel %vm1515, %v2046, 0
        %2061 = vmatprep.subr.bf16.mxu0 0
        %2062 = vmatpush1.bf16.msra.mxu0 0
        %2063 = vmatprep.subr.bf16.mxu0 0
        %2064 = vmatpush1.bf16.msra.mxu0 0
        %2065 = vmatprep.subr.bf16.mxu0 0
        %2066 = vmatpush1.bf16.msra.mxu0 0
        %2067 = vmatprep.subr.bf16.mxu0 0
        %2068 = vmatpush1.bf16.msra.mxu0 0
        %2069 = vmatprep.subr.bf16.mxu0 0
        %2070 = vmatpush1.bf16.msra.mxu0 0
        %2071 = vmatprep.subr.bf16.mxu0 0
        %2072 = vmatpush1.bf16.msra.mxu0 %v2059
        %2073 = vmatprep.subr.bf16.mxu0 0
        %2074 = vmatpush1.bf16.msra.mxu0 %v2044
        %2075 = vmatprep.subr.bf16.mxu0 0
        %2076 = vmatpush1.bf16.msra.mxu0 %v2042
        %2077 = vmatprep.subr.bf16.mxu0 0
        %2078 = vmatpush2.bf16.msra.mxu0 0
        %2079 = vmatprep.subr.bf16.mxu0 0
        %2080 = vmatpush2.bf16.msra.mxu0 0
        %2081 = vmatprep.subr.bf16.mxu0 0
        %2082 = vmatpush2.bf16.msra.mxu0 0
        %2083 = vmatprep.subr.bf16.mxu0 0
        %2084 = vmatpush2.bf16.msra.mxu0 0
        %2085 = vmatprep.subr.bf16.mxu0 0
        %2086 = vmatpush2.bf16.msra.mxu0 0
        %2087 = vmatprep.subr.bf16.mxu0 0
        %2088 = vmatpush2.bf16.msra.mxu0 0
        %2089 = vmatprep.subr.bf16.mxu0 0
        %2090 = vmatpush2.bf16.msra.mxu0 0
        %2091 = vmatprep.subr.bf16.mxu0 0
        %2092 = vmatpush2.bf16.msra.mxu0 0
        %2093 = vmatprep.mubr.bf16.mxu0 0
        %2094 = vmatmul.mubr.bf16.gmra.mxu0 %v2050
        %v2095 = vpop.f32.mrf.mxu0
        %v2096 = vadd.f32 0.0, %v2095
        %v2097 = vpop.f32.mrf.mxu0
        %v2098 = vpop.f32.mrf.mxu0
        %v2099 = vadd.f32 0.0, %v2098
        %v2100 = vpop.f32.mrf.mxu0
        %2101 = vmatprep.mubr.bf16.mxu0 0
        %2102 = vmatmul.mubr.bf16.gmra.mxu0 %v2053
        %v2103 = vpop.f32.mrf.mxu0
        %v2104 = vadd.f32 0.0, %v2103
        %v2105 = vpop.f32.mrf.mxu0
        %v2106 = vpop.f32.mrf.mxu0
        %v2107 = vadd.f32 0.0, %v2106
        %v2108 = vpop.f32.mrf.mxu0
        %2109 = vmatprep.mubr.bf16.mxu0 0
        %2110 = vmatmul.mubr.bf16.gmra.mxu0 %v2056
        %v2111 = vpop.f32.mrf.mxu0
        %v2112 = vadd.f32 0.0, %v2111
        %v2113 = vpop.f32.mrf.mxu0
        %v2114 = vpop.f32.mrf.mxu0
        %v2115 = vpop.f32.mrf.mxu0
        %2116 = vdwg.mxu0
        %v2117 = vadd.f32 %v1883, %v2096
        %v2118 = vadd.f32 %v1884, %v2099
        %v2119 = vadd.f32 %v1885, %v2104
        %v2120 = vadd.f32 %v1886, %v2107
        %v2121 = vadd.f32 %v1887, %v2112
        %v2122 = vpack.c.bf16 %v2118, %v2117
        %v2123 = vpack.c.bf16 %v2120, %v2119
        %v2124 = vpack.c.bf16 %v2121, %v2121
        %v2125 = vld [vmem:[%s12] sm:$0xf]
        %v2126 = vld [vmem:[%s12 + $0x4] sm:$0xf]
        %v2127 = vld [vmem:[%s12 + $0x8] sm:$0xf]
        %v2128 = vld [vmem:[%s12 + $0xc] sm:$0xf]
        %v2129 = vld [vmem:[%s13] sm:$0x1]
        %v2131 = vlaneseq
        %v2132 = vshrl.u32 %v2131, 7
        %v2133 = vsub.s32 0, %v2132
        %v2134 = vrot.slane %v2129, %v2133
        %v2140 = vunpack.c.l.b16 %v2125
        %v2141 = vunpack.c.l.b16 %v2126
        %v2142 = vunpack.c.l.b16 %v2127
        %v2143 = vunpack.c.l.b16 %v2128
        %v2144 = vpack.c.b16 %v2141, %v2140
        %v2145 = vpack.c.b16 %v2143, %v2142
        %v2149 = vsel %vm900, %v2122, 0
        %v2152 = vsel %vm900, %v2123, 0
        %v2155 = vsel %vm900, %v2124, 0
        %2157 = vmatprep.subr.bf16.mxu0 0
        %2158 = vmatpush1.bf16.msra.mxu0 0
        %2159 = vmatprep.subr.bf16.mxu0 0
        %2160 = vmatpush1.bf16.msra.mxu0 0
        %2161 = vmatprep.subr.bf16.mxu0 0
        %2162 = vmatpush1.bf16.msra.mxu0 0
        %2163 = vmatprep.subr.bf16.mxu0 0
        %2164 = vmatpush1.bf16.msra.mxu0 0
        %2165 = vmatprep.subr.bf16.mxu0 0
        %2166 = vmatpush1.bf16.msra.mxu0 0
        %2167 = vmatprep.subr.bf16.mxu0 0
        %2168 = vmatpush1.bf16.msra.mxu0 0
        %2169 = vmatprep.subr.bf16.mxu0 0
        %2170 = vmatpush1.bf16.msra.mxu0 %v2145
        %2171 = vmatprep.subr.bf16.mxu0 0
        %2172 = vmatpush1.bf16.msra.mxu0 %v2144
        %2173 = vmatprep.subr.bf16.mxu0 0
        %2174 = vmatpush2.bf16.msra.mxu0 0
        %2175 = vmatprep.subr.bf16.mxu0 0
        %2176 = vmatpush2.bf16.msra.mxu0 0
        %2177 = vmatprep.subr.bf16.mxu0 0
        %2178 = vmatpush2.bf16.msra.mxu0 0
        %2179 = vmatprep.subr.bf16.mxu0 0
        %2180 = vmatpush2.bf16.msra.mxu0 0
        %2181 = vmatprep.subr.bf16.mxu0 0
        %2182 = vmatpush2.bf16.msra.mxu0 0
        %2183 = vmatprep.subr.bf16.mxu0 0
        %2184 = vmatpush2.bf16.msra.mxu0 0
        %2185 = vmatprep.subr.bf16.mxu0 0
        %2186 = vmatpush2.bf16.msra.mxu0 0
        %2187 = vmatprep.subr.bf16.mxu0 0
        %2188 = vmatpush2.bf16.msra.mxu0 0
        %2189 = vmatprep.mubr.bf16.mxu0 0
        %2190 = vmatmul.mubr.bf16.gmra.mxu0 %v2149
        %v2191 = vpop.f32.mrf.mxu0
        %v2192 = vadd.f32 %v2134, %v2191
        %v2193 = vpop.f32.mrf.mxu0
        %v2194 = vpop.f32.mrf.mxu0
        %v2195 = vadd.f32 %v2134, %v2194
        %v2196 = vpop.f32.mrf.mxu0
        %2197 = vmatprep.mubr.bf16.mxu0 0
        %2198 = vmatmul.mubr.bf16.gmra.mxu0 %v2152
        %v2199 = vpop.f32.mrf.mxu0
        %v2200 = vadd.f32 %v2134, %v2199
        %v2201 = vpop.f32.mrf.mxu0
        %v2202 = vpop.f32.mrf.mxu0
        %v2203 = vadd.f32 %v2134, %v2202
        %v2204 = vpop.f32.mrf.mxu0
        %2205 = vmatprep.mubr.bf16.mxu0 0
        %2206 = vmatmul.mubr.bf16.gmra.mxu0 %v2155
        %v2207 = vpop.f32.mrf.mxu0
        %v2208 = vadd.f32 %v2134, %v2207
        %v2209 = vpop.f32.mrf.mxu0
        %v2210 = vpop.f32.mrf.mxu0
        %v2211 = vpop.f32.mrf.mxu0
        %2212 = vdwg.mxu0
        %v2213 = vadd.f32 %v2192, %v984
        %v2214 = vadd.f32 %v2195, %v985
        %v2215 = vadd.f32 %v2200, %v986
        %v2216 = vadd.f32 %v2203, %v987
        %v2217 = vadd.f32 %v2208, %v988
        %v2218 = vld [vmem:[%s14] sm:$0x1]
        %v2219 = vld [vmem:[%s15] sm:$0x1]
        %v2220 = vsel %vm900, %v2213, 0.0
        %2221 = vadd.xlane.f32.xlu0 %v2220
        %v2222 = vpop.xlane.xlu0 %2221
        %v2223 = vsel %vm900, %v2214, 0.0
        %2224 = vadd.xlane.f32.xlu0 %v2223
        %v2225 = vpop.xlane.xlu0 %2224
        %v2226 = vsel %vm900, %v2215, 0.0
        %2227 = vadd.xlane.f32.xlu0 %v2226
        %v2228 = vpop.xlane.xlu0 %2227
        %v2229 = vsel %vm900, %v2216, 0.0
        %2230 = vadd.xlane.f32.xlu0 %v2229
        %v2231 = vpop.xlane.xlu0 %2230
        %v2232 = vsel %vm900, %v2217, 0.0
        %2233 = vadd.xlane.f32.xlu0 %v2232
        %v2234 = vpop.xlane.xlu0 %2233
        %v2235 = vmul.f32 %v2222, %v916
        %v2236 = vmul.f32 %v2225, %v916
        %v2237 = vmul.f32 %v2228, %v916
        %v2238 = vmul.f32 %v2231, %v916
        %v2239 = vmul.f32 %v2234, %v916
        %v2240 = vsub.f32 %v2213, %v2235
        %v2241 = vsub.f32 %v2214, %v2236
        %v2242 = vsub.f32 %v2215, %v2237
        %v2243 = vsub.f32 %v2216, %v2238
        %v2244 = vsub.f32 %v2217, %v2239
        %v2245 = vmul.f32 %v2240, %v2240
        %v2246 = vmul.f32 %v2241, %v2241
        %v2247 = vmul.f32 %v2242, %v2242
        %v2248 = vmul.f32 %v2243, %v2243
        %v2249 = vmul.f32 %v2244, %v2244
        %v2250 = vsel %vm900, %v2245, 0.0
        %2251 = vadd.xlane.f32.xlu0 %v2250
        %v2252 = vpop.xlane.xlu0 %2251
        %v2253 = vsel %vm900, %v2246, 0.0
        %2254 = vadd.xlane.f32.xlu0 %v2253
        %v2255 = vpop.xlane.xlu0 %2254
        %v2256 = vsel %vm900, %v2247, 0.0
        %2257 = vadd.xlane.f32.xlu0 %v2256
        %v2258 = vpop.xlane.xlu0 %2257
        %v2259 = vsel %vm900, %v2248, 0.0
        %2260 = vadd.xlane.f32.xlu0 %v2259
        %v2261 = vpop.xlane.xlu0 %2260
        %v2262 = vsel %vm900, %v2249, 0.0
        %2263 = vadd.xlane.f32.xlu0 %v2262
        %v2264 = vpop.xlane.xlu0 %2263
        %v2265 = vmul.f32 %v2252, %v916
        %v2266 = vmul.f32 %v2255, %v916
        %v2267 = vmul.f32 %v2258, %v916
        %v2268 = vmul.f32 %v2261, %v916
        %v2269 = vmul.f32 %v2264, %v916
        %v2270 = vadd.f32 %v2265, 1e-05
        %v2271 = vadd.f32 %v2266, 1e-05
        %v2272 = vadd.f32 %v2267, 1e-05
        %v2273 = vadd.f32 %v2268, 1e-05
        %v2274 = vadd.f32 %v2269, 1e-05
        %v2275 = vrsqrt.pop %v2270
        %v2276 = vrsqrt.pop %v2271
        %v2277 = vrsqrt.pop %v2272
        %v2278 = vrsqrt.pop %v2273
        %v2279 = vrsqrt.pop %v2274
        %v2280 = vmul.f32 %v2240, %v2275
        %v2281 = vmul.f32 %v2241, %v2276
        %v2282 = vmul.f32 %v2242, %v2277
        %v2283 = vmul.f32 %v2243, %v2278
        %v2284 = vmul.f32 %v2244, %v2279
        %v2286 = vlaneseq
        %v2287 = vshrl.u32 %v2286, 7
        %v2288 = vsub.s32 0, %v2287
        %v2289 = vrot.slane %v2218, %v2288
        %v2291 = vmul.f32 %v2280, %v2289
        %v2292 = vmul.f32 %v2281, %v2289
        %v2293 = vmul.f32 %v2282, %v2289
        %v2294 = vmul.f32 %v2283, %v2289
        %v2295 = vmul.f32 %v2284, %v2289
        %v2297 = vlaneseq
        %v2298 = vshrl.u32 %v2297, 7
        %v2299 = vsub.s32 0, %v2298
        %v2300 = vrot.slane %v2219, %v2299
        %v2302 = vadd.f32 %v2291, %v2300
        %v2303 = vadd.f32 %v2292, %v2300
        %v2304 = vadd.f32 %v2293, %v2300
        %v2305 = vadd.f32 %v2294, %v2300
        %v2306 = vadd.f32 %v2295, %v2300
        %v2307 = vpack.c.bf16 %v2303, %v2302
        %v2308 = vpack.c.bf16 %v2305, %v2304
        %v2309 = vpack.c.bf16 %v2306, %v2306
        %v2310 = vld [vmem:[%s16] sm:$0xf]
        %v2311 = vld [vmem:[%s16 + $0x4] sm:$0xf]
        %v2312 = vld [vmem:[%s16 + $0x8] sm:$0xf]
        %v2313 = vld [vmem:[%s16 + $0xc] sm:$0xf]
        %v2314 = vld [vmem:[%s17] sm:$0x1]
        %v2316 = vlaneseq
        %v2317 = vshrl.u32 %v2316, 7
        %v2318 = vsub.s32 0, %v2317
        %v2319 = vrot.slane %v2314, %v2318
        %v2325 = vunpack.c.l.b16 %v2310
        %v2326 = vunpack.c.l.b16 %v2311
        %v2327 = vunpack.c.l.b16 %v2312
        %v2328 = vunpack.c.l.b16 %v2313
        %v2329 = vpack.c.b16 %v2326, %v2325
        %v2330 = vpack.c.b16 %v2328, %v2327
        %v2334 = vsel %vm900, %v2307, 0
        %v2337 = vsel %vm900, %v2308, 0
        %v2340 = vsel %vm900, %v2309, 0
        %2342 = vmatprep.subr.bf16.mxu0 0
        %2343 = vmatpush1.bf16.msra.mxu0 0
        %2344 = vmatprep.subr.bf16.mxu0 0
        %2345 = vmatpush1.bf16.msra.mxu0 0
        %2346 = vmatprep.subr.bf16.mxu0 0
        %2347 = vmatpush1.bf16.msra.mxu0 0
        %2348 = vmatprep.subr.bf16.mxu0 0
        %2349 = vmatpush1.bf16.msra.mxu0 0
        %2350 = vmatprep.subr.bf16.mxu0 0
        %2351 = vmatpush1.bf16.msra.mxu0 0
        %2352 = vmatprep.subr.bf16.mxu0 0
        %2353 = vmatpush1.bf16.msra.mxu0 0
        %2354 = vmatprep.subr.bf16.mxu0 0
        %2355 = vmatpush1.bf16.msra.mxu0 %v2330
        %2356 = vmatprep.subr.bf16.mxu0 0
        %2357 = vmatpush1.bf16.msra.mxu0 %v2329
        %2358 = vmatprep.subr.bf16.mxu0 0
        %2359 = vmatpush2.bf16.msra.mxu0 0
        %2360 = vmatprep.subr.bf16.mxu0 0
        %2361 = vmatpush2.bf16.msra.mxu0 0
        %2362 = vmatprep.subr.bf16.mxu0 0
        %2363 = vmatpush2.bf16.msra.mxu0 0
        %2364 = vmatprep.subr.bf16.mxu0 0
        %2365 = vmatpush2.bf16.msra.mxu0 0
        %2366 = vmatprep.subr.bf16.mxu0 0
        %2367 = vmatpush2.bf16.msra.mxu0 0
        %2368 = vmatprep.subr.bf16.mxu0 0
        %2369 = vmatpush2.bf16.msra.mxu0 0
        %2370 = vmatprep.subr.bf16.mxu0 0
        %2371 = vmatpush2.bf16.msra.mxu0 0
        %2372 = vmatprep.subr.bf16.mxu0 0
        %2373 = vmatpush2.bf16.msra.mxu0 0
        %2374 = vmatprep.mubr.bf16.mxu0 0
        %2375 = vmatmul.mubr.bf16.gmra.mxu0 %v2334
        %v2376 = vpop.f32.mrf.mxu0
        %v2377 = vadd.f32 %v2319, %v2376
        %v2378 = vpop.f32.mrf.mxu0
        %v2379 = vpop.f32.mrf.mxu0
        %v2380 = vadd.f32 %v2319, %v2379
        %v2381 = vpop.f32.mrf.mxu0
        %2382 = vmatprep.mubr.bf16.mxu0 0
        %2383 = vmatmul.mubr.bf16.gmra.mxu0 %v2337
        %v2384 = vpop.f32.mrf.mxu0
        %v2385 = vadd.f32 %v2319, %v2384
        %v2386 = vpop.f32.mrf.mxu0
        %v2387 = vpop.f32.mrf.mxu0
        %v2388 = vadd.f32 %v2319, %v2387
        %v2389 = vpop.f32.mrf.mxu0
        %2390 = vmatprep.mubr.bf16.mxu0 0
        %2391 = vmatmul.mubr.bf16.gmra.mxu0 %v2340
        %v2392 = vpop.f32.mrf.mxu0
        %v2393 = vadd.f32 %v2319, %v2392
        %v2394 = vpop.f32.mrf.mxu0
        %v2395 = vpop.f32.mrf.mxu0
        %v2396 = vpop.f32.mrf.mxu0
        %2397 = vdwg.mxu0
        %v2398 = vmul.f32 %v2377, 1.702
        %v2399 = vmul.f32 %v2380, 1.702
        %v2400 = vmul.f32 %v2385, 1.702
        %v2401 = vmul.f32 %v2388, 1.702
        %v2402 = vmul.f32 %v2393, 1.702
        %v2403 = vxor.u32 %v2398, 2147483648
        %v2404 = vxor.u32 %v2399, 2147483648
        %v2405 = vxor.u32 %v2400, 2147483648
        %v2406 = vxor.u32 %v2401, 2147483648
        %v2407 = vxor.u32 %v2402, 2147483648
        %v2408 = vmul.f32 %v2403, 1.442695
        %v2409 = vpow.pop %v2408
        %v2410 = vmul.f32 %v2404, 1.442695
        %v2411 = vpow.pop %v2410
        %v2412 = vmul.f32 %v2405, 1.442695
        %v2413 = vpow.pop %v2412
        %v2414 = vmul.f32 %v2406, 1.442695
        %v2415 = vpow.pop %v2414
        %v2416 = vmul.f32 %v2407, 1.442695
        %v2417 = vpow.pop %v2416
        %v2418 = vadd.f32 %v2409, 1.0
        %v2419 = vadd.f32 %v2411, 1.0
        %v2420 = vadd.f32 %v2413, 1.0
        %v2421 = vadd.f32 %v2415, 1.0
        %v2422 = vadd.f32 %v2417, 1.0
        %v2423 = vrcp.pop %v2418
        %v2424 = vmul.f32 1.0, %v2423
        %v2425 = vrcp.pop %v2419
        %v2426 = vmul.f32 1.0, %v2425
        %v2427 = vrcp.pop %v2420
        %v2428 = vmul.f32 1.0, %v2427
        %v2429 = vrcp.pop %v2421
        %v2430 = vmul.f32 1.0, %v2429
        %v2431 = vrcp.pop %v2422
        %v2432 = vmul.f32 1.0, %v2431
        %v2433 = vmul.f32 %v2377, %v2424
        %v2434 = vmul.f32 %v2380, %v2426
        %v2435 = vmul.f32 %v2385, %v2428
        %v2436 = vmul.f32 %v2388, %v2430
        %v2437 = vmul.f32 %v2393, %v2432
        %v2438 = vpack.c.bf16 %v2434, %v2433
        %v2439 = vpack.c.bf16 %v2436, %v2435
        %v2440 = vpack.c.bf16 %v2437, %v2437
        %v2441 = vld [vmem:[%s18] sm:$0xf]
        %v2442 = vld [vmem:[%s18 + $0x4] sm:$0xf]
        %v2443 = vld [vmem:[%s18 + $0x8] sm:$0xf]
        %v2444 = vld [vmem:[%s18 + $0xc] sm:$0xf]
        %v2445 = vld [vmem:[%s18 + $0x10] sm:$0xf]
        %v2446 = vld [vmem:[%s18 + $0x14] sm:$0xf]
        %v2447 = vld [vmem:[%s18 + $0x18] sm:$0xf]
        %v2448 = vld [vmem:[%s18 + $0x1c] sm:$0xf]
        %v2449 = vld [vmem:[%s19] sm:$0x1]
        %v2451 = vlaneseq
        %v2452 = vshrl.u32 %v2451, 7
        %v2453 = vsub.s32 0, %v2452
        %v2454 = vrot.slane %v2449, %v2453
        %v2464 = vunpack.c.l.b16 %v2441
        %v2465 = vunpack.c.l.b16 %v2442
        %v2466 = vunpack.c.l.b16 %v2443
        %v2467 = vunpack.c.l.b16 %v2444
        %v2468 = vunpack.c.l.b16 %v2445
        %v2469 = vunpack.c.l.b16 %v2446
        %v2470 = vunpack.c.l.b16 %v2447
        %v2471 = vunpack.c.l.b16 %v2448
        %v2472 = vpack.c.b16 %v2465, %v2464
        %v2473 = vpack.c.b16 %v2467, %v2466
        %v2474 = vpack.c.b16 %v2469, %v2468
        %v2475 = vpack.c.b16 %v2471, %v2470
        %v2481 = vsel %vm832, %v2438, 0
        %v2484 = vsel %vm832, %v2439, 0
        %v2487 = vsel %vm832, %v2440, 0
        %2489 = vmatprep.subr.bf16.mxu0 0
        %2490 = vmatpush1.bf16.msra.mxu0 0
        %2491 = vmatprep.subr.bf16.mxu0 0
        %2492 = vmatpush1.bf16.msra.mxu0 0
        %2493 = vmatprep.subr.bf16.mxu0 0
        %2494 = vmatpush1.bf16.msra.mxu0 0
        %2495 = vmatprep.subr.bf16.mxu0 0
        %2496 = vmatpush1.bf16.msra.mxu0 0
        %2497 = vmatprep.subr.bf16.mxu0 0
        %2498 = vmatpush1.bf16.msra.mxu0 %v2475
        %2499 = vmatprep.subr.bf16.mxu0 0
        %2500 = vmatpush1.bf16.msra.mxu0 %v2474
        %2501 = vmatprep.subr.bf16.mxu0 0
        %2502 = vmatpush1.bf16.msra.mxu0 %v2473
        %2503 = vmatprep.subr.bf16.mxu0 0
        %2504 = vmatpush1.bf16.msra.mxu0 %v2472
        %2505 = vmatprep.subr.bf16.mxu0 0
        %2506 = vmatpush2.bf16.msra.mxu0 0
        %2507 = vmatprep.subr.bf16.mxu0 0
        %2508 = vmatpush2.bf16.msra.mxu0 0
        %2509 = vmatprep.subr.bf16.mxu0 0
        %2510 = vmatpush2.bf16.msra.mxu0 0
        %2511 = vmatprep.subr.bf16.mxu0 0
        %2512 = vmatpush2.bf16.msra.mxu0 0
        %2513 = vmatprep.subr.bf16.mxu0 0
        %2514 = vmatpush2.bf16.msra.mxu0 0
        %2515 = vmatprep.subr.bf16.mxu0 0
        %2516 = vmatpush2.bf16.msra.mxu0 0
        %2517 = vmatprep.subr.bf16.mxu0 0
        %2518 = vmatpush2.bf16.msra.mxu0 0
        %2519 = vmatprep.subr.bf16.mxu0 0
        %2520 = vmatpush2.bf16.msra.mxu0 0
        %2521 = vmatprep.mubr.bf16.mxu0 0
        %2522 = vmatmul.mubr.bf16.gmra.mxu0 %v2481
        %v2523 = vpop.f32.mrf.mxu0
        %v2524 = vadd.f32 %v2454, %v2523
        %v2525 = vpop.f32.mrf.mxu0
        %v2526 = vpop.f32.mrf.mxu0
        %v2527 = vadd.f32 %v2454, %v2526
        %v2528 = vpop.f32.mrf.mxu0
        %2529 = vmatprep.mubr.bf16.mxu0 0
        %2530 = vmatmul.mubr.bf16.gmra.mxu0 %v2484
        %v2531 = vpop.f32.mrf.mxu0
        %v2532 = vadd.f32 %v2454, %v2531
        %v2533 = vpop.f32.mrf.mxu0
        %v2534 = vpop.f32.mrf.mxu0
        %v2535 = vadd.f32 %v2454, %v2534
        %v2536 = vpop.f32.mrf.mxu0
        %2537 = vmatprep.mubr.bf16.mxu0 0
        %2538 = vmatmul.mubr.bf16.gmra.mxu0 %v2487
        %v2539 = vpop.f32.mrf.mxu0
        %v2540 = vadd.f32 %v2454, %v2539
        %v2541 = vpop.f32.mrf.mxu0
        %v2542 = vpop.f32.mrf.mxu0
        %v2543 = vpop.f32.mrf.mxu0
        %2544 = vdwg.mxu0
        %v2545 = vadd.f32 %v2524, %v2213
        %v2546 = vadd.f32 %v2527, %v2214
        %v2547 = vadd.f32 %v2532, %v2215
        %v2548 = vadd.f32 %v2535, %v2216
        %v2549 = vadd.f32 %v2540, %v2217
        %s2550 = scalar_lea.vmem %s8, 1
        %v2551 = vld [vmem:[%s2550] sm:$0x1]
        %s2552 = scalar_lea.vmem %s9, 1
        %v2553 = vld [vmem:[%s2552] sm:$0x1]
        %v2554 = vsel %vm900, %v2545, 0.0
        %2555 = vadd.xlane.f32.xlu0 %v2554
        %v2556 = vpop.xlane.xlu0 %2555
        %v2557 = vsel %vm900, %v2546, 0.0
        %2558 = vadd.xlane.f32.xlu0 %v2557
        %v2559 = vpop.xlane.xlu0 %2558
        %v2560 = vsel %vm900, %v2547, 0.0
        %2561 = vadd.xlane.f32.xlu0 %v2560
        %v2562 = vpop.xlane.xlu0 %2561
        %v2563 = vsel %vm900, %v2548, 0.0
        %2564 = vadd.xlane.f32.xlu0 %v2563
        %v2565 = vpop.xlane.xlu0 %2564
        %v2566 = vsel %vm900, %v2549, 0.0
        %2567 = vadd.xlane.f32.xlu0 %v2566
        %v2568 = vpop.xlane.xlu0 %2567
        %v2569 = vmul.f32 %v2556, %v916
        %v2570 = vmul.f32 %v2559, %v916
        %v2571 = vmul.f32 %v2562, %v916
        %v2572 = vmul.f32 %v2565, %v916
        %v2573 = vmul.f32 %v2568, %v916
        %v2574 = vsub.f32 %v2545, %v2569
        %v2575 = vsub.f32 %v2546, %v2570
        %v2576 = vsub.f32 %v2547, %v2571
        %v2577 = vsub.f32 %v2548, %v2572
        %v2578 = vsub.f32 %v2549, %v2573
        %v2579 = vmul.f32 %v2574, %v2574
        %v2580 = vmul.f32 %v2575, %v2575
        %v2581 = vmul.f32 %v2576, %v2576
        %v2582 = vmul.f32 %v2577, %v2577
        %v2583 = vmul.f32 %v2578, %v2578
        %v2584 = vsel %vm900, %v2579, 0.0
        %2585 = vadd.xlane.f32.xlu0 %v2584
        %v2586 = vpop.xlane.xlu0 %2585
        %v2587 = vsel %vm900, %v2580, 0.0
        %2588 = vadd.xlane.f32.xlu0 %v2587
        %v2589 = vpop.xlane.xlu0 %2588
        %v2590 = vsel %vm900, %v2581, 0.0
        %2591 = vadd.xlane.f32.xlu0 %v2590
        %v2592 = vpop.xlane.xlu0 %2591
        %v2593 = vsel %vm900, %v2582, 0.0
        %2594 = vadd.xlane.f32.xlu0 %v2593
        %v2595 = vpop.xlane.xlu0 %2594
        %v2596 = vsel %vm900, %v2583, 0.0
        %2597 = vadd.xlane.f32.xlu0 %v2596
        %v2598 = vpop.xlane.xlu0 %2597
        %v2599 = vmul.f32 %v2586, %v916
        %v2600 = vmul.f32 %v2589, %v916
        %v2601 = vmul.f32 %v2592, %v916
        %v2602 = vmul.f32 %v2595, %v916
        %v2603 = vmul.f32 %v2598, %v916
        %v2604 = vadd.f32 %v2599, 1e-05
        %v2605 = vadd.f32 %v2600, 1e-05
        %v2606 = vadd.f32 %v2601, 1e-05
        %v2607 = vadd.f32 %v2602, 1e-05
        %v2608 = vadd.f32 %v2603, 1e-05
        %v2609 = vrsqrt.pop %v2604
        %v2610 = vrsqrt.pop %v2605
        %v2611 = vrsqrt.pop %v2606
        %v2612 = vrsqrt.pop %v2607
        %v2613 = vrsqrt.pop %v2608
        %v2614 = vmul.f32 %v2574, %v2609
        %v2615 = vmul.f32 %v2575, %v2610
        %v2616 = vmul.f32 %v2576, %v2611
        %v2617 = vmul.f32 %v2577, %v2612
        %v2618 = vmul.f32 %v2578, %v2613
        %v2620 = vlaneseq
        %v2621 = vshrl.u32 %v2620, 7
        %v2622 = vsub.s32 0, %v2621
        %v2623 = vrot.slane %v2551, %v2622
        %v2625 = vmul.f32 %v2614, %v2623
        %v2626 = vmul.f32 %v2615, %v2623
        %v2627 = vmul.f32 %v2616, %v2623
        %v2628 = vmul.f32 %v2617, %v2623
        %v2629 = vmul.f32 %v2618, %v2623
        %v2631 = vlaneseq
        %v2632 = vshrl.u32 %v2631, 7
        %v2633 = vsub.s32 0, %v2632
        %v2634 = vrot.slane %v2553, %v2633
        %v2636 = vadd.f32 %v2625, %v2634
        %v2637 = vadd.f32 %v2626, %v2634
        %v2638 = vadd.f32 %v2627, %v2634
        %v2639 = vadd.f32 %v2628, %v2634
        %v2640 = vadd.f32 %v2629, %v2634
        %v2641 = vpack.c.bf16 %v2637, %v2636
        %v2642 = vpack.c.bf16 %v2639, %v2638
        %v2643 = vpack.c.bf16 %v2640, %v2640
        %s2644 = scalar_lea.vmem %s10, 16
        %v2645 = vld [vmem:[%s2644] sm:$0xf]
        %v2646 = vld [vmem:[%s2644 + $0x4] sm:$0xf]
        %v2647 = vld [vmem:[%s2644 + $0x8] sm:$0xf]
        %v2648 = vld [vmem:[%s2644 + $0xc] sm:$0xf]
        %s2649 = scalar_lea.vmem %s11, 1
        %v2650 = vld [vmem:[%s2649] sm:$0x1]
        %v2652 = vlaneseq
        %v2653 = vshrl.u32 %v2652, 7
        %v2654 = vsub.s32 0, %v2653
        %v2655 = vrot.slane %v2650, %v2654
        %v2661 = vunpack.c.l.b16 %v2645
        %v2662 = vunpack.c.l.b16 %v2646
        %v2663 = vunpack.c.l.b16 %v2647
        %v2664 = vunpack.c.l.b16 %v2648
        %v2665 = vpack.c.b16 %v2662, %v2661
        %v2666 = vpack.c.b16 %v2664, %v2663
        %v2670 = vsel %vm900, %v2641, 0
        %v2673 = vsel %vm900, %v2642, 0
        %v2676 = vsel %vm900, %v2643, 0
        %2678 = vmatprep.subr.bf16.mxu0 0
        %2679 = vmatpush1.bf16.msra.mxu0 0
        %2680 = vmatprep.subr.bf16.mxu0 0
        %2681 = vmatpush1.bf16.msra.mxu0 0
        %2682 = vmatprep.subr.bf16.mxu0 0
        %2683 = vmatpush1.bf16.msra.mxu0 0
        %2684 = vmatprep.subr.bf16.mxu0 0
        %2685 = vmatpush1.bf16.msra.mxu0 0
        %2686 = vmatprep.subr.bf16.mxu0 0
        %2687 = vmatpush1.bf16.msra.mxu0 0
        %2688 = vmatprep.subr.bf16.mxu0 0
        %2689 = vmatpush1.bf16.msra.mxu0 0
        %2690 = vmatprep.subr.bf16.mxu0 0
        %2691 = vmatpush1.bf16.msra.mxu0 %v2666
        %2692 = vmatprep.subr.bf16.mxu0 0
        %2693 = vmatpush1.bf16.msra.mxu0 %v2665
        %2694 = vmatprep.subr.bf16.mxu0 0
        %2695 = vmatpush2.bf16.msra.mxu0 0
        %2696 = vmatprep.subr.bf16.mxu0 0
        %2697 = vmatpush2.bf16.msra.mxu0 0
        %2698 = vmatprep.subr.bf16.mxu0 0
        %2699 = vmatpush2.bf16.msra.mxu0 0
        %2700 = vmatprep.subr.bf16.mxu0 0
        %2701 = vmatpush2.bf16.msra.mxu0 0
        %2702 = vmatprep.subr.bf16.mxu0 0
        %2703 = vmatpush2.bf16.msra.mxu0 0
        %2704 = vmatprep.subr.bf16.mxu0 0
        %2705 = vmatpush2.bf16.msra.mxu0 0
        %2706 = vmatprep.subr.bf16.mxu0 0
        %2707 = vmatpush2.bf16.msra.mxu0 0
        %2708 = vmatprep.subr.bf16.mxu0 0
        %2709 = vmatpush2.bf16.msra.mxu0 0
        %2710 = vmatprep.mubr.bf16.mxu0 0
        %2711 = vmatmul.mubr.bf16.gmra.mxu0 %v2670
        %v2712 = vpop.f32.mrf.mxu0
        %v2713 = vadd.f32 %v2655, %v2712
        %v2714 = vpop.f32.mrf.mxu0
        %v2715 = vpop.f32.mrf.mxu0
        %v2716 = vadd.f32 %v2655, %v2715
        %v2717 = vpop.f32.mrf.mxu0
        %2718 = vmatprep.mubr.bf16.mxu0 0
        %2719 = vmatmul.mubr.bf16.gmra.mxu0 %v2673
        %v2720 = vpop.f32.mrf.mxu0
        %v2721 = vadd.f32 %v2655, %v2720
        %v2722 = vpop.f32.mrf.mxu0
        %v2723 = vpop.f32.mrf.mxu0
        %v2724 = vadd.f32 %v2655, %v2723
        %v2725 = vpop.f32.mrf.mxu0
        %2726 = vmatprep.mubr.bf16.mxu0 0
        %2727 = vmatmul.mubr.bf16.gmra.mxu0 %v2676
        %v2728 = vpop.f32.mrf.mxu0
        %v2729 = vadd.f32 %v2655, %v2728
        %v2730 = vpop.f32.mrf.mxu0
        %v2731 = vpop.f32.mrf.mxu0
        %v2732 = vpop.f32.mrf.mxu0
        %2733 = vdwg.mxu0
        %v2734 = vpack.c.bf16 %v2716, %v2713
        %v2735 = vpack.c.bf16 %v2724, %v2721
        %v2736 = vpack.c.bf16 %v2729, %v2729
        %v2737 = vmul.f32 %v2713, %v1182
        %v2738 = vmul.f32 %v2716, %v1182
        %v2739 = vmul.f32 %v2721, %v1182
        %v2740 = vmul.f32 %v2724, %v1182
        %v2741 = vmul.f32 %v2729, %v1182
        %v2742 = vpack.c.bf16 %v2738, %v2737
        %v2743 = vpack.c.bf16 %v2740, %v2739
        %v2744 = vpack.c.bf16 %v2741, %v2741
        %2748 = vrot.lane.b32.xlu0 %v2734, 96
        %v2749 = vpop.permute.xlu0 %2748
        %2750 = vrot.lane.b32.xlu0 %v2735, 96
        %v2751 = vpop.permute.xlu0 %2750
        %2752 = vrot.lane.b32.xlu0 %v2736, 96
        %v2753 = vpop.permute.xlu0 %2752
        %v2755 = vsel %vm900, %v2742, 0
        %v2758 = vsel %vm900, %v2743, 0
        %v2761 = vsel %vm900, %v2744, 0
        %v2764 = vsel %vm900, %v2749, 0
        %v2767 = vsel %vm900, %v2751, 0
        %v2770 = vsel %vm900, %v2753, 0
        %2772 = vmatprep.subr.bf16.mxu0 0
        %2773 = vmatpush1.bf16.xpose.msra.mxu0 0
        %2774 = vmatprep.subr.bf16.mxu0 0
        %2775 = vmatpush1.bf16.xpose.msra.mxu0 0
        %2776 = vmatprep.subr.bf16.mxu0 0
        %2777 = vmatpush1.bf16.xpose.msra.mxu0 0
        %2778 = vmatprep.subr.bf16.mxu0 0
        %2779 = vmatpush1.bf16.xpose.msra.mxu0 0
        %2780 = vmatprep.subr.bf16.mxu0 0
        %2781 = vmatpush1.bf16.xpose.msra.mxu0 0
        %2782 = vmatprep.subr.bf16.mxu0 0
        %2783 = vmatpush1.bf16.xpose.msra.mxu0 %v2770
        %2784 = vmatprep.subr.bf16.mxu0 0
        %2785 = vmatpush1.bf16.xpose.msra.mxu0 %v2767
        %2786 = vmatprep.subr.bf16.mxu0 0
        %2787 = vmatpush1.bf16.xpose.msra.mxu0 %v2764
        %2788 = vmatprep.subr.bf16.mxu0 0
        %2789 = vmatpush2.bf16.xpose.msra.mxu0 0
        %2790 = vmatprep.subr.bf16.mxu0 0
        %2791 = vmatpush2.bf16.xpose.msra.mxu0 0
        %2792 = vmatprep.subr.bf16.mxu0 0
        %2793 = vmatpush2.bf16.xpose.msra.mxu0 0
        %2794 = vmatprep.subr.bf16.mxu0 0
        %2795 = vmatpush2.bf16.xpose.msra.mxu0 0
        %2796 = vmatprep.subr.bf16.mxu0 0
        %2797 = vmatpush2.bf16.xpose.msra.mxu0 0
        %2798 = vmatprep.subr.bf16.mxu0 0
        %2799 = vmatpush2.bf16.xpose.msra.mxu0 0
        %2800 = vmatprep.subr.bf16.mxu0 0
        %2801 = vmatpush2.bf16.xpose.msra.mxu0 0
        %2802 = vmatprep.subr.bf16.mxu0 0
        %2803 = vmatpush2.bf16.xpose.msra.mxu0 0
        %2804 = vmatprep.mubr.bf16.mxu0 0
        %2805 = vmatmul.mubr.bf16.gmra.mxu0 %v2755
        %v2806 = vpop.f32.mrf.mxu0
        %v2807 = vadd.f32 %v989, %v2806
        %v2808 = vpop.f32.mrf.mxu0
        %v2809 = vpop.f32.mrf.mxu0
        %v2810 = vadd.f32 %v990, %v2809
        %v2811 = vpop.f32.mrf.mxu0
        %2812 = vmatprep.mubr.bf16.mxu0 0
        %2813 = vmatmul.mubr.bf16.gmra.mxu0 %v2758
        %v2814 = vpop.f32.mrf.mxu0
        %v2815 = vadd.f32 %v991, %v2814
        %v2816 = vpop.f32.mrf.mxu0
        %v2817 = vpop.f32.mrf.mxu0
        %v2818 = vadd.f32 %v992, %v2817
        %v2819 = vpop.f32.mrf.mxu0
        %2820 = vmatprep.mubr.bf16.mxu0 0
        %2821 = vmatmul.mubr.bf16.gmra.mxu0 %v2761
        %v2822 = vpop.f32.mrf.mxu0
        %v2823 = vadd.f32 %v993, %v2822
        %v2824 = vpop.f32.mrf.mxu0
        %v2825 = vpop.f32.mrf.mxu0
        %v2826 = vpop.f32.mrf.mxu0
        %2827 = vdwg.mxu0
        %v2828 = vsel %vm1275, %v2807, -inf
        %2829 = vmax.xlane.f32.xlu0 %v2828
        %v2830 = vpop.xlane.xlu0 %2829
        %v2831 = vsel %vm1275, %v2810, -inf
        %2832 = vmax.xlane.f32.xlu0 %v2831
        %v2833 = vpop.xlane.xlu0 %2832
        %v2834 = vsel %vm1275, %v2815, -inf
        %2835 = vmax.xlane.f32.xlu0 %v2834
        %v2836 = vpop.xlane.xlu0 %2835
        %v2837 = vsel %vm1275, %v2818, -inf
        %2838 = vmax.xlane.f32.xlu0 %v2837
        %v2839 = vpop.xlane.xlu0 %2838
        %v2840 = vsel %vm1275, %v2823, -inf
        %2841 = vmax.xlane.f32.xlu0 %v2840
        %v2842 = vpop.xlane.xlu0 %2841
        %v2843 = vsub.f32 %v2807, %v2830
        %v2844 = vsub.f32 %v2810, %v2833
        %v2845 = vsub.f32 %v2815, %v2836
        %v2846 = vsub.f32 %v2818, %v2839
        %v2847 = vsub.f32 %v2823, %v2842
        %v2848 = vmul.f32 %v2843, 1.442695
        %v2849 = vpow.pop %v2848
        %v2850 = vmul.f32 %v2844, 1.442695
        %v2851 = vpow.pop %v2850
        %v2852 = vmul.f32 %v2845, 1.442695
        %v2853 = vpow.pop %v2852
        %v2854 = vmul.f32 %v2846, 1.442695
        %v2855 = vpow.pop %v2854
        %v2856 = vmul.f32 %v2847, 1.442695
        %v2857 = vpow.pop %v2856
        %v2858 = vsel %vm1275, %v2849, 0.0
        %2859 = vadd.xlane.f32.xlu0 %v2858
        %v2860 = vpop.xlane.xlu0 %2859
        %v2861 = vsel %vm1275, %v2851, 0.0
        %2862 = vadd.xlane.f32.xlu0 %v2861
        %v2863 = vpop.xlane.xlu0 %2862
        %v2864 = vsel %vm1275, %v2853, 0.0
        %2865 = vadd.xlane.f32.xlu0 %v2864
        %v2866 = vpop.xlane.xlu0 %2865
        %v2867 = vsel %vm1275, %v2855, 0.0
        %2868 = vadd.xlane.f32.xlu0 %v2867
        %v2869 = vpop.xlane.xlu0 %2868
        %v2870 = vsel %vm1275, %v2857, 0.0
        %2871 = vadd.xlane.f32.xlu0 %v2870
        %v2872 = vpop.xlane.xlu0 %2871
        %v2873 = vrcp.pop %v2860
        %v2874 = vrcp.pop %v2863
        %v2875 = vrcp.pop %v2866
        %v2876 = vrcp.pop %v2869
        %v2877 = vrcp.pop %v2872
        %v2878 = vmul.f32 %v2849, %v2873
        %v2879 = vmul.f32 %v2851, %v2874
        %v2880 = vmul.f32 %v2853, %v2875
        %v2881 = vmul.f32 %v2855, %v2876
        %v2882 = vmul.f32 %v2857, %v2877
        %v2883 = vpack.c.bf16 %v2879, %v2878
        %v2884 = vpack.c.bf16 %v2881, %v2880
        %v2885 = vpack.c.bf16 %v2882, %v2882
        %v2886 = vmul.f32 %v2713, %v1335
        %v2887 = vmul.f32 %v2716, %v1335
        %v2888 = vmul.f32 %v2721, %v1335
        %v2889 = vmul.f32 %v2724, %v1335
        %v2890 = vmul.f32 %v2729, %v1335
        %v2891 = vpack.c.bf16 %v2887, %v2886
        %v2892 = vpack.c.bf16 %v2889, %v2888
        %v2893 = vpack.c.bf16 %v2890, %v2890
        %v2894 = vmul.f32 %v2713, %v1351
        %v2895 = vmul.f32 %v2716, %v1351
        %v2896 = vmul.f32 %v2721, %v1351
        %v2897 = vmul.f32 %v2724, %v1351
        %v2898 = vmul.f32 %v2729, %v1351
        %v2899 = vpack.c.bf16 %v2895, %v2894
        %v2900 = vpack.c.bf16 %v2897, %v2896
        %v2901 = vpack.c.bf16 %v2898, %v2898
        %v2903 = vsel %vm900, %v2899, 0
        %v2906 = vsel %vm900, %v2900, 0
        %v2909 = vsel %vm900, %v2901, 0
        %2911 = vmatprep.subr.bf16.mxu0 0
        %2912 = vmatpush1.bf16.xpose.msra.mxu0 0
        %2913 = vmatprep.subr.bf16.mxu0 0
        %2914 = vmatpush1.bf16.xpose.msra.mxu0 0
        %2915 = vmatprep.subr.bf16.mxu0 0
        %2916 = vmatpush1.bf16.xpose.msra.mxu0 0
        %2917 = vmatprep.subr.bf16.mxu0 0
        %2918 = vmatpush1.bf16.xpose.msra.mxu0 0
        %2919 = vmatprep.subr.bf16.mxu0 0
        %2920 = vmatpush1.bf16.xpose.msra.mxu0 0
        %2921 = vmatprep.subr.bf16.mxu0 0
        %2922 = vmatpush1.bf16.xpose.msra.mxu0 %v2770
        %2923 = vmatprep.subr.bf16.mxu0 0
        %2924 = vmatpush1.bf16.xpose.msra.mxu0 %v2767
        %2925 = vmatprep.subr.bf16.mxu0 0
        %2926 = vmatpush1.bf16.xpose.msra.mxu0 %v2764
        %2927 = vmatprep.subr.bf16.mxu0 0
        %2928 = vmatpush2.bf16.xpose.msra.mxu0 0
        %2929 = vmatprep.subr.bf16.mxu0 0
        %2930 = vmatpush2.bf16.xpose.msra.mxu0 0
        %2931 = vmatprep.subr.bf16.mxu0 0
        %2932 = vmatpush2.bf16.xpose.msra.mxu0 0
        %2933 = vmatprep.subr.bf16.mxu0 0
        %2934 = vmatpush2.bf16.xpose.msra.mxu0 0
        %2935 = vmatprep.subr.bf16.mxu0 0
        %2936 = vmatpush2.bf16.xpose.msra.mxu0 0
        %2937 = vmatprep.subr.bf16.mxu0 0
        %2938 = vmatpush2.bf16.xpose.msra.mxu0 0
        %2939 = vmatprep.subr.bf16.mxu0 0
        %2940 = vmatpush2.bf16.xpose.msra.mxu0 0
        %2941 = vmatprep.subr.bf16.mxu0 0
        %2942 = vmatpush2.bf16.xpose.msra.mxu0 0
        %2943 = vmatprep.mubr.bf16.mxu0 0
        %2944 = vmatmul.mubr.bf16.gmra.mxu0 %v2903
        %v2945 = vpop.f32.mrf.mxu0
        %v2946 = vadd.f32 %v989, %v2945
        %v2947 = vpop.f32.mrf.mxu0
        %v2948 = vpop.f32.mrf.mxu0
        %v2949 = vadd.f32 %v990, %v2948
        %v2950 = vpop.f32.mrf.mxu0
        %2951 = vmatprep.mubr.bf16.mxu0 0
        %2952 = vmatmul.mubr.bf16.gmra.mxu0 %v2906
        %v2953 = vpop.f32.mrf.mxu0
        %v2954 = vadd.f32 %v991, %v2953
        %v2955 = vpop.f32.mrf.mxu0
        %v2956 = vpop.f32.mrf.mxu0
        %v2957 = vadd.f32 %v992, %v2956
        %v2958 = vpop.f32.mrf.mxu0
        %2959 = vmatprep.mubr.bf16.mxu0 0
        %2960 = vmatmul.mubr.bf16.gmra.mxu0 %v2909
        %v2961 = vpop.f32.mrf.mxu0
        %v2962 = vadd.f32 %v993, %v2961
        %v2963 = vpop.f32.mrf.mxu0
        %v2964 = vpop.f32.mrf.mxu0
        %v2965 = vpop.f32.mrf.mxu0
        %2966 = vdwg.mxu0
        %v2967 = vsel %vm1275, %v2946, -inf
        %2968 = vmax.xlane.f32.xlu0 %v2967
        %v2969 = vpop.xlane.xlu0 %2968
        %v2970 = vsel %vm1275, %v2949, -inf
        %2971 = vmax.xlane.f32.xlu0 %v2970
        %v2972 = vpop.xlane.xlu0 %2971
        %v2973 = vsel %vm1275, %v2954, -inf
        %2974 = vmax.xlane.f32.xlu0 %v2973
        %v2975 = vpop.xlane.xlu0 %2974
        %v2976 = vsel %vm1275, %v2957, -inf
        %2977 = vmax.xlane.f32.xlu0 %v2976
        %v2978 = vpop.xlane.xlu0 %2977
        %v2979 = vsel %vm1275, %v2962, -inf
        %2980 = vmax.xlane.f32.xlu0 %v2979
        %v2981 = vpop.xlane.xlu0 %2980
        %v2982 = vsub.f32 %v2946, %v2969
        %v2983 = vsub.f32 %v2949, %v2972
        %v2984 = vsub.f32 %v2954, %v2975
        %v2985 = vsub.f32 %v2957, %v2978
        %v2986 = vsub.f32 %v2962, %v2981
        %v2987 = vmul.f32 %v2982, 1.442695
        %v2988 = vpow.pop %v2987
        %v2989 = vmul.f32 %v2983, 1.442695
        %v2990 = vpow.pop %v2989
        %v2991 = vmul.f32 %v2984, 1.442695
        %v2992 = vpow.pop %v2991
        %v2993 = vmul.f32 %v2985, 1.442695
        %v2994 = vpow.pop %v2993
        %v2995 = vmul.f32 %v2986, 1.442695
        %v2996 = vpow.pop %v2995
        %v2997 = vsel %vm1275, %v2988, 0.0
        %2998 = vadd.xlane.f32.xlu0 %v2997
        %v2999 = vpop.xlane.xlu0 %2998
        %v3000 = vsel %vm1275, %v2990, 0.0
        %3001 = vadd.xlane.f32.xlu0 %v3000
        %v3002 = vpop.xlane.xlu0 %3001
        %v3003 = vsel %vm1275, %v2992, 0.0
        %3004 = vadd.xlane.f32.xlu0 %v3003
        %v3005 = vpop.xlane.xlu0 %3004
        %v3006 = vsel %vm1275, %v2994, 0.0
        %3007 = vadd.xlane.f32.xlu0 %v3006
        %v3008 = vpop.xlane.xlu0 %3007
        %v3009 = vsel %vm1275, %v2996, 0.0
        %3010 = vadd.xlane.f32.xlu0 %v3009
        %v3011 = vpop.xlane.xlu0 %3010
        %v3012 = vrcp.pop %v2999
        %v3013 = vrcp.pop %v3002
        %v3014 = vrcp.pop %v3005
        %v3015 = vrcp.pop %v3008
        %v3016 = vrcp.pop %v3011
        %v3017 = vmul.f32 %v2988, %v3012
        %v3018 = vmul.f32 %v2990, %v3013
        %v3019 = vmul.f32 %v2992, %v3014
        %v3020 = vmul.f32 %v2994, %v3015
        %v3021 = vmul.f32 %v2996, %v3016
        %v3022 = vpack.c.bf16 %v3018, %v3017
        %v3023 = vpack.c.bf16 %v3020, %v3019
        %v3024 = vpack.c.bf16 %v3021, %v3021
        %v3025 = vmul.f32 %v2713, %v1485
        %v3026 = vmul.f32 %v2716, %v1485
        %v3027 = vmul.f32 %v2721, %v1485
        %v3028 = vmul.f32 %v2724, %v1485
        %v3029 = vmul.f32 %v2729, %v1485
        %v3030 = vpack.c.bf16 %v3026, %v3025
        %v3031 = vpack.c.bf16 %v3028, %v3027
        %v3032 = vpack.c.bf16 %v3029, %v3029
        %3036 = vrot.lane.b32.xlu0 %v3030, 64
        %v3037 = vpop.permute.xlu0 %3036
        %3038 = vrot.lane.b32.xlu0 %v3031, 64
        %v3039 = vpop.permute.xlu0 %3038
        %3040 = vrot.lane.b32.xlu0 %v3032, 64
        %v3041 = vpop.permute.xlu0 %3040
        %v3045 = vsel %vm1275, %v3022, 0
        %v3048 = vsel %vm1275, %v3023, 0
        %v3051 = vsel %vm1275, %v3024, 0
        %v3054 = vsel %vm1515, %v3041, 0
        %3056 = vmatprep.subr.bf16.mxu0 0
        %3057 = vmatpush1.bf16.msra.mxu0 0
        %3058 = vmatprep.subr.bf16.mxu0 0
        %3059 = vmatpush1.bf16.msra.mxu0 0
        %3060 = vmatprep.subr.bf16.mxu0 0
        %3061 = vmatpush1.bf16.msra.mxu0 0
        %3062 = vmatprep.subr.bf16.mxu0 0
        %3063 = vmatpush1.bf16.msra.mxu0 0
        %3064 = vmatprep.subr.bf16.mxu0 0
        %3065 = vmatpush1.bf16.msra.mxu0 0
        %3066 = vmatprep.subr.bf16.mxu0 0
        %3067 = vmatpush1.bf16.msra.mxu0 %v3054
        %3068 = vmatprep.subr.bf16.mxu0 0
        %3069 = vmatpush1.bf16.msra.mxu0 %v3039
        %3070 = vmatprep.subr.bf16.mxu0 0
        %3071 = vmatpush1.bf16.msra.mxu0 %v3037
        %3072 = vmatprep.subr.bf16.mxu0 0
        %3073 = vmatpush2.bf16.msra.mxu0 0
        %3074 = vmatprep.subr.bf16.mxu0 0
        %3075 = vmatpush2.bf16.msra.mxu0 0
        %3076 = vmatprep.subr.bf16.mxu0 0
        %3077 = vmatpush2.bf16.msra.mxu0 0
        %3078 = vmatprep.subr.bf16.mxu0 0
        %3079 = vmatpush2.bf16.msra.mxu0 0
        %3080 = vmatprep.subr.bf16.mxu0 0
        %3081 = vmatpush2.bf16.msra.mxu0 0
        %3082 = vmatprep.subr.bf16.mxu0 0
        %3083 = vmatpush2.bf16.msra.mxu0 0
        %3084 = vmatprep.subr.bf16.mxu0 0
        %3085 = vmatpush2.bf16.msra.mxu0 0
        %3086 = vmatprep.subr.bf16.mxu0 0
        %3087 = vmatpush2.bf16.msra.mxu0 0
        %3088 = vmatprep.mubr.bf16.mxu0 0
        %3089 = vmatmul.mubr.bf16.gmra.mxu0 %v3045
        %v3090 = vpop.f32.mrf.mxu0
        %v3091 = vadd.f32 0.0, %v3090
        %v3092 = vpop.f32.mrf.mxu0
        %v3093 = vpop.f32.mrf.mxu0
        %v3094 = vadd.f32 0.0, %v3093
        %v3095 = vpop.f32.mrf.mxu0
        %3096 = vmatprep.mubr.bf16.mxu0 0
        %3097 = vmatmul.mubr.bf16.gmra.mxu0 %v3048
        %v3098 = vpop.f32.mrf.mxu0
        %v3099 = vadd.f32 0.0, %v3098
        %v3100 = vpop.f32.mrf.mxu0
        %v3101 = vpop.f32.mrf.mxu0
        %v3102 = vadd.f32 0.0, %v3101
        %v3103 = vpop.f32.mrf.mxu0
        %3104 = vmatprep.mubr.bf16.mxu0 0
        %3105 = vmatmul.mubr.bf16.gmra.mxu0 %v3051
        %v3106 = vpop.f32.mrf.mxu0
        %v3107 = vadd.f32 0.0, %v3106
        %v3108 = vpop.f32.mrf.mxu0
        %v3109 = vpop.f32.mrf.mxu0
        %v3110 = vpop.f32.mrf.mxu0
        %3111 = vdwg.mxu0
        %3115 = vrot.lane.b32.xlu0 %v2891, 64
        %v3116 = vpop.permute.xlu0 %3115
        %3117 = vrot.lane.b32.xlu0 %v2892, 64
        %v3118 = vpop.permute.xlu0 %3117
        %3119 = vrot.lane.b32.xlu0 %v2893, 64
        %v3120 = vpop.permute.xlu0 %3119
        %v3124 = vsel %vm1275, %v2883, 0
        %v3127 = vsel %vm1275, %v2884, 0
        %v3130 = vsel %vm1275, %v2885, 0
        %v3133 = vsel %vm1515, %v3120, 0
        %3135 = vmatprep.subr.bf16.mxu0 0
        %3136 = vmatpush1.bf16.msra.mxu0 0
        %3137 = vmatprep.subr.bf16.mxu0 0
        %3138 = vmatpush1.bf16.msra.mxu0 0
        %3139 = vmatprep.subr.bf16.mxu0 0
        %3140 = vmatpush1.bf16.msra.mxu0 0
        %3141 = vmatprep.subr.bf16.mxu0 0
        %3142 = vmatpush1.bf16.msra.mxu0 0
        %3143 = vmatprep.subr.bf16.mxu0 0
        %3144 = vmatpush1.bf16.msra.mxu0 0
        %3145 = vmatprep.subr.bf16.mxu0 0
        %3146 = vmatpush1.bf16.msra.mxu0 %v3133
        %3147 = vmatprep.subr.bf16.mxu0 0
        %3148 = vmatpush1.bf16.msra.mxu0 %v3118
        %3149 = vmatprep.subr.bf16.mxu0 0
        %3150 = vmatpush1.bf16.msra.mxu0 %v3116
        %3151 = vmatprep.subr.bf16.mxu0 0
        %3152 = vmatpush2.bf16.msra.mxu0 0
        %3153 = vmatprep.subr.bf16.mxu0 0
        %3154 = vmatpush2.bf16.msra.mxu0 0
        %3155 = vmatprep.subr.bf16.mxu0 0
        %3156 = vmatpush2.bf16.msra.mxu0 0
        %3157 = vmatprep.subr.bf16.mxu0 0
        %3158 = vmatpush2.bf16.msra.mxu0 0
        %3159 = vmatprep.subr.bf16.mxu0 0
        %3160 = vmatpush2.bf16.msra.mxu0 0
        %3161 = vmatprep.subr.bf16.mxu0 0
        %3162 = vmatpush2.bf16.msra.mxu0 0
        %3163 = vmatprep.subr.bf16.mxu0 0
        %3164 = vmatpush2.bf16.msra.mxu0 0
        %3165 = vmatprep.subr.bf16.mxu0 0
        %3166 = vmatpush2.bf16.msra.mxu0 0
        %3167 = vmatprep.mubr.bf16.mxu0 0
        %3168 = vmatmul.mubr.bf16.gmra.mxu0 %v3124
        %v3169 = vpop.f32.mrf.mxu0
        %v3170 = vadd.f32 %v3091, %v3169
        %v3171 = vpop.f32.mrf.mxu0
        %v3172 = vpop.f32.mrf.mxu0
        %v3173 = vadd.f32 %v3094, %v3172
        %v3174 = vpop.f32.mrf.mxu0
        %3175 = vmatprep.mubr.bf16.mxu0 0
        %3176 = vmatmul.mubr.bf16.gmra.mxu0 %v3127
        %v3177 = vpop.f32.mrf.mxu0
        %v3178 = vadd.f32 %v3099, %v3177
        %v3179 = vpop.f32.mrf.mxu0
        %v3180 = vpop.f32.mrf.mxu0
        %v3181 = vadd.f32 %v3102, %v3180
        %v3182 = vpop.f32.mrf.mxu0
        %3183 = vmatprep.mubr.bf16.mxu0 0
        %3184 = vmatmul.mubr.bf16.gmra.mxu0 %v3130
        %v3185 = vpop.f32.mrf.mxu0
        %v3186 = vadd.f32 %v3107, %v3185
        %v3187 = vpop.f32.mrf.mxu0
        %v3188 = vpop.f32.mrf.mxu0
        %v3189 = vpop.f32.mrf.mxu0
        %3190 = vdwg.mxu0
        %v3191 = vmul.f32 %v2713, %v1660
        %v3192 = vmul.f32 %v2716, %v1660
        %v3193 = vmul.f32 %v2721, %v1660
        %v3194 = vmul.f32 %v2724, %v1660
        %v3195 = vmul.f32 %v2729, %v1660
        %v3196 = vpack.c.bf16 %v3192, %v3191
        %v3197 = vpack.c.bf16 %v3194, %v3193
        %v3198 = vpack.c.bf16 %v3195, %v3195
        %v3200 = vsel %vm900, %v3196, 0
        %v3203 = vsel %vm900, %v3197, 0
        %v3206 = vsel %vm900, %v3198, 0
        %3208 = vmatprep.subr.bf16.mxu0 0
        %3209 = vmatpush1.bf16.xpose.msra.mxu0 0
        %3210 = vmatprep.subr.bf16.mxu0 0
        %3211 = vmatpush1.bf16.xpose.msra.mxu0 0
        %3212 = vmatprep.subr.bf16.mxu0 0
        %3213 = vmatpush1.bf16.xpose.msra.mxu0 0
        %3214 = vmatprep.subr.bf16.mxu0 0
        %3215 = vmatpush1.bf16.xpose.msra.mxu0 0
        %3216 = vmatprep.subr.bf16.mxu0 0
        %3217 = vmatpush1.bf16.xpose.msra.mxu0 0
        %3218 = vmatprep.subr.bf16.mxu0 0
        %3219 = vmatpush1.bf16.xpose.msra.mxu0 %v2770
        %3220 = vmatprep.subr.bf16.mxu0 0
        %3221 = vmatpush1.bf16.xpose.msra.mxu0 %v2767
        %3222 = vmatprep.subr.bf16.mxu0 0
        %3223 = vmatpush1.bf16.xpose.msra.mxu0 %v2764
        %3224 = vmatprep.subr.bf16.mxu0 0
        %3225 = vmatpush2.bf16.xpose.msra.mxu0 0
        %3226 = vmatprep.subr.bf16.mxu0 0
        %3227 = vmatpush2.bf16.xpose.msra.mxu0 0
        %3228 = vmatprep.subr.bf16.mxu0 0
        %3229 = vmatpush2.bf16.xpose.msra.mxu0 0
        %3230 = vmatprep.subr.bf16.mxu0 0
        %3231 = vmatpush2.bf16.xpose.msra.mxu0 0
        %3232 = vmatprep.subr.bf16.mxu0 0
        %3233 = vmatpush2.bf16.xpose.msra.mxu0 0
        %3234 = vmatprep.subr.bf16.mxu0 0
        %3235 = vmatpush2.bf16.xpose.msra.mxu0 0
        %3236 = vmatprep.subr.bf16.mxu0 0
        %3237 = vmatpush2.bf16.xpose.msra.mxu0 0
        %3238 = vmatprep.subr.bf16.mxu0 0
        %3239 = vmatpush2.bf16.xpose.msra.mxu0 0
        %3240 = vmatprep.mubr.bf16.mxu0 0
        %3241 = vmatmul.mubr.bf16.gmra.mxu0 %v3200
        %v3242 = vpop.f32.mrf.mxu0
        %v3243 = vadd.f32 %v989, %v3242
        %v3244 = vpop.f32.mrf.mxu0
        %v3245 = vpop.f32.mrf.mxu0
        %v3246 = vadd.f32 %v990, %v3245
        %v3247 = vpop.f32.mrf.mxu0
        %3248 = vmatprep.mubr.bf16.mxu0 0
        %3249 = vmatmul.mubr.bf16.gmra.mxu0 %v3203
        %v3250 = vpop.f32.mrf.mxu0
        %v3251 = vadd.f32 %v991, %v3250
        %v3252 = vpop.f32.mrf.mxu0
        %v3253 = vpop.f32.mrf.mxu0
        %v3254 = vadd.f32 %v992, %v3253
        %v3255 = vpop.f32.mrf.mxu0
        %3256 = vmatprep.mubr.bf16.mxu0 0
        %3257 = vmatmul.mubr.bf16.gmra.mxu0 %v3206
        %v3258 = vpop.f32.mrf.mxu0
        %v3259 = vadd.f32 %v993, %v3258
        %v3260 = vpop.f32.mrf.mxu0
        %v3261 = vpop.f32.mrf.mxu0
        %v3262 = vpop.f32.mrf.mxu0
        %3263 = vdwg.mxu0
        %v3264 = vsel %vm1275, %v3243, -inf
        %3265 = vmax.xlane.f32.xlu0 %v3264
        %v3266 = vpop.xlane.xlu0 %3265
        %v3267 = vsel %vm1275, %v3246, -inf
        %3268 = vmax.xlane.f32.xlu0 %v3267
        %v3269 = vpop.xlane.xlu0 %3268
        %v3270 = vsel %vm1275, %v3251, -inf
        %3271 = vmax.xlane.f32.xlu0 %v3270
        %v3272 = vpop.xlane.xlu0 %3271
        %v3273 = vsel %vm1275, %v3254, -inf
        %3274 = vmax.xlane.f32.xlu0 %v3273
        %v3275 = vpop.xlane.xlu0 %3274
        %v3276 = vsel %vm1275, %v3259, -inf
        %3277 = vmax.xlane.f32.xlu0 %v3276
        %v3278 = vpop.xlane.xlu0 %3277
        %v3279 = vsub.f32 %v3243, %v3266
        %v3280 = vsub.f32 %v3246, %v3269
        %v3281 = vsub.f32 %v3251, %v3272
        %v3282 = vsub.f32 %v3254, %v3275
        %v3283 = vsub.f32 %v3259, %v3278
        %v3284 = vmul.f32 %v3279, 1.442695
        %v3285 = vpow.pop %v3284
        %v3286 = vmul.f32 %v3280, 1.442695
        %v3287 = vpow.pop %v3286
        %v3288 = vmul.f32 %v3281, 1.442695
        %v3289 = vpow.pop %v3288
        %v3290 = vmul.f32 %v3282, 1.442695
        %v3291 = vpow.pop %v3290
        %v3292 = vmul.f32 %v3283, 1.442695
        %v3293 = vpow.pop %v3292
        %v3294 = vsel %vm1275, %v3285, 0.0
        %3295 = vadd.xlane.f32.xlu0 %v3294
        %v3296 = vpop.xlane.xlu0 %3295
        %v3297 = vsel %vm1275, %v3287, 0.0
        %3298 = vadd.xlane.f32.xlu0 %v3297
        %v3299 = vpop.xlane.xlu0 %3298
        %v3300 = vsel %vm1275, %v3289, 0.0
        %3301 = vadd.xlane.f32.xlu0 %v3300
        %v3302 = vpop.xlane.xlu0 %3301
        %v3303 = vsel %vm1275, %v3291, 0.0
        %3304 = vadd.xlane.f32.xlu0 %v3303
        %v3305 = vpop.xlane.xlu0 %3304
        %v3306 = vsel %vm1275, %v3293, 0.0
        %3307 = vadd.xlane.f32.xlu0 %v3306
        %v3308 = vpop.xlane.xlu0 %3307
        %v3309 = vrcp.pop %v3296
        %v3310 = vrcp.pop %v3299
        %v3311 = vrcp.pop %v3302
        %v3312 = vrcp.pop %v3305
        %v3313 = vrcp.pop %v3308
        %v3314 = vmul.f32 %v3285, %v3309
        %v3315 = vmul.f32 %v3287, %v3310
        %v3316 = vmul.f32 %v3289, %v3311
        %v3317 = vmul.f32 %v3291, %v3312
        %v3318 = vmul.f32 %v3293, %v3313
        %v3319 = vpack.c.bf16 %v3315, %v3314
        %v3320 = vpack.c.bf16 %v3317, %v3316
        %v3321 = vpack.c.bf16 %v3318, %v3318
        %v3322 = vmul.f32 %v2713, %v1794
        %v3323 = vmul.f32 %v2716, %v1794
        %v3324 = vmul.f32 %v2721, %v1794
        %v3325 = vmul.f32 %v2724, %v1794
        %v3326 = vmul.f32 %v2729, %v1794
        %v3327 = vpack.c.bf16 %v3323, %v3322
        %v3328 = vpack.c.bf16 %v3325, %v3324
        %v3329 = vpack.c.bf16 %v3326, %v3326
        %3333 = vrot.lane.b32.xlu0 %v3327, 64
        %v3334 = vpop.permute.xlu0 %3333
        %3335 = vrot.lane.b32.xlu0 %v3328, 64
        %v3336 = vpop.permute.xlu0 %3335
        %3337 = vrot.lane.b32.xlu0 %v3329, 64
        %v3338 = vpop.permute.xlu0 %3337
        %v3342 = vsel %vm1275, %v3319, 0
        %v3345 = vsel %vm1275, %v3320, 0
        %v3348 = vsel %vm1275, %v3321, 0
        %v3351 = vsel %vm1515, %v3338, 0
        %3353 = vmatprep.subr.bf16.mxu0 0
        %3354 = vmatpush1.bf16.msra.mxu0 0
        %3355 = vmatprep.subr.bf16.mxu0 0
        %3356 = vmatpush1.bf16.msra.mxu0 0
        %3357 = vmatprep.subr.bf16.mxu0 0
        %3358 = vmatpush1.bf16.msra.mxu0 0
        %3359 = vmatprep.subr.bf16.mxu0 0
        %3360 = vmatpush1.bf16.msra.mxu0 0
        %3361 = vmatprep.subr.bf16.mxu0 0
        %3362 = vmatpush1.bf16.msra.mxu0 0
        %3363 = vmatprep.subr.bf16.mxu0 0
        %3364 = vmatpush1.bf16.msra.mxu0 %v3351
        %3365 = vmatprep.subr.bf16.mxu0 0
        %3366 = vmatpush1.bf16.msra.mxu0 %v3336
        %3367 = vmatprep.subr.bf16.mxu0 0
        %3368 = vmatpush1.bf16.msra.mxu0 %v3334
        %3369 = vmatprep.subr.bf16.mxu0 0
        %3370 = vmatpush2.bf16.msra.mxu0 0
        %3371 = vmatprep.subr.bf16.mxu0 0
        %3372 = vmatpush2.bf16.msra.mxu0 0
        %3373 = vmatprep.subr.bf16.mxu0 0
        %3374 = vmatpush2.bf16.msra.mxu0 0
        %3375 = vmatprep.subr.bf16.mxu0 0
        %3376 = vmatpush2.bf16.msra.mxu0 0
        %3377 = vmatprep.subr.bf16.mxu0 0
        %3378 = vmatpush2.bf16.msra.mxu0 0
        %3379 = vmatprep.subr.bf16.mxu0 0
        %3380 = vmatpush2.bf16.msra.mxu0 0
        %3381 = vmatprep.subr.bf16.mxu0 0
        %3382 = vmatpush2.bf16.msra.mxu0 0
        %3383 = vmatprep.subr.bf16.mxu0 0
        %3384 = vmatpush2.bf16.msra.mxu0 0
        %3385 = vmatprep.mubr.bf16.mxu0 0
        %3386 = vmatmul.mubr.bf16.gmra.mxu0 %v3342
        %v3387 = vpop.f32.mrf.mxu0
        %v3388 = vadd.f32 0.0, %v3387
        %v3389 = vpop.f32.mrf.mxu0
        %v3390 = vpop.f32.mrf.mxu0
        %v3391 = vadd.f32 0.0, %v3390
        %v3392 = vpop.f32.mrf.mxu0
        %3393 = vmatprep.mubr.bf16.mxu0 0
        %3394 = vmatmul.mubr.bf16.gmra.mxu0 %v3345
        %v3395 = vpop.f32.mrf.mxu0
        %v3396 = vadd.f32 0.0, %v3395
        %v3397 = vpop.f32.mrf.mxu0
        %v3398 = vpop.f32.mrf.mxu0
        %v3399 = vadd.f32 0.0, %v3398
        %v3400 = vpop.f32.mrf.mxu0
        %3401 = vmatprep.mubr.bf16.mxu0 0
        %3402 = vmatmul.mubr.bf16.gmra.mxu0 %v3348
        %v3403 = vpop.f32.mrf.mxu0
        %v3404 = vadd.f32 0.0, %v3403
        %v3405 = vpop.f32.mrf.mxu0
        %v3406 = vpop.f32.mrf.mxu0
        %v3407 = vpop.f32.mrf.mxu0
        %3408 = vdwg.mxu0
        %v3409 = vadd.f32 %v3170, %v3388
        %v3410 = vadd.f32 %v3173, %v3391
        %v3411 = vadd.f32 %v3178, %v3396
        %v3412 = vadd.f32 %v3181, %v3399
        %v3413 = vadd.f32 %v3186, %v3404
        %v3414 = vmul.f32 %v2713, %v1894
        %v3415 = vmul.f32 %v2716, %v1894
        %v3416 = vmul.f32 %v2721, %v1894
        %v3417 = vmul.f32 %v2724, %v1894
        %v3418 = vmul.f32 %v2729, %v1894
        %v3419 = vpack.c.bf16 %v3415, %v3414
        %v3420 = vpack.c.bf16 %v3417, %v3416
        %v3421 = vpack.c.bf16 %v3418, %v3418
        %v3423 = vsel %vm900, %v3419, 0
        %v3426 = vsel %vm900, %v3420, 0
        %v3429 = vsel %vm900, %v3421, 0
        %3431 = vmatprep.subr.bf16.mxu0 0
        %3432 = vmatpush1.bf16.xpose.msra.mxu0 0
        %3433 = vmatprep.subr.bf16.mxu0 0
        %3434 = vmatpush1.bf16.xpose.msra.mxu0 0
        %3435 = vmatprep.subr.bf16.mxu0 0
        %3436 = vmatpush1.bf16.xpose.msra.mxu0 0
        %3437 = vmatprep.subr.bf16.mxu0 0
        %3438 = vmatpush1.bf16.xpose.msra.mxu0 0
        %3439 = vmatprep.subr.bf16.mxu0 0
        %3440 = vmatpush1.bf16.xpose.msra.mxu0 0
        %3441 = vmatprep.subr.bf16.mxu0 0
        %3442 = vmatpush1.bf16.xpose.msra.mxu0 %v2770
        %3443 = vmatprep.subr.bf16.mxu0 0
        %3444 = vmatpush1.bf16.xpose.msra.mxu0 %v2767
        %3445 = vmatprep.subr.bf16.mxu0 0
        %3446 = vmatpush1.bf16.xpose.msra.mxu0 %v2764
        %3447 = vmatprep.subr.bf16.mxu0 0
        %3448 = vmatpush2.bf16.xpose.msra.mxu0 0
        %3449 = vmatprep.subr.bf16.mxu0 0
        %3450 = vmatpush2.bf16.xpose.msra.mxu0 0
        %3451 = vmatprep.subr.bf16.mxu0 0
        %3452 = vmatpush2.bf16.xpose.msra.mxu0 0
        %3453 = vmatprep.subr.bf16.mxu0 0
        %3454 = vmatpush2.bf16.xpose.msra.mxu0 0
        %3455 = vmatprep.subr.bf16.mxu0 0
        %3456 = vmatpush2.bf16.xpose.msra.mxu0 0
        %3457 = vmatprep.subr.bf16.mxu0 0
        %3458 = vmatpush2.bf16.xpose.msra.mxu0 0
        %3459 = vmatprep.subr.bf16.mxu0 0
        %3460 = vmatpush2.bf16.xpose.msra.mxu0 0
        %3461 = vmatprep.subr.bf16.mxu0 0
        %3462 = vmatpush2.bf16.xpose.msra.mxu0 0
        %3463 = vmatprep.mubr.bf16.mxu0 0
        %3464 = vmatmul.mubr.bf16.gmra.mxu0 %v3423
        %v3465 = vpop.f32.mrf.mxu0
        %v3466 = vadd.f32 %v989, %v3465
        %v3467 = vpop.f32.mrf.mxu0
        %v3468 = vpop.f32.mrf.mxu0
        %v3469 = vadd.f32 %v990, %v3468
        %v3470 = vpop.f32.mrf.mxu0
        %3471 = vmatprep.mubr.bf16.mxu0 0
        %3472 = vmatmul.mubr.bf16.gmra.mxu0 %v3426
        %v3473 = vpop.f32.mrf.mxu0
        %v3474 = vadd.f32 %v991, %v3473
        %v3475 = vpop.f32.mrf.mxu0
        %v3476 = vpop.f32.mrf.mxu0
        %v3477 = vadd.f32 %v992, %v3476
        %v3478 = vpop.f32.mrf.mxu0
        %3479 = vmatprep.mubr.bf16.mxu0 0
        %3480 = vmatmul.mubr.bf16.gmra.mxu0 %v3429
        %v3481 = vpop.f32.mrf.mxu0
        %v3482 = vadd.f32 %v993, %v3481
        %v3483 = vpop.f32.mrf.mxu0
        %v3484 = vpop.f32.mrf.mxu0
        %v3485 = vpop.f32.mrf.mxu0
        %3486 = vdwg.mxu0
        %v3487 = vsel %vm1275, %v3466, -inf
        %3488 = vmax.xlane.f32.xlu0 %v3487
        %v3489 = vpop.xlane.xlu0 %3488
        %v3490 = vsel %vm1275, %v3469, -inf
        %3491 = vmax.xlane.f32.xlu0 %v3490
        %v3492 = vpop.xlane.xlu0 %3491
        %v3493 = vsel %vm1275, %v3474, -inf
        %3494 = vmax.xlane.f32.xlu0 %v3493
        %v3495 = vpop.xlane.xlu0 %3494
        %v3496 = vsel %vm1275, %v3477, -inf
        %3497 = vmax.xlane.f32.xlu0 %v3496
        %v3498 = vpop.xlane.xlu0 %3497
        %v3499 = vsel %vm1275, %v3482, -inf
        %3500 = vmax.xlane.f32.xlu0 %v3499
        %v3501 = vpop.xlane.xlu0 %3500
        %v3502 = vsub.f32 %v3466, %v3489
        %v3503 = vsub.f32 %v3469, %v3492
        %v3504 = vsub.f32 %v3474, %v3495
        %v3505 = vsub.f32 %v3477, %v3498
        %v3506 = vsub.f32 %v3482, %v3501
        %v3507 = vmul.f32 %v3502, 1.442695
        %v3508 = vpow.pop %v3507
        %v3509 = vmul.f32 %v3503, 1.442695
        %v3510 = vpow.pop %v3509
        %v3511 = vmul.f32 %v3504, 1.442695
        %v3512 = vpow.pop %v3511
        %v3513 = vmul.f32 %v3505, 1.442695
        %v3514 = vpow.pop %v3513
        %v3515 = vmul.f32 %v3506, 1.442695
        %v3516 = vpow.pop %v3515
        %v3517 = vsel %vm1275, %v3508, 0.0
        %3518 = vadd.xlane.f32.xlu0 %v3517
        %v3519 = vpop.xlane.xlu0 %3518
        %v3520 = vsel %vm1275, %v3510, 0.0
        %3521 = vadd.xlane.f32.xlu0 %v3520
        %v3522 = vpop.xlane.xlu0 %3521
        %v3523 = vsel %vm1275, %v3512, 0.0
        %3524 = vadd.xlane.f32.xlu0 %v3523
        %v3525 = vpop.xlane.xlu0 %3524
        %v3526 = vsel %vm1275, %v3514, 0.0
        %3527 = vadd.xlane.f32.xlu0 %v3526
        %v3528 = vpop.xlane.xlu0 %3527
        %v3529 = vsel %vm1275, %v3516, 0.0
        %3530 = vadd.xlane.f32.xlu0 %v3529
        %v3531 = vpop.xlane.xlu0 %3530
        %v3532 = vrcp.pop %v3519
        %v3533 = vrcp.pop %v3522
        %v3534 = vrcp.pop %v3525
        %v3535 = vrcp.pop %v3528
        %v3536 = vrcp.pop %v3531
        %v3537 = vmul.f32 %v3508, %v3532
        %v3538 = vmul.f32 %v3510, %v3533
        %v3539 = vmul.f32 %v3512, %v3534
        %v3540 = vmul.f32 %v3514, %v3535
        %v3541 = vmul.f32 %v3516, %v3536
        %v3542 = vpack.c.bf16 %v3538, %v3537
        %v3543 = vpack.c.bf16 %v3540, %v3539
        %v3544 = vpack.c.bf16 %v3541, %v3541
        %v3545 = vmul.f32 %v2713, %v2028
        %v3546 = vmul.f32 %v2716, %v2028
        %v3547 = vmul.f32 %v2721, %v2028
        %v3548 = vmul.f32 %v2724, %v2028
        %v3549 = vmul.f32 %v2729, %v2028
        %v3550 = vpack.c.bf16 %v3546, %v3545
        %v3551 = vpack.c.bf16 %v3548, %v3547
        %v3552 = vpack.c.bf16 %v3549, %v3549
        %3556 = vrot.lane.b32.xlu0 %v3550, 64
        %v3557 = vpop.permute.xlu0 %3556
        %3558 = vrot.lane.b32.xlu0 %v3551, 64
        %v3559 = vpop.permute.xlu0 %3558
        %3560 = vrot.lane.b32.xlu0 %v3552, 64
        %v3561 = vpop.permute.xlu0 %3560
        %v3565 = vsel %vm1275, %v3542, 0
        %v3568 = vsel %vm1275, %v3543, 0
        %v3571 = vsel %vm1275, %v3544, 0
        %v3574 = vsel %vm1515, %v3561, 0
        %3576 = vmatprep.subr.bf16.mxu0 0
        %3577 = vmatpush1.bf16.msra.mxu0 0
        %3578 = vmatprep.subr.bf16.mxu0 0
        %3579 = vmatpush1.bf16.msra.mxu0 0
        %3580 = vmatprep.subr.bf16.mxu0 0
        %3581 = vmatpush1.bf16.msra.mxu0 0
        %3582 = vmatprep.subr.bf16.mxu0 0
        %3583 = vmatpush1.bf16.msra.mxu0 0
        %3584 = vmatprep.subr.bf16.mxu0 0
        %3585 = vmatpush1.bf16.msra.mxu0 0
        %3586 = vmatprep.subr.bf16.mxu0 0
        %3587 = vmatpush1.bf16.msra.mxu0 %v3574
        %3588 = vmatprep.subr.bf16.mxu0 0
        %3589 = vmatpush1.bf16.msra.mxu0 %v3559
        %3590 = vmatprep.subr.bf16.mxu0 0
        %3591 = vmatpush1.bf16.msra.mxu0 %v3557
        %3592 = vmatprep.subr.bf16.mxu0 0
        %3593 = vmatpush2.bf16.msra.mxu0 0
        %3594 = vmatprep.subr.bf16.mxu0 0
        %3595 = vmatpush2.bf16.msra.mxu0 0
        %3596 = vmatprep.subr.bf16.mxu0 0
        %3597 = vmatpush2.bf16.msra.mxu0 0
        %3598 = vmatprep.subr.bf16.mxu0 0
        %3599 = vmatpush2.bf16.msra.mxu0 0
        %3600 = vmatprep.subr.bf16.mxu0 0
        %3601 = vmatpush2.bf16.msra.mxu0 0
        %3602 = vmatprep.subr.bf16.mxu0 0
        %3603 = vmatpush2.bf16.msra.mxu0 0
        %3604 = vmatprep.subr.bf16.mxu0 0
        %3605 = vmatpush2.bf16.msra.mxu0 0
        %3606 = vmatprep.subr.bf16.mxu0 0
        %3607 = vmatpush2.bf16.msra.mxu0 0
        %3608 = vmatprep.mubr.bf16.mxu0 0
        %3609 = vmatmul.mubr.bf16.gmra.mxu0 %v3565
        %v3610 = vpop.f32.mrf.mxu0
        %v3611 = vadd.f32 0.0, %v3610
        %v3612 = vpop.f32.mrf.mxu0
        %v3613 = vpop.f32.mrf.mxu0
        %v3614 = vadd.f32 0.0, %v3613
        %v3615 = vpop.f32.mrf.mxu0
        %3616 = vmatprep.mubr.bf16.mxu0 0
        %3617 = vmatmul.mubr.bf16.gmra.mxu0 %v3568
        %v3618 = vpop.f32.mrf.mxu0
        %v3619 = vadd.f32 0.0, %v3618
        %v3620 = vpop.f32.mrf.mxu0
        %v3621 = vpop.f32.mrf.mxu0
        %v3622 = vadd.f32 0.0, %v3621
        %v3623 = vpop.f32.mrf.mxu0
        %3624 = vmatprep.mubr.bf16.mxu0 0
        %3625 = vmatmul.mubr.bf16.gmra.mxu0 %v3571
        %v3626 = vpop.f32.mrf.mxu0
        %v3627 = vadd.f32 0.0, %v3626
        %v3628 = vpop.f32.mrf.mxu0
        %v3629 = vpop.f32.mrf.mxu0
        %v3630 = vpop.f32.mrf.mxu0
        %3631 = vdwg.mxu0
        %v3632 = vadd.f32 %v3409, %v3611
        %v3633 = vadd.f32 %v3410, %v3614
        %v3634 = vadd.f32 %v3411, %v3619
        %v3635 = vadd.f32 %v3412, %v3622
        %v3636 = vadd.f32 %v3413, %v3627
        %v3637 = vpack.c.bf16 %v3633, %v3632
        %v3638 = vpack.c.bf16 %v3635, %v3634
        %v3639 = vpack.c.bf16 %v3636, %v3636
        %s3640 = scalar_lea.vmem %s12, 16
        %v3641 = vld [vmem:[%s3640] sm:$0xf]
        %v3642 = vld [vmem:[%s3640 + $0x4] sm:$0xf]
        %v3643 = vld [vmem:[%s3640 + $0x8] sm:$0xf]
        %v3644 = vld [vmem:[%s3640 + $0xc] sm:$0xf]
        %s3645 = scalar_lea.vmem %s13, 1
        %v3646 = vld [vmem:[%s3645] sm:$0x1]
        %v3648 = vlaneseq
        %v3649 = vshrl.u32 %v3648, 7
        %v3650 = vsub.s32 0, %v3649
        %v3651 = vrot.slane %v3646, %v3650
        %v3657 = vunpack.c.l.b16 %v3641
        %v3658 = vunpack.c.l.b16 %v3642
        %v3659 = vunpack.c.l.b16 %v3643
        %v3660 = vunpack.c.l.b16 %v3644
        %v3661 = vpack.c.b16 %v3658, %v3657
        %v3662 = vpack.c.b16 %v3660, %v3659
        %v3666 = vsel %vm900, %v3637, 0
        %v3669 = vsel %vm900, %v3638, 0
        %v3672 = vsel %vm900, %v3639, 0
        %3674 = vmatprep.subr.bf16.mxu0 0
        %3675 = vmatpush1.bf16.msra.mxu0 0
        %3676 = vmatprep.subr.bf16.mxu0 0
        %3677 = vmatpush1.bf16.msra.mxu0 0
        %3678 = vmatprep.subr.bf16.mxu0 0
        %3679 = vmatpush1.bf16.msra.mxu0 0
        %3680 = vmatprep.subr.bf16.mxu0 0
        %3681 = vmatpush1.bf16.msra.mxu0 0
        %3682 = vmatprep.subr.bf16.mxu0 0
        %3683 = vmatpush1.bf16.msra.mxu0 0
        %3684 = vmatprep.subr.bf16.mxu0 0
        %3685 = vmatpush1.bf16.msra.mxu0 0
        %3686 = vmatprep.subr.bf16.mxu0 0
        %3687 = vmatpush1.bf16.msra.mxu0 %v3662
        %3688 = vmatprep.subr.bf16.mxu0 0
        %3689 = vmatpush1.bf16.msra.mxu0 %v3661
        %3690 = vmatprep.subr.bf16.mxu0 0
        %3691 = vmatpush2.bf16.msra.mxu0 0
        %3692 = vmatprep.subr.bf16.mxu0 0
        %3693 = vmatpush2.bf16.msra.mxu0 0
        %3694 = vmatprep.subr.bf16.mxu0 0
        %3695 = vmatpush2.bf16.msra.mxu0 0
        %3696 = vmatprep.subr.bf16.mxu0 0
        %3697 = vmatpush2.bf16.msra.mxu0 0
        %3698 = vmatprep.subr.bf16.mxu0 0
        %3699 = vmatpush2.bf16.msra.mxu0 0
        %3700 = vmatprep.subr.bf16.mxu0 0
        %3701 = vmatpush2.bf16.msra.mxu0 0
        %3702 = vmatprep.subr.bf16.mxu0 0
        %3703 = vmatpush2.bf16.msra.mxu0 0
        %3704 = vmatprep.subr.bf16.mxu0 0
        %3705 = vmatpush2.bf16.msra.mxu0 0
        %3706 = vmatprep.mubr.bf16.mxu0 0
        %3707 = vmatmul.mubr.bf16.gmra.mxu0 %v3666
        %v3708 = vpop.f32.mrf.mxu0
        %v3709 = vadd.f32 %v3651, %v3708
        %v3710 = vpop.f32.mrf.mxu0
        %v3711 = vpop.f32.mrf.mxu0
        %v3712 = vadd.f32 %v3651, %v3711
        %v3713 = vpop.f32.mrf.mxu0
        %3714 = vmatprep.mubr.bf16.mxu0 0
        %3715 = vmatmul.mubr.bf16.gmra.mxu0 %v3669
        %v3716 = vpop.f32.mrf.mxu0
        %v3717 = vadd.f32 %v3651, %v3716
        %v3718 = vpop.f32.mrf.mxu0
        %v3719 = vpop.f32.mrf.mxu0
        %v3720 = vadd.f32 %v3651, %v3719
        %v3721 = vpop.f32.mrf.mxu0
        %3722 = vmatprep.mubr.bf16.mxu0 0
        %3723 = vmatmul.mubr.bf16.gmra.mxu0 %v3672
        %v3724 = vpop.f32.mrf.mxu0
        %v3725 = vadd.f32 %v3651, %v3724
        %v3726 = vpop.f32.mrf.mxu0
        %v3727 = vpop.f32.mrf.mxu0
        %v3728 = vpop.f32.mrf.mxu0
        %3729 = vdwg.mxu0
        %v3730 = vadd.f32 %v3709, %v2545
        %v3731 = vadd.f32 %v3712, %v2546
        %v3732 = vadd.f32 %v3717, %v2547
        %v3733 = vadd.f32 %v3720, %v2548
        %v3734 = vadd.f32 %v3725, %v2549
        %s3735 = scalar_lea.vmem %s14, 1
        %v3736 = vld [vmem:[%s3735] sm:$0x1]
        %s3737 = scalar_lea.vmem %s15, 1
        %v3738 = vld [vmem:[%s3737] sm:$0x1]
        %v3739 = vsel %vm900, %v3730, 0.0
        %3740 = vadd.xlane.f32.xlu0 %v3739
        %v3741 = vpop.xlane.xlu0 %3740
        %v3742 = vsel %vm900, %v3731, 0.0
        %3743 = vadd.xlane.f32.xlu0 %v3742
        %v3744 = vpop.xlane.xlu0 %3743
        %v3745 = vsel %vm900, %v3732, 0.0
        %3746 = vadd.xlane.f32.xlu0 %v3745
        %v3747 = vpop.xlane.xlu0 %3746
        %v3748 = vsel %vm900, %v3733, 0.0
        %3749 = vadd.xlane.f32.xlu0 %v3748
        %v3750 = vpop.xlane.xlu0 %3749
        %v3751 = vsel %vm900, %v3734, 0.0
        %3752 = vadd.xlane.f32.xlu0 %v3751
        %v3753 = vpop.xlane.xlu0 %3752
        %v3754 = vmul.f32 %v3741, %v916
        %v3755 = vmul.f32 %v3744, %v916
        %v3756 = vmul.f32 %v3747, %v916
        %v3757 = vmul.f32 %v3750, %v916
        %v3758 = vmul.f32 %v3753, %v916
        %v3759 = vsub.f32 %v3730, %v3754
        %v3760 = vsub.f32 %v3731, %v3755
        %v3761 = vsub.f32 %v3732, %v3756
        %v3762 = vsub.f32 %v3733, %v3757
        %v3763 = vsub.f32 %v3734, %v3758
        %v3764 = vmul.f32 %v3759, %v3759
        %v3765 = vmul.f32 %v3760, %v3760
        %v3766 = vmul.f32 %v3761, %v3761
        %v3767 = vmul.f32 %v3762, %v3762
        %v3768 = vmul.f32 %v3763, %v3763
        %v3769 = vsel %vm900, %v3764, 0.0
        %3770 = vadd.xlane.f32.xlu0 %v3769
        %v3771 = vpop.xlane.xlu0 %3770
        %v3772 = vsel %vm900, %v3765, 0.0
        %3773 = vadd.xlane.f32.xlu0 %v3772
        %v3774 = vpop.xlane.xlu0 %3773
        %v3775 = vsel %vm900, %v3766, 0.0
        %3776 = vadd.xlane.f32.xlu0 %v3775
        %v3777 = vpop.xlane.xlu0 %3776
        %v3778 = vsel %vm900, %v3767, 0.0
        %3779 = vadd.xlane.f32.xlu0 %v3778
        %v3780 = vpop.xlane.xlu0 %3779
        %v3781 = vsel %vm900, %v3768, 0.0
        %3782 = vadd.xlane.f32.xlu0 %v3781
        %v3783 = vpop.xlane.xlu0 %3782
        %v3784 = vmul.f32 %v3771, %v916
        %v3785 = vmul.f32 %v3774, %v916
        %v3786 = vmul.f32 %v3777, %v916
        %v3787 = vmul.f32 %v3780, %v916
        %v3788 = vmul.f32 %v3783, %v916
        %v3789 = vadd.f32 %v3784, 1e-05
        %v3790 = vadd.f32 %v3785, 1e-05
        %v3791 = vadd.f32 %v3786, 1e-05
        %v3792 = vadd.f32 %v3787, 1e-05
        %v3793 = vadd.f32 %v3788, 1e-05
        %v3794 = vrsqrt.pop %v3789
        %v3795 = vrsqrt.pop %v3790
        %v3796 = vrsqrt.pop %v3791
        %v3797 = vrsqrt.pop %v3792
        %v3798 = vrsqrt.pop %v3793
        %v3799 = vmul.f32 %v3759, %v3794
        %v3800 = vmul.f32 %v3760, %v3795
        %v3801 = vmul.f32 %v3761, %v3796
        %v3802 = vmul.f32 %v3762, %v3797
        %v3803 = vmul.f32 %v3763, %v3798
        %v3805 = vlaneseq
        %v3806 = vshrl.u32 %v3805, 7
        %v3807 = vsub.s32 0, %v3806
        %v3808 = vrot.slane %v3736, %v3807
        %v3810 = vmul.f32 %v3799, %v3808
        %v3811 = vmul.f32 %v3800, %v3808
        %v3812 = vmul.f32 %v3801, %v3808
        %v3813 = vmul.f32 %v3802, %v3808
        %v3814 = vmul.f32 %v3803, %v3808
        %v3816 = vlaneseq
        %v3817 = vshrl.u32 %v3816, 7
        %v3818 = vsub.s32 0, %v3817
        %v3819 = vrot.slane %v3738, %v3818
        %v3821 = vadd.f32 %v3810, %v3819
        %v3822 = vadd.f32 %v3811, %v3819
        %v3823 = vadd.f32 %v3812, %v3819
        %v3824 = vadd.f32 %v3813, %v3819
        %v3825 = vadd.f32 %v3814, %v3819
        %v3826 = vpack.c.bf16 %v3822, %v3821
        %v3827 = vpack.c.bf16 %v3824, %v3823
        %v3828 = vpack.c.bf16 %v3825, %v3825
        %s3829 = scalar_lea.vmem %s16, 16
        %v3830 = vld [vmem:[%s3829] sm:$0xf]
        %v3831 = vld [vmem:[%s3829 + $0x4] sm:$0xf]
        %v3832 = vld [vmem:[%s3829 + $0x8] sm:$0xf]
        %v3833 = vld [vmem:[%s3829 + $0xc] sm:$0xf]
        %s3834 = scalar_lea.vmem %s17, 1
        %v3835 = vld [vmem:[%s3834] sm:$0x1]
        %v3837 = vlaneseq
        %v3838 = vshrl.u32 %v3837, 7
        %v3839 = vsub.s32 0, %v3838
        %v3840 = vrot.slane %v3835, %v3839
        %v3846 = vunpack.c.l.b16 %v3830
        %v3847 = vunpack.c.l.b16 %v3831
        %v3848 = vunpack.c.l.b16 %v3832
        %v3849 = vunpack.c.l.b16 %v3833
        %v3850 = vpack.c.b16 %v3847, %v3846
        %v3851 = vpack.c.b16 %v3849, %v3848
        %v3855 = vsel %vm900, %v3826, 0
        %v3858 = vsel %vm900, %v3827, 0
        %v3861 = vsel %vm900, %v3828, 0
        %3863 = vmatprep.subr.bf16.mxu0 0
        %3864 = vmatpush1.bf16.msra.mxu0 0
        %3865 = vmatprep.subr.bf16.mxu0 0
        %3866 = vmatpush1.bf16.msra.mxu0 0
        %3867 = vmatprep.subr.bf16.mxu0 0
        %3868 = vmatpush1.bf16.msra.mxu0 0
        %3869 = vmatprep.subr.bf16.mxu0 0
        %3870 = vmatpush1.bf16.msra.mxu0 0
        %3871 = vmatprep.subr.bf16.mxu0 0
        %3872 = vmatpush1.bf16.msra.mxu0 0
        %3873 = vmatprep.subr.bf16.mxu0 0
        %3874 = vmatpush1.bf16.msra.mxu0 0
        %3875 = vmatprep.subr.bf16.mxu0 0
        %3876 = vmatpush1.bf16.msra.mxu0 %v3851
        %3877 = vmatprep.subr.bf16.mxu0 0
        %3878 = vmatpush1.bf16.msra.mxu0 %v3850
        %3879 = vmatprep.subr.bf16.mxu0 0
        %3880 = vmatpush2.bf16.msra.mxu0 0
        %3881 = vmatprep.subr.bf16.mxu0 0
        %3882 = vmatpush2.bf16.msra.mxu0 0
        %3883 = vmatprep.subr.bf16.mxu0 0
        %3884 = vmatpush2.bf16.msra.mxu0 0
        %3885 = vmatprep.subr.bf16.mxu0 0
        %3886 = vmatpush2.bf16.msra.mxu0 0
        %3887 = vmatprep.subr.bf16.mxu0 0
        %3888 = vmatpush2.bf16.msra.mxu0 0
        %3889 = vmatprep.subr.bf16.mxu0 0
        %3890 = vmatpush2.bf16.msra.mxu0 0
        %3891 = vmatprep.subr.bf16.mxu0 0
        %3892 = vmatpush2.bf16.msra.mxu0 0
        %3893 = vmatprep.subr.bf16.mxu0 0
        %3894 = vmatpush2.bf16.msra.mxu0 0
        %3895 = vmatprep.mubr.bf16.mxu0 0
        %3896 = vmatmul.mubr.bf16.gmra.mxu0 %v3855
        %v3897 = vpop.f32.mrf.mxu0
        %v3898 = vadd.f32 %v3840, %v3897
        %v3899 = vpop.f32.mrf.mxu0
        %v3900 = vpop.f32.mrf.mxu0
        %v3901 = vadd.f32 %v3840, %v3900
        %v3902 = vpop.f32.mrf.mxu0
        %3903 = vmatprep.mubr.bf16.mxu0 0
        %3904 = vmatmul.mubr.bf16.gmra.mxu0 %v3858
        %v3905 = vpop.f32.mrf.mxu0
        %v3906 = vadd.f32 %v3840, %v3905
        %v3907 = vpop.f32.mrf.mxu0
        %v3908 = vpop.f32.mrf.mxu0
        %v3909 = vadd.f32 %v3840, %v3908
        %v3910 = vpop.f32.mrf.mxu0
        %3911 = vmatprep.mubr.bf16.mxu0 0
        %3912 = vmatmul.mubr.bf16.gmra.mxu0 %v3861
        %v3913 = vpop.f32.mrf.mxu0
        %v3914 = vadd.f32 %v3840, %v3913
        %v3915 = vpop.f32.mrf.mxu0
        %v3916 = vpop.f32.mrf.mxu0
        %v3917 = vpop.f32.mrf.mxu0
        %3918 = vdwg.mxu0
        %v3919 = vmul.f32 %v3898, 1.702
        %v3920 = vmul.f32 %v3901, 1.702
        %v3921 = vmul.f32 %v3906, 1.702
        %v3922 = vmul.f32 %v3909, 1.702
        %v3923 = vmul.f32 %v3914, 1.702
        %v3924 = vxor.u32 %v3919, 2147483648
        %v3925 = vxor.u32 %v3920, 2147483648
        %v3926 = vxor.u32 %v3921, 2147483648
        %v3927 = vxor.u32 %v3922, 2147483648
        %v3928 = vxor.u32 %v3923, 2147483648
        %v3929 = vmul.f32 %v3924, 1.442695
        %v3930 = vpow.pop %v3929
        %v3931 = vmul.f32 %v3925, 1.442695
        %v3932 = vpow.pop %v3931
        %v3933 = vmul.f32 %v3926, 1.442695
        %v3934 = vpow.pop %v3933
        %v3935 = vmul.f32 %v3927, 1.442695
        %v3936 = vpow.pop %v3935
        %v3937 = vmul.f32 %v3928, 1.442695
        %v3938 = vpow.pop %v3937
        %v3939 = vadd.f32 %v3930, 1.0
        %v3940 = vadd.f32 %v3932, 1.0
        %v3941 = vadd.f32 %v3934, 1.0
        %v3942 = vadd.f32 %v3936, 1.0
        %v3943 = vadd.f32 %v3938, 1.0
        %v3944 = vrcp.pop %v3939
        %v3945 = vmul.f32 1.0, %v3944
        %v3946 = vrcp.pop %v3940
        %v3947 = vmul.f32 1.0, %v3946
        %v3948 = vrcp.pop %v3941
        %v3949 = vmul.f32 1.0, %v3948
        %v3950 = vrcp.pop %v3942
        %v3951 = vmul.f32 1.0, %v3950
        %v3952 = vrcp.pop %v3943
        %v3953 = vmul.f32 1.0, %v3952
        %v3954 = vmul.f32 %v3898, %v3945
        %v3955 = vmul.f32 %v3901, %v3947
        %v3956 = vmul.f32 %v3906, %v3949
        %v3957 = vmul.f32 %v3909, %v3951
        %v3958 = vmul.f32 %v3914, %v3953
        %v3959 = vpack.c.bf16 %v3955, %v3954
        %v3960 = vpack.c.bf16 %v3957, %v3956
        %v3961 = vpack.c.bf16 %v3958, %v3958
        %s3962 = scalar_lea.vmem %s18, 32
        %v3963 = vld [vmem:[%s3962] sm:$0xf]
        %v3964 = vld [vmem:[%s3962 + $0x4] sm:$0xf]
        %v3965 = vld [vmem:[%s3962 + $0x8] sm:$0xf]
        %v3966 = vld [vmem:[%s3962 + $0xc] sm:$0xf]
        %v3967 = vld [vmem:[%s3962 + $0x10] sm:$0xf]
        %v3968 = vld [vmem:[%s3962 + $0x14] sm:$0xf]
        %v3969 = vld [vmem:[%s3962 + $0x18] sm:$0xf]
        %v3970 = vld [vmem:[%s3962 + $0x1c] sm:$0xf]
        %s3971 = scalar_lea.vmem %s19, 1
        %v3972 = vld [vmem:[%s3971] sm:$0x1]
        %v3974 = vlaneseq
        %v3975 = vshrl.u32 %v3974, 7
        %v3976 = vsub.s32 0, %v3975
        %v3977 = vrot.slane %v3972, %v3976
        %v3987 = vunpack.c.l.b16 %v3963
        %v3988 = vunpack.c.l.b16 %v3964
        %v3989 = vunpack.c.l.b16 %v3965
        %v3990 = vunpack.c.l.b16 %v3966
        %v3991 = vunpack.c.l.b16 %v3967
        %v3992 = vunpack.c.l.b16 %v3968
        %v3993 = vunpack.c.l.b16 %v3969
        %v3994 = vunpack.c.l.b16 %v3970
        %v3995 = vpack.c.b16 %v3988, %v3987
        %v3996 = vpack.c.b16 %v3990, %v3989
        %v3997 = vpack.c.b16 %v3992, %v3991
        %v3998 = vpack.c.b16 %v3994, %v3993
        %v4004 = vsel %vm832, %v3959, 0
        %v4007 = vsel %vm832, %v3960, 0
        %v4010 = vsel %vm832, %v3961, 0
        %4012 = vmatprep.subr.bf16.mxu0 0
        %4013 = vmatpush1.bf16.msra.mxu0 0
        %4014 = vmatprep.subr.bf16.mxu0 0
        %4015 = vmatpush1.bf16.msra.mxu0 0
        %4016 = vmatprep.subr.bf16.mxu0 0
        %4017 = vmatpush1.bf16.msra.mxu0 0
        %4018 = vmatprep.subr.bf16.mxu0 0
        %4019 = vmatpush1.bf16.msra.mxu0 0
        %4020 = vmatprep.subr.bf16.mxu0 0
        %4021 = vmatpush1.bf16.msra.mxu0 %v3998
        %4022 = vmatprep.subr.bf16.mxu0 0
        %4023 = vmatpush1.bf16.msra.mxu0 %v3997
        %4024 = vmatprep.subr.bf16.mxu0 0
        %4025 = vmatpush1.bf16.msra.mxu0 %v3996
        %4026 = vmatprep.subr.bf16.mxu0 0
        %4027 = vmatpush1.bf16.msra.mxu0 %v3995
        %4028 = vmatprep.subr.bf16.mxu0 0
        %4029 = vmatpush2.bf16.msra.mxu0 0
        %4030 = vmatprep.subr.bf16.mxu0 0
        %4031 = vmatpush2.bf16.msra.mxu0 0
        %4032 = vmatprep.subr.bf16.mxu0 0
        %4033 = vmatpush2.bf16.msra.mxu0 0
        %4034 = vmatprep.subr.bf16.mxu0 0
        %4035 = vmatpush2.bf16.msra.mxu0 0
        %4036 = vmatprep.subr.bf16.mxu0 0
        %4037 = vmatpush2.bf16.msra.mxu0 0
        %4038 = vmatprep.subr.bf16.mxu0 0
        %4039 = vmatpush2.bf16.msra.mxu0 0
        %4040 = vmatprep.subr.bf16.mxu0 0
        %4041 = vmatpush2.bf16.msra.mxu0 0
        %4042 = vmatprep.subr.bf16.mxu0 0
        %4043 = vmatpush2.bf16.msra.mxu0 0
        %4044 = vmatprep.mubr.bf16.mxu0 0
        %4045 = vmatmul.mubr.bf16.gmra.mxu0 %v4004
        %v4046 = vpop.f32.mrf.mxu0
        %v4047 = vadd.f32 %v3977, %v4046
        %v4048 = vpop.f32.mrf.mxu0
        %v4049 = vpop.f32.mrf.mxu0
        %v4050 = vadd.f32 %v3977, %v4049
        %v4051 = vpop.f32.mrf.mxu0
        %4052 = vmatprep.mubr.bf16.mxu0 0
        %4053 = vmatmul.mubr.bf16.gmra.mxu0 %v4007
        %v4054 = vpop.f32.mrf.mxu0
        %v4055 = vadd.f32 %v3977, %v4054
        %v4056 = vpop.f32.mrf.mxu0
        %v4057 = vpop.f32.mrf.mxu0
        %v4058 = vadd.f32 %v3977, %v4057
        %v4059 = vpop.f32.mrf.mxu0
        %4060 = vmatprep.mubr.bf16.mxu0 0
        %4061 = vmatmul.mubr.bf16.gmra.mxu0 %v4010
        %v4062 = vpop.f32.mrf.mxu0
        %v4063 = vadd.f32 %v3977, %v4062
        %v4064 = vpop.f32.mrf.mxu0
        %v4065 = vpop.f32.mrf.mxu0
        %v4066 = vpop.f32.mrf.mxu0
        %4067 = vdwg.mxu0
        %v4068 = vadd.f32 %v4047, %v3730
        %v4069 = vadd.f32 %v4050, %v3731
        %v4070 = vadd.f32 %v4055, %v3732
        %v4071 = vadd.f32 %v4058, %v3733
        %v4072 = vadd.f32 %v4063, %v3734
        %v4073 = vld [vmem:[%s3] sm:$0xff]
        %v4075 = vsel %vm1275, %v4073, 0
        %4077 = vmatprep.subr.mxu0 0.0
        %4078 = vmatpush1.msra.mxu0 0.0
        %4079 = vmatprep.subr.mxu0 0.0
        %4080 = vmatpush1.msra.mxu0 0.0
        %4081 = vmatprep.subr.mxu0 0.0
        %4082 = vmatpush1.msra.mxu0 0.0
        %4083 = vmatprep.subr.mxu0 0.0
        %4084 = vmatpush1.msra.mxu0 0.0
        %4085 = vmatprep.subr.mxu0 0.0
        %4086 = vmatpush1.msra.mxu0 0.0
        %4087 = vmatprep.subr.mxu0 0.0
        %4088 = vmatpush1.msra.mxu0 0.0
        %4089 = vmatprep.subr.mxu0 0.0
        %4090 = vmatpush1.msra.mxu0 0.0
        %4091 = vmatprep.subr.mxu0 0.0
        %4092 = vmatpush1.msra.mxu0 0.0
        %4093 = vmatprep.subr.mxu0 0.0
        %4094 = vmatpush1.msra.mxu0 0.0
        %4095 = vmatprep.subr.mxu0 0.0
        %4096 = vmatpush1.msra.mxu0 0.0
        %4097 = vmatprep.subr.mxu0 0.0
        %4098 = vmatpush1.msra.mxu0 0.0
        %4099 = vmatprep.subr.mxu0 0.0
        %4100 = vmatpush1.msra.mxu0 %v4072
        %4101 = vmatprep.subr.mxu0 0.0
        %4102 = vmatpush1.msra.mxu0 %v4071
        %4103 = vmatprep.subr.mxu0 0.0
        %4104 = vmatpush1.msra.mxu0 %v4070
        %4105 = vmatprep.subr.mxu0 0.0
        %4106 = vmatpush1.msra.mxu0 %v4069
        %4107 = vmatprep.subr.mxu0 0.0
        %4108 = vmatpush1.msra.mxu0 %v4068
        %4109 = vmatprep.subr.mxu0 0.0
        %4110 = vmatpush2.msra.mxu0 0.0
        %4111 = vmatprep.subr.mxu0 0.0
        %4112 = vmatpush2.msra.mxu0 0.0
        %4113 = vmatprep.subr.mxu0 0.0
        %4114 = vmatpush2.msra.mxu0 0.0
        %4115 = vmatprep.subr.mxu0 0.0
        %4116 = vmatpush2.msra.mxu0 0.0
        %4117 = vmatprep.subr.mxu0 0.0
        %4118 = vmatpush2.msra.mxu0 0.0
        %4119 = vmatprep.subr.mxu0 0.0
        %4120 = vmatpush2.msra.mxu0 0.0
        %4121 = vmatprep.subr.mxu0 0.0
        %4122 = vmatpush2.msra.mxu0 0.0
        %4123 = vmatprep.subr.mxu0 0.0
        %4124 = vmatpush2.msra.mxu0 0.0
        %4125 = vmatprep.subr.mxu0 0.0
        %4126 = vmatpush2.msra.mxu0 0.0
        %4127 = vmatprep.subr.mxu0 0.0
        %4128 = vmatpush2.msra.mxu0 0.0
        %4129 = vmatprep.subr.mxu0 0.0
        %4130 = vmatpush2.msra.mxu0 0.0
        %4131 = vmatprep.subr.mxu0 0.0
        %4132 = vmatpush2.msra.mxu0 0.0
        %4133 = vmatprep.subr.mxu0 0.0
        %4134 = vmatpush2.msra.mxu0 0.0
        %4135 = vmatprep.subr.mxu0 0.0
        %4136 = vmatpush2.msra.mxu0 0.0
        %4137 = vmatprep.subr.mxu0 0.0
        %4138 = vmatpush2.msra.mxu0 0.0
        %4139 = vmatprep.subr.mxu0 0.0
        %4140 = vmatpush2.msra.mxu0 0.0
        %4141 = vmatprep.mubr.f32.mxu0 0.0
        %4142 = vmatmul.mubr.f32.gmra.mxu0 %v4075
        %v4143 = vpop.f32.mrf.mxu0
        %v4144 = vadd.f32 0.0, %v4143
        %v4145 = vpop.f32.mrf.mxu0
        %4146 = vdwg.mxu0
        %v4147 = vld [vmem:[%s20] sm:$0x1]
        %v4148 = vld [vmem:[%s21] sm:$0x1]
        %v4149 = vsel %vm900, %v4144, 0.0
        %4150 = vadd.xlane.f32.xlu0 %v4149
        %v4151 = vpop.xlane.xlu0 %4150
        %v4152 = vmul.f32 %v4151, %v916
        %v4153 = vsub.f32 %v4144, %v4152
        %v4154 = vmul.f32 %v4153, %v4153
        %v4155 = vsel %vm900, %v4154, 0.0
        %4156 = vadd.xlane.f32.xlu0 %v4155
        %v4157 = vpop.xlane.xlu0 %4156
        %v4158 = vmul.f32 %v4157, %v916
        %v4159 = vadd.f32 %v4158, 1e-05
        %v4160 = vrsqrt.pop %v4159
        %v4161 = vmul.f32 %v4153, %v4160
        %v4163 = vlaneseq
        %v4164 = vshrl.u32 %v4163, 7
        %v4165 = vsub.s32 0, %v4164
        %v4166 = vrot.slane %v4147, %v4165
        %v4168 = vmul.f32 %v4161, %v4166
        %v4170 = vlaneseq
        %v4171 = vshrl.u32 %v4170, 7
        %v4172 = vsub.s32 0, %v4171
        %v4173 = vrot.slane %v4148, %v4172
        %v4175 = vadd.f32 %v4168, %v4173
        %v4176 = vpack.c.bf16 %v4175, %v4175
        %v4177 = vld [vmem:[%s22] sm:$0xf]
        %v4178 = vld [vmem:[%s22 + $0x4] sm:$0xf]
        %v4179 = vld [vmem:[%s22 + $0x8] sm:$0xf]
        %v4180 = vld [vmem:[%s22 + $0xc] sm:$0xf]
        %v4185 = vunpack.c.l.b16 %v4177
        %v4186 = vunpack.c.l.b16 %v4178
        %v4187 = vunpack.c.l.b16 %v4179
        %v4188 = vunpack.c.l.b16 %v4180
        %v4189 = vpack.c.b16 %v4186, %v4185
        %v4190 = vpack.c.b16 %v4188, %v4187
        %v4194 = vsel %vm900, %v4176, 0
        %4196 = vmatprep.subr.bf16.mxu0 0
        %4197 = vmatpush1.bf16.msra.mxu0 0
        %4198 = vmatprep.subr.bf16.mxu0 0
        %4199 = vmatpush1.bf16.msra.mxu0 0
        %4200 = vmatprep.subr.bf16.mxu0 0
        %4201 = vmatpush1.bf16.msra.mxu0 0
        %4202 = vmatprep.subr.bf16.mxu0 0
        %4203 = vmatpush1.bf16.msra.mxu0 0
        %4204 = vmatprep.subr.bf16.mxu0 0
        %4205 = vmatpush1.bf16.msra.mxu0 0
        %4206 = vmatprep.subr.bf16.mxu0 0
        %4207 = vmatpush1.bf16.msra.mxu0 0
        %4208 = vmatprep.subr.bf16.mxu0 0
        %4209 = vmatpush1.bf16.msra.mxu0 %v4190
        %4210 = vmatprep.subr.bf16.mxu0 0
        %4211 = vmatpush1.bf16.msra.mxu0 %v4189
        %4212 = vmatprep.subr.bf16.mxu0 0
        %4213 = vmatpush2.bf16.msra.mxu0 0
        %4214 = vmatprep.subr.bf16.mxu0 0
        %4215 = vmatpush2.bf16.msra.mxu0 0
        %4216 = vmatprep.subr.bf16.mxu0 0
        %4217 = vmatpush2.bf16.msra.mxu0 0
        %4218 = vmatprep.subr.bf16.mxu0 0
        %4219 = vmatpush2.bf16.msra.mxu0 0
        %4220 = vmatprep.subr.bf16.mxu0 0
        %4221 = vmatpush2.bf16.msra.mxu0 0
        %4222 = vmatprep.subr.bf16.mxu0 0
        %4223 = vmatpush2.bf16.msra.mxu0 0
        %4224 = vmatprep.subr.bf16.mxu0 0
        %4225 = vmatpush2.bf16.msra.mxu0 0
        %4226 = vmatprep.subr.bf16.mxu0 0
        %4227 = vmatpush2.bf16.msra.mxu0 0
        %4228 = vmatprep.mubr.bf16.mxu0 0
        %4229 = vmatmul.mubr.bf16.gmra.mxu0 %v4194
        %v4230 = vpop.f32.mrf.mxu0
        %v4231 = vadd.f32 0.0, %v4230
        %v4232 = vpop.f32.mrf.mxu0
        %v4233 = vpop.f32.mrf.mxu0
        %v4234 = vpop.f32.mrf.mxu0
        %4235 = vdwg.mxu0
        %vm4236 = vcmask 130048
        %4237 = vst.msk [vmem:[%s706] sm:$0xff] %vm4236, %v4231
        %s4238 = sand.u32 %s533, 1
        %s4239 = scalar_lea.sflag [#allocation3], %s4238
        %s4240 = sand.u32 %s533, 1
        %s4241 = smul.addr %s4240, 8
        %s4242 = scalar_lea.vmem [#allocation2], %s4241
        // Predicated region
        $region113: #{clip_image_features.1} parent=111 // pred_check
          %p4243 = pneg %p543
        $region114: #{clip_image_features.1} parent=111 // pred_check_branch
          %4245 = sbr.rel (%p4243) target = $region116
        $region115: #{clip_image_features.1} parent=111 // pred_region
          %s4247 = ssub.s32 128, 128
          %4248 = vsyncadd %s4239, %s4247
          %s4249 = smul.addr %s37, 128
          %s4250 = scalar_lea.hbm %s23, %s4249
          %s4252 = sshll.u32 %s4242, 4
          %s4253 = int_to_ptr.vmem [resolvable:$true] %s4252
          %4255 = dma.vmem_to_hbm [thread:$0]  %s4253, 128, %s4250, %s4239
        $region116: #{clip_image_features.1} parent=111 // pred_fallthru
          _
      $region112: #{clip_image_features.1} parent=5 // pred_fallthru
        _
      %p4256 = scmp.le.s32.totalorder 2, %s32
      // Predicated region
      $region117: #{clip_image_features.1} parent=5 // pred_check
        %p4257 = pneg %p4256
      $region118: #{clip_image_features.1} parent=5 // pred_check_branch
        %4259 = sbr.rel (%p4257) target = $region120
      $region119: #{clip_image_features.1} parent=5 // pred_region
        %s4260 = ssub.s32 %s32, 2
        // Predicated region
        $region121: #{clip_image_features.1} parent=119 // pred_check
          %p4261 = pneg %p549
        $region122: #{clip_image_features.1} parent=119 // pred_check_branch
          %4263 = sbr.rel (%p4261) target = $region124
        $region123: #{clip_image_features.1} parent=119 // pred_region
          %s4264 = sand.u32 %s534, 1
          %s4265 = scalar_lea.sflag [#allocation3], %s4264
          %s4266 = sand.u32 %s534, 1
          %s4267 = smul.addr %s4266, 8
          %s4268 = scalar_lea.vmem [#allocation2], %s4267
          %4269 = dma.done %s4265, 128
        $region124: #{clip_image_features.1} parent=119 // pred_fallthru
          _
      $region120: #{clip_image_features.1} parent=5 // pred_fallthru
        _
    $region6: #{clip_image_features.1} parent=1 // loop_footer
      %s36 = sadd.s32 1, %s32
    $region7: #{clip_image_features.1} parent=1 // loop_footer_branch
      %31 = sbr.rel target = $region3
    $region8: #{clip_image_features.1} parent=1 // loop_exit
      _
    %4270 = vsyncpa [#allocation3], 1
    %s4271 = scalar_lea.sflag [#allocation3], 1
    %4272 = vsyncpa %s4271, 1

</llo_original>
